<compile_context>
chip_gen: v7x
topology: tpu7x:2x2x1
jax: 0.10.0
libtpu: 0.0.40
codegen_flags: <defaults>
</compile_context>

<pallas_src>
import jax
import jax.numpy as jnp
from jax.experimental import pallas as pl
from jax.experimental.pallas import tpu as pltpu

_LANE = 128
_SUB = 8
_VMEM_LIMIT = 32 * 1024 * 1024        # explicit scoped-VMEM budget (safe on v5e/v6e/v7x)
_VMEM_TILE_BUDGET = 24 * 1024 * 1024  # target per-call working set when picking tiles


def _round_up(x, m):
    return ((x + m - 1) // m) * m


# --------------------------------------------------------------------------
# Pallas kernel 1: GEMM + bias, with optional fused tanh OR fused per-column
# batch statistics (sum / sum-of-squares over the valid rows) in the epilogue.
# --------------------------------------------------------------------------
def _make_gemm_kernel(activation, with_stats, m_valid, m_padded, tm):
    def kernel(x_ref, w_ref, b_ref, y_ref, *stats_refs):
        y = jnp.dot(x_ref[...], w_ref[...], preferred_element_type=jnp.float32)
        y = y + b_ref[...]
        if activation == "tanh":
            y = jnp.tanh(y)
        y_ref[...] = y
        if with_stats:
            (stats_ref,) = stats_refs
            if m_padded > m_valid:  # mask zero-padded rows out of the statistics
                row = (pl.program_id(0) * tm
                       + jax.lax.broadcasted_iota(jnp.int32, (tm, 1), 0))
                keep = (row < m_valid).astype(jnp.float32)
                yk = y * keep
                yk2 = (y * y) * keep
            else:
                yk = y
                yk2 = y * y
            s1 = jnp.sum(yk, axis=0, keepdims=True)    # (1, C) column sums
            s2 = jnp.sum(yk2, axis=0, keepdims=True)   # (1, C) column sum-of-squares
            r = jax.lax.broadcasted_iota(jnp.int32, (_SUB, 1), 0)
            stats = jnp.where(r == 0, s1, jnp.where(r == 1, s2, 0.0))  # (8, C)
            stats_ref[...] = stats[None]                                # (1, 8, C)
    return kernel


def gemm_fused(x, w, b, *, activation=None, with_stats=False,
               compute_dtype=jnp.bfloat16, tm=512):
    """y = act(x @ w + b) with lane-dense output (C % 128 == 0).

    Returns y: (M_pad, C) float32 (caller slices valid rows/cols).  If
    with_stats, also returns a (num_tiles, 8, C) float32 array with the
    per-tile column sum in row 0 and column sum-of-squares in row 1.
    """
    M, K = x.shape
    Kw, C = w.shape
    assert K == Kw and C % _LANE == 0

    in_bytes = jnp.dtype(compute_dtype).itemsize

    # Pick the M tile: as large as possible, but keep the double-buffered
    # working set under budget; never fall back to a single unbounded block.
    tm_eff = tm
    while tm_eff > 64:
        need = (2 * (tm_eff * K + K * C) * in_bytes
                + 2 * tm_eff * C * 4 + 2 * _SUB * C * 4)
        if need <= _VMEM_TILE_BUDGET:
            break
        tm_eff //= 2
    if M <= tm_eff:
        m_pad = _round_up(max(M, _SUB), _SUB)
        tm_eff = m_pad
    else:
        m_pad = _round_up(M, tm_eff)
    grid = m_pad // tm_eff

    x = x.astype(compute_dtype)   # bf16 MXU inputs (halves patch DMA bytes)
    w = w.astype(compute_dtype)
    if m_pad > M:
        x = jnp.pad(x, ((0, m_pad - M), (0, 0)))

    out_shapes = [jax.ShapeDtypeStruct((m_pad, C), jnp.float32)]
    out_specs = [pl.BlockSpec((tm_eff, C), lambda i: (i, 0))]
    if with_stats:
        out_shapes.append(jax.ShapeDtypeStruct((grid, _SUB, C), jnp.float32))
        out_specs.append(pl.BlockSpec((1, _SUB, C), lambda i: (i, 0, 0)))

    res = pl.pallas_call(
        _make_gemm_kernel(activation, with_stats, M, m_pad, tm_eff),
        out_shape=tuple(out_shapes),
        grid=(grid,),
        in_specs=[
            pl.BlockSpec((tm_eff, K), lambda i: (i, 0)),
            pl.BlockSpec((K, C), lambda i: (0, 0)),
            pl.BlockSpec((1, C), lambda i: (0, 0)),
        ],
        out_specs=tuple(out_specs),
        compiler_params=pltpu.CompilerParams(
            dimension_semantics=("parallel",),
            vmem_limit_bytes=_VMEM_LIMIT),
    )(x, w, b.reshape(1, C).astype(jnp.float32))

    if with_stats:
        return res[0], res[1]
    return res[0]


# --------------------------------------------------------------------------
# Pallas kernel 2: tiled normalize + affine + ReLU (BN second pass).
# --------------------------------------------------------------------------
def _bn_relu_kernel(y_ref, s_ref, t_ref, o_ref):
    o_ref[...] = jnp.maximum(y_ref[...] * s_ref[...] + t_ref[...],
                             0.0).astype(o_ref.dtype)


def bn_relu_apply(y, scale_row, shift_row, *, out_dtype, tm=512):
    M, C = y.shape
    t = min(tm, M)
    while M % t:
        t //= 2
    grid = M // t
    return pl.pallas_call(
        _bn_relu_kernel,
        out_shape=jax.ShapeDtypeStruct((M, C), out_dtype),
        grid=(grid,),
        in_specs=[
            pl.BlockSpec((t, C), lambda i: (i, 0)),
            pl.BlockSpec((1, C), lambda i: (0, 0)),
            pl.BlockSpec((1, C), lambda i: (0, 0)),
        ],
        out_specs=pl.BlockSpec((t, C), lambda i: (i, 0)),
        compiler_params=pltpu.CompilerParams(
            dimension_semantics=("parallel",),
            vmem_limit_bytes=_VMEM_LIMIT),
    )(y, scale_row, shift_row)


# --------------------------------------------------------------------------
# Tiny plain-JAX glue: BN statistics combine, sub-pixel weights, im2col (NHWC).
# --------------------------------------------------------------------------
def _bn_scale_shift(stats, *, m_valid, groups, cout, gamma, beta, cpad, eps=1e-5):
    """Combine the per-tile, per-column partials into per-channel affine params."""
    col_sum = stats[:, 0, :].sum(axis=0)
    col_sq = stats[:, 1, :].sum(axis=0)
    cvalid = groups * cout
    s = col_sum[:cvalid].reshape(groups, cout).sum(axis=0)
    q = col_sq[:cvalid].reshape(groups, cout).sum(axis=0)
    cnt = float(m_valid * groups)
    mean = s / cnt
    var = q / cnt - mean * mean          # biased variance (torch training BN)
    inv = jax.lax.rsqrt(var + eps)
    scale_c = gamma * inv
    shift_c = beta - mean * scale_c
    scale = jnp.pad(jnp.tile(scale_c, groups), (0, cpad - cvalid))
    shift = jnp.pad(jnp.tile(shift_c, groups), (0, cpad - cvalid))
    return scale.reshape(1, cpad), shift.reshape(1, cpad)


# kernel taps used by output phase parity 0 / 1 (derived from
# y[j] = sum_i x[i] * w[j - 2*i + 1] for stride 2, padding 1, k=4)
_KTAP = ((3, 1), (2, 0))


def _subpixel_weight(w, b, cpad):
    """(Cin, Cout, 4, 4) ConvTranspose2d weight (stride 2, pad 1) ->
    (9*Cin, cpad) GEMM weight over 3x3 patches; output columns ordered
    (py, px, co), zero-padded to cpad lanes."""
    cin, cout = w.shape[0], w.shape[1]
    w9 = jnp.zeros((9, cin, 4 * cout), w.dtype)
    for py in range(2):
        for px in range(2):
            ph = 2 * py + px
            for dy in range(2):
                for dx in range(2):
                    r, c = py + dy, px + dx              # patch offsets (0..2)
                    ky, kx = _KTAP[py][dy], _KTAP[px][dx]
                    w9 = w9.at[r * 3 + c, :, ph * cout:(ph + 1) * cout].set(
                        w[:, :, ky, kx])
    w9 = w9.reshape(9 * cin, 4 * cout)
    b4 = jnp.tile(b, 4)
    if cpad > 4 * cout:
        w9 = jnp.pad(w9, ((0, 0), (0, cpad - 4 * cout)))
        b4 = jnp.pad(b4, (0, cpad - 4 * cout))
    return w9, b4


def _patches_3x3(x):
    """x: (N, H, W, C) NHWC -> (N*H*W, 9*C) 3x3 patches of the 1-padded input.
    Channel-last, so no lane-hostile transpose is needed."""
    n, h, w, c = x.shape
    xp = jnp.pad(x, ((0, 0), (1, 1), (1, 1), (0, 0)))
    cols = [xp[:, dy:dy + h, dx:dx + w, :] for dy in range(3) for dx in range(3)]
    return jnp.stack(cols, axis=3).reshape(n * h * w, 9 * c)


# --------------------------------------------------------------------------
# Generator layers
# --------------------------------------------------------------------------
def _head_block(noise, w, b, gamma, beta, *, compute_dtype):
    """ConvTranspose2d(k=4, s=1, p=0) on a 1x1 input + BN + ReLU -> (N,4,4,C)."""
    n, cin = noise.shape
    cout = w.shape[1]
    g = 16                                    # the 4x4 output positions
    cvalid = g * cout
    cpad = _round_up(cvalid, _LANE)
    w1 = w.transpose(0, 2, 3, 1).reshape(cin, cvalid)   # columns ordered (i, j, co)
    b1 = jnp.tile(b, g)
    if cpad > cvalid:
        w1 = jnp.pad(w1, ((0, 0), (0, cpad - cvalid)))
        b1 = jnp.pad(b1, (0, cpad - cvalid))
    y, stats = gemm_fused(noise, w1, b1, with_stats=True,
                          compute_dtype=compute_dtype)
    scale, shift = _bn_scale_shift(stats, m_valid=n, groups=g, cout=cout,
                                   gamma=gamma, beta=beta, cpad=cpad)
    a = bn_relu_apply(y, scale, shift, out_dtype=compute_dtype)[:n, :cvalid]
    return a.reshape(n, 4, 4, cout)


def _up_block(x, w, b, gamma, beta, *, final_tanh, compute_dtype):
    """ConvTranspose2d(k=4, s=2, p=1) + (BN+ReLU | Tanh), NHWC in / NHWC out."""
    n, h, wd, cin = x.shape
    cout = w.shape[1]
    cvalid = 4 * cout
    cpad = _round_up(cvalid, _LANE)
    w9, b4 = _subpixel_weight(w, b, cpad)
    patches = _patches_3x3(x.astype(compute_dtype))
    m = n * h * wd
    if final_tanh:
        y = gemm_fused(patches, w9, b4, activation="tanh",
                       with_stats=False, compute_dtype=compute_dtype)
        a = y[:m, :cvalid]                                   # float32
    else:
        y, stats = gemm_fused(patches, w9, b4, with_stats=True,
                              compute_dtype=compute_dtype)
        scale, shift = _bn_scale_shift(stats, m_valid=m, groups=4, cout=cout,
                                       gamma=gamma, beta=beta, cpad=cpad)
        a = bn_relu_apply(y, scale, shift, out_dtype=compute_dtype)[:m, :cvalid]
    # pixel shuffle: phase (py, px) -> output pixel (2i+py, 2j+px)
    a = a.reshape(n, h, wd, 2, 2, cout).transpose(0, 1, 3, 2, 4, 5)
    return a.reshape(n, 2 * h, 2 * wd, cout)


def generator_forward(noise, params, compute_dtype=jnp.bfloat16):
    """noise: (N, noise_dim) -> (N, image_channel, 64, 64) float32."""
    p0 = params[0]
    x = _head_block(noise, p0["w"], p0["b"], p0["gamma"], p0["beta"],
                    compute_dtype=compute_dtype)
    for i, p in enumerate(params[1:]):
        last = i == len(params) - 2
        x = _up_block(x, p["w"], p["b"], p["gamma"], p["beta"],
                      final_tanh=last, compute_dtype=compute_dtype)
    return x.transpose(0, 3, 1, 2).astype(jnp.float32)   # NHWC -> NCHW once


def init_generator_params(key, noise_dim, hidden_dim=8, image_channel=3):
    cfg = [
        (noise_dim,      hidden_dim * 8, True),
        (hidden_dim * 8, hidden_dim * 4, True),
        (hidden_dim * 4, hidden_dim * 2, True),
        (hidden_dim * 2, hidden_dim,     True),
        (hidden_dim,     image_channel,  False),
    ]
    params = []
    for cin, cout, has_bn in cfg:
        key, k1, k2, k3, k4 = jax.random.split(key, 5)
        params.append({
            "w": 0.02 * jax.random.normal(k1, (cin, cout, 4, 4), jnp.float32),
            "b": 0.01 * jax.random.normal(k2, (cout,), jnp.float32),
            "gamma": (1.0 + 0.1 * jax.random.normal(k3, (cout,), jnp.float32))
                     if has_bn else None,
            "beta": (0.1 * jax.random.normal(k4, (cout,), jnp.float32))
                    if has_bn else None,
        })
    return params


# --------------------------------------------------------------------------
# Pure-JAX reference (correctness check only)
# --------------------------------------------------------------------------
def _ref_forward(noise, params, eps=1e-5):
    x = noise.reshape(noise.shape[0], noise.shape[1], 1, 1)
    n_layers = len(params)
    for i, p in enumerate(params):
        stride, pad = (1, 0) if i == 0 else (2, 1)
        k = p["w"].shape[2]
        wc = jnp.flip(p["w"], axis=(2, 3)).transpose(1, 0, 2, 3)
        q = k - 1 - pad
        x = jax.lax.conv_general_dilated(
            x, wc, window_strides=(1, 1), padding=[(q, q), (q, q)],
            lhs_dilation=(stride, stride),
            dimension_numbers=("NCHW", "OIHW", "NCHW"))
        x = x + p["b"].reshape(1, -1, 1, 1)
        if i < n_layers - 1:
            mean = x.mean(axis=(0, 2, 3), keepdims=True)
            var = ((x - mean) ** 2).mean(axis=(0, 2, 3), keepdims=True)
            xn = (x - mean) / jnp.sqrt(var + eps)
            x = jnp.maximum(xn * p["gamma"].reshape(1, -1, 1, 1)
                            + p["beta"].reshape(1, -1, 1, 1), 0.0)
        else:
            x = jnp.tanh(x)
    return x


# --------------------------------------------------------------------------
if __name__ == "__main__":
    NOISE_DIM, HIDDEN_DIM, IMG_CH, BATCH = 16, 8, 3, 2

    key = jax.random.PRNGKey(0)
    key, pkey, nkey = jax.random.split(key, 3)
    params = init_generator_params(pkey, NOISE_DIM, HIDDEN_DIM, IMG_CH)
    noise = jax.random.normal(nkey, (BATCH, NOISE_DIM), jnp.float32)

    fwd = jax.jit(generator_forward)          # bf16 MXU inputs, f32 accumulation
    out = jax.block_until_ready(fwd(noise, params))
    assert out.shape == (BATCH, IMG_CH, 64, 64), out.shape

    ref = jax.block_until_ready(_ref_forward(noise, params))
    max_err = float(jnp.max(jnp.abs(out - ref)))
    # bf16 MXU inputs -> loose tolerance vs the f32 reference.
    if not jnp.allclose(out, ref, rtol=5e-2, atol=5e-2):
        raise AssertionError(
            f"Pallas output does not match reference (max abs err {max_err:.4f})")
    print("KERNEL_OK")
</pallas_src>

<mosaic_0001>
module attributes {stable_mosaic.version = 11 : i64} {
  func.func @kernel(%arg0: i32, %arg1: memref<8x16xbf16, #tpu.memory_space<vmem>>, %arg2: memref<16x1024xbf16, #tpu.memory_space<vmem>>, %arg3: memref<1x1024xf32, #tpu.memory_space<vmem>>, %arg4: memref<8x1024xf32, #tpu.memory_space<vmem>>, %arg5: memref<1x8x1024xf32, #tpu.memory_space<vmem>>) attributes {dimension_semantics = [#tpu.dimension_semantics<parallel>], iteration_bounds = array<i64: 1>, scalar_prefetch = 0 : i64, scratch_operands = 0 : i64, tpu.core_type = #tpu.core_type<tc>, window_params = [{transform_indices = @transform_0, window_bounds = array<i64: 8, 16>}, {pipeline_mode = #tpu.pipeline_mode<synchronous>, transform_indices = @transform_1, window_bounds = array<i64: 16, 1024>}, {pipeline_mode = #tpu.pipeline_mode<synchronous>, transform_indices = @transform_2, window_bounds = array<i64: 1, 1024>}, {transform_indices = @transform_3, window_bounds = array<i64: 8, 1024>}, {transform_indices = @transform_4, window_bounds = array<i64: 1, 8, 1024>}]} {
    %c0 = arith.constant 0 : index
    %c0_0 = arith.constant 0 : index
    %0 = vector.load %arg1[%c0, %c0_0] : memref<8x16xbf16, #tpu.memory_space<vmem>>, vector<8x16xbf16>
    %c0_1 = arith.constant 0 : index
    %c0_2 = arith.constant 0 : index
    %1 = vector.load %arg2[%c0_1, %c0_2] : memref<16x1024xbf16, #tpu.memory_space<vmem>>, vector<16x1024xbf16>
    %cst = arith.constant dense<0.000000e+00> : vector<8x1024xf32>
    %2 = tpu.matmul %0, %1, %cst {dimension_numbers = #tpu.dot_dimension_numbers<[1], [0], [0], [1], [0, 0, 1, 1], [], []>} : vector<8x16xbf16>, vector<16x1024xbf16>, vector<8x1024xf32> -> vector<8x1024xf32>
    %c0_3 = arith.constant 0 : index
    %c0_4 = arith.constant 0 : index
    %3 = vector.load %arg3[%c0_3, %c0_4] : memref<1x1024xf32, #tpu.memory_space<vmem>>, vector<1x1024xf32>
    %4 = vector.broadcast %3 : vector<1x1024xf32> to vector<8x1024xf32>
    %5 = arith.addf %2, %4 : vector<8x1024xf32>
    %c0_5 = arith.constant 0 : index
    %c0_6 = arith.constant 0 : index
    %6 = vector.load %arg4[%c0_5, %c0_6] : memref<8x1024xf32, #tpu.memory_space<vmem>>, vector<8x1024xf32>
    tpu.vector_store %arg4[%c0_5, %c0_6], %5 {strides = array<i32>} : memref<8x1024xf32, #tpu.memory_space<vmem>>, vector<8x1024xf32>,
    %c8_i32 = arith.constant 8 : i32
    %7 = arith.muli %arg0, %c8_i32 : i32
    %8 = tpu.iota {dimensions = array<i32: 0>} : vector<8x1xi32>
    %9 = vector.broadcast %7 : i32 to vector<8x1xi32>
    %10 = arith.addi %9, %8 : vector<8x1xi32>
    %c2_i32 = arith.constant 2 : i32
    %11 = vector.broadcast %c2_i32 : i32 to vector<8x1xi32>
    %12 = arith.cmpi slt, %10, %11 : vector<8x1xi32>
    %13 = arith.extui %12 : vector<8x1xi1> to vector<8x1xi32>
    %14 = arith.sitofp %13 : vector<8x1xi32> to vector<8x1xf32>
    %15 = vector.broadcast %14 : vector<8x1xf32> to vector<8x1024xf32>
    %16 = arith.mulf %5, %15 : vector<8x1024xf32>
    %17 = arith.mulf %5, %5 : vector<8x1024xf32>
    %18 = vector.broadcast %14 : vector<8x1xf32> to vector<8x1024xf32>
    %19 = arith.mulf %17, %18 : vector<8x1024xf32>
    %cst_7 = arith.constant dense<0.000000e+00> : vector<1024xf32>
    %20 = vector.multi_reduction <add>, %16, %cst_7 [0] : vector<8x1024xf32> to vector<1024xf32>
    %21 = vector.shape_cast %20 : vector<1024xf32> to vector<1x1024xf32>
    %cst_8 = arith.constant dense<0.000000e+00> : vector<1024xf32>
    %22 = vector.multi_reduction <add>, %19, %cst_8 [0] : vector<8x1024xf32> to vector<1024xf32>
    %23 = vector.shape_cast %22 : vector<1024xf32> to vector<1x1024xf32>
    %24 = tpu.iota {dimensions = array<i32: 0>} : vector<8x1xi32>
    %c0_i32 = arith.constant 0 : i32
    %25 = vector.broadcast %c0_i32 : i32 to vector<8x1xi32>
    %26 = arith.cmpi eq, %24, %25 : vector<8x1xi32>
    %c1_i32 = arith.constant 1 : i32
    %27 = vector.broadcast %c1_i32 : i32 to vector<8x1xi32>
    %28 = arith.cmpi eq, %24, %27 : vector<8x1xi32>
    %cst_9 = arith.constant 0.000000e+00 : f32
    %29 = vector.shape_cast %28 : vector<8x1xi1> to vector<8x1xi1>
    %30 = vector.broadcast %29 : vector<8x1xi1> to vector<8x1024xi1>
    %31 = vector.shape_cast %23 : vector<1x1024xf32> to vector<1x1024xf32>
    %32 = vector.broadcast %31 : vector<1x1024xf32> to vector<8x1024xf32>
    %33 = vector.broadcast %cst_9 : f32 to vector<8x1024xf32>
    %34 = arith.select %30, %32, %33 : vector<8x1024xi1>, vector<8x1024xf32>
    %35 = vector.shape_cast %26 : vector<8x1xi1> to vector<8x1xi1>
    %36 = vector.broadcast %35 : vector<8x1xi1> to vector<8x1024xi1>
    %37 = vector.shape_cast %21 : vector<1x1024xf32> to vector<1x1024xf32>
    %38 = vector.broadcast %37 : vector<1x1024xf32> to vector<8x1024xf32>
    %39 = arith.select %36, %38, %34 : vector<8x1024xi1>, vector<8x1024xf32>
    %40 = vector.shape_cast %39 : vector<8x1024xf32> to vector<1x8x1024xf32>
    %c0_10 = arith.constant 0 : index
    %c0_11 = arith.constant 0 : index
    %c0_12 = arith.constant 0 : index
    %41 = vector.load %arg5[%c0_10, %c0_11, %c0_12] : memref<1x8x1024xf32, #tpu.memory_space<vmem>>, vector<1x8x1024xf32>
    tpu.vector_store %arg5[%c0_10, %c0_11, %c0_12], %40 {strides = array<i32>} : memref<1x8x1024xf32, #tpu.memory_space<vmem>>, vector<1x8x1024xf32>,
    return
  }
  func.func @transform_0(%arg0: i32) -> (i32, i32) {
    %c0_i32 = arith.constant 0 : i32
    %c0_i32_0 = arith.constant 0 : i32
    return %arg0, %c0_i32 : i32, i32
  }
  func.func @transform_1(%arg0: i32) -> (i32, i32) {
    %c0_i32 = arith.constant 0 : i32
    %c0_i32_0 = arith.constant 0 : i32
    %c0_i32_1 = arith.constant 0 : i32
    return %c0_i32, %c0_i32_0 : i32, i32
  }
  func.func @transform_2(%arg0: i32) -> (i32, i32) {
    %c0_i32 = arith.constant 0 : i32
    %c0_i32_0 = arith.constant 0 : i32
    %c0_i32_1 = arith.constant 0 : i32
    return %c0_i32, %c0_i32_0 : i32, i32
  }
  func.func @transform_3(%arg0: i32) -> (i32, i32) {
    %c0_i32 = arith.constant 0 : i32
    %c0_i32_0 = arith.constant 0 : i32
    return %arg0, %c0_i32 : i32, i32
  }
  func.func @transform_4(%arg0: i32) -> (i32, i32, i32) {
    %c0_i32 = arith.constant 0 : i32
    %c0_i32_0 = arith.constant 0 : i32
    %c0_i32_1 = arith.constant 0 : i32
    return %arg0, %c0_i32, %c0_i32_0 : i32, i32, i32
  }
}

module attributes {stable_mosaic.version = 11 : i64} {
  func.func @_bn_relu_kernel(%arg0: i32, %arg1: memref<8x1024xf32, #tpu.memory_space<vmem>>, %arg2: memref<1x1024xf32, #tpu.memory_space<vmem>>, %arg3: memref<1x1024xf32, #tpu.memory_space<vmem>>, %arg4: memref<8x1024xbf16, #tpu.memory_space<vmem>>) attributes {dimension_semantics = [#tpu.dimension_semantics<parallel>], iteration_bounds = array<i64: 1>, scalar_prefetch = 0 : i64, scratch_operands = 0 : i64, tpu.core_type = #tpu.core_type<tc>, window_params = [{transform_indices = @transform_0, window_bounds = array<i64: 8, 1024>}, {pipeline_mode = #tpu.pipeline_mode<synchronous>, transform_indices = @transform_1, window_bounds = array<i64: 1, 1024>}, {pipeline_mode = #tpu.pipeline_mode<synchronous>, transform_indices = @transform_2, window_bounds = array<i64: 1, 1024>}, {transform_indices = @transform_3, window_bounds = array<i64: 8, 1024>}]} {
    %c0 = arith.constant 0 : index
    %c0_0 = arith.constant 0 : index
    %0 = vector.load %arg1[%c0, %c0_0] : memref<8x1024xf32, #tpu.memory_space<vmem>>, vector<8x1024xf32>
    %c0_1 = arith.constant 0 : index
    %c0_2 = arith.constant 0 : index
    %1 = vector.load %arg2[%c0_1, %c0_2] : memref<1x1024xf32, #tpu.memory_space<vmem>>, vector<1x1024xf32>
    %2 = vector.broadcast %1 : vector<1x1024xf32> to vector<8x1024xf32>
    %3 = arith.mulf %0, %2 : vector<8x1024xf32>
    %c0_3 = arith.constant 0 : index
    %c0_4 = arith.constant 0 : index
    %4 = vector.load %arg3[%c0_3, %c0_4] : memref<1x1024xf32, #tpu.memory_space<vmem>>, vector<1x1024xf32>
    %5 = vector.broadcast %4 : vector<1x1024xf32> to vector<8x1024xf32>
    %6 = arith.addf %3, %5 : vector<8x1024xf32>
    %cst = arith.constant 0.000000e+00 : f32
    %7 = vector.broadcast %cst : f32 to vector<8x1024xf32>
    %8 = arith.maximumf %6, %7 : vector<8x1024xf32>
    %9 = arith.truncf %8 : vector<8x1024xf32> to vector<8x1024xbf16>
    %c0_5 = arith.constant 0 : index
    %c0_6 = arith.constant 0 : index
    %10 = vector.load %arg4[%c0_5, %c0_6] : memref<8x1024xbf16, #tpu.memory_space<vmem>>, vector<8x1024xbf16>
    tpu.vector_store %arg4[%c0_5, %c0_6], %9 {strides = array<i32>} : memref<8x1024xbf16, #tpu.memory_space<vmem>>, vector<8x1024xbf16>,
    return
  }
  func.func @transform_0(%arg0: i32) -> (i32, i32) {
    %c0_i32 = arith.constant 0 : i32
    %c0_i32_0 = arith.constant 0 : i32
    return %arg0, %c0_i32 : i32, i32
  }
  func.func @transform_1(%arg0: i32) -> (i32, i32) {
    %c0_i32 = arith.constant 0 : i32
    %c0_i32_0 = arith.constant 0 : i32
    %c0_i32_1 = arith.constant 0 : i32
    return %c0_i32, %c0_i32_0 : i32, i32
  }
  func.func @transform_2(%arg0: i32) -> (i32, i32) {
    %c0_i32 = arith.constant 0 : i32
    %c0_i32_0 = arith.constant 0 : i32
    %c0_i32_1 = arith.constant 0 : i32
    return %c0_i32, %c0_i32_0 : i32, i32
  }
  func.func @transform_3(%arg0: i32) -> (i32, i32) {
    %c0_i32 = arith.constant 0 : i32
    %c0_i32_0 = arith.constant 0 : i32
    return %arg0, %c0_i32 : i32, i32
  }
}

module attributes {stable_mosaic.version = 11 : i64} {
  func.func @kernel(%arg0: i32, %arg1: memref<32x576xbf16, #tpu.memory_space<vmem>>, %arg2: memref<576x128xbf16, #tpu.memory_space<vmem>>, %arg3: memref<1x128xf32, #tpu.memory_space<vmem>>, %arg4: memref<32x128xf32, #tpu.memory_space<vmem>>, %arg5: memref<1x8x128xf32, #tpu.memory_space<vmem>>) attributes {dimension_semantics = [#tpu.dimension_semantics<parallel>], iteration_bounds = array<i64: 1>, scalar_prefetch = 0 : i64, scratch_operands = 0 : i64, tpu.core_type = #tpu.core_type<tc>, window_params = [{transform_indices = @transform_0, window_bounds = array<i64: 32, 576>}, {pipeline_mode = #tpu.pipeline_mode<synchronous>, transform_indices = @transform_1, window_bounds = array<i64: 576, 128>}, {pipeline_mode = #tpu.pipeline_mode<synchronous>, transform_indices = @transform_2, window_bounds = array<i64: 1, 128>}, {transform_indices = @transform_3, window_bounds = array<i64: 32, 128>}, {transform_indices = @transform_4, window_bounds = array<i64: 1, 8, 128>}]} {
    %c0 = arith.constant 0 : index
    %c0_0 = arith.constant 0 : index
    %0 = vector.load %arg1[%c0, %c0_0] : memref<32x576xbf16, #tpu.memory_space<vmem>>, vector<32x576xbf16>
    %c0_1 = arith.constant 0 : index
    %c0_2 = arith.constant 0 : index
    %1 = vector.load %arg2[%c0_1, %c0_2] : memref<576x128xbf16, #tpu.memory_space<vmem>>, vector<576x128xbf16>
    %cst = arith.constant dense<0.000000e+00> : vector<32x128xf32>
    %2 = tpu.matmul %0, %1, %cst {dimension_numbers = #tpu.dot_dimension_numbers<[1], [0], [0], [1], [0, 0, 1, 1], [], []>} : vector<32x576xbf16>, vector<576x128xbf16>, vector<32x128xf32> -> vector<32x128xf32>
    %c0_3 = arith.constant 0 : index
    %c0_4 = arith.constant 0 : index
    %3 = vector.load %arg3[%c0_3, %c0_4] : memref<1x128xf32, #tpu.memory_space<vmem>>, vector<1x128xf32>
    %4 = vector.broadcast %3 : vector<1x128xf32> to vector<32x128xf32>
    %5 = arith.addf %2, %4 : vector<32x128xf32>
    %c0_5 = arith.constant 0 : index
    %c0_6 = arith.constant 0 : index
    %6 = vector.load %arg4[%c0_5, %c0_6] : memref<32x128xf32, #tpu.memory_space<vmem>>, vector<32x128xf32>
    tpu.vector_store %arg4[%c0_5, %c0_6], %5 {strides = array<i32>} : memref<32x128xf32, #tpu.memory_space<vmem>>, vector<32x128xf32>,
    %7 = arith.mulf %5, %5 : vector<32x128xf32>
    %cst_7 = arith.constant dense<0.000000e+00> : vector<128xf32>
    %8 = vector.multi_reduction <add>, %5, %cst_7 [0] : vector<32x128xf32> to vector<128xf32>
    %9 = vector.shape_cast %8 : vector<128xf32> to vector<1x128xf32>
    %cst_8 = arith.constant dense<0.000000e+00> : vector<128xf32>
    %10 = vector.multi_reduction <add>, %7, %cst_8 [0] : vector<32x128xf32> to vector<128xf32>
    %11 = vector.shape_cast %10 : vector<128xf32> to vector<1x128xf32>
    %12 = tpu.iota {dimensions = array<i32: 0>} : vector<8x1xi32>
    %c0_i32 = arith.constant 0 : i32
    %13 = vector.broadcast %c0_i32 : i32 to vector<8x1xi32>
    %14 = arith.cmpi eq, %12, %13 : vector<8x1xi32>
    %c1_i32 = arith.constant 1 : i32
    %15 = vector.broadcast %c1_i32 : i32 to vector<8x1xi32>
    %16 = arith.cmpi eq, %12, %15 : vector<8x1xi32>
    %cst_9 = arith.constant 0.000000e+00 : f32
    %17 = vector.shape_cast %16 : vector<8x1xi1> to vector<8x1xi1>
    %18 = vector.broadcast %17 : vector<8x1xi1> to vector<8x128xi1>
    %19 = vector.shape_cast %11 : vector<1x128xf32> to vector<1x128xf32>
    %20 = vector.broadcast %19 : vector<1x128xf32> to vector<8x128xf32>
    %21 = vector.broadcast %cst_9 : f32 to vector<8x128xf32>
    %22 = arith.select %18, %20, %21 : vector<8x128xi1>, vector<8x128xf32>
    %23 = vector.shape_cast %14 : vector<8x1xi1> to vector<8x1xi1>
    %24 = vector.broadcast %23 : vector<8x1xi1> to vector<8x128xi1>
    %25 = vector.shape_cast %9 : vector<1x128xf32> to vector<1x128xf32>
    %26 = vector.broadcast %25 : vector<1x128xf32> to vector<8x128xf32>
    %27 = arith.select %24, %26, %22 : vector<8x128xi1>, vector<8x128xf32>
    %28 = vector.shape_cast %27 : vector<8x128xf32> to vector<1x8x128xf32>
    %c0_10 = arith.constant 0 : index
    %c0_11 = arith.constant 0 : index
    %c0_12 = arith.constant 0 : index
    %29 = vector.load %arg5[%c0_10, %c0_11, %c0_12] : memref<1x8x128xf32, #tpu.memory_space<vmem>>, vector<1x8x128xf32>
    tpu.vector_store %arg5[%c0_10, %c0_11, %c0_12], %28 {strides = array<i32>} : memref<1x8x128xf32, #tpu.memory_space<vmem>>, vector<1x8x128xf32>,
    return
  }
  func.func @transform_0(%arg0: i32) -> (i32, i32) {
    %c0_i32 = arith.constant 0 : i32
    %c0_i32_0 = arith.constant 0 : i32
    return %arg0, %c0_i32 : i32, i32
  }
  func.func @transform_1(%arg0: i32) -> (i32, i32) {
    %c0_i32 = arith.constant 0 : i32
    %c0_i32_0 = arith.constant 0 : i32
    %c0_i32_1 = arith.constant 0 : i32
    return %c0_i32, %c0_i32_0 : i32, i32
  }
  func.func @transform_2(%arg0: i32) -> (i32, i32) {
    %c0_i32 = arith.constant 0 : i32
    %c0_i32_0 = arith.constant 0 : i32
    %c0_i32_1 = arith.constant 0 : i32
    return %c0_i32, %c0_i32_0 : i32, i32
  }
  func.func @transform_3(%arg0: i32) -> (i32, i32) {
    %c0_i32 = arith.constant 0 : i32
    %c0_i32_0 = arith.constant 0 : i32
    return %arg0, %c0_i32 : i32, i32
  }
  func.func @transform_4(%arg0: i32) -> (i32, i32, i32) {
    %c0_i32 = arith.constant 0 : i32
    %c0_i32_0 = arith.constant 0 : i32
    %c0_i32_1 = arith.constant 0 : i32
    return %arg0, %c0_i32, %c0_i32_0 : i32, i32, i32
  }
}

module attributes {stable_mosaic.version = 11 : i64} {
  func.func @_bn_relu_kernel(%arg0: i32, %arg1: memref<32x128xf32, #tpu.memory_space<vmem>>, %arg2: memref<1x128xf32, #tpu.memory_space<vmem>>, %arg3: memref<1x128xf32, #tpu.memory_space<vmem>>, %arg4: memref<32x128xbf16, #tpu.memory_space<vmem>>) attributes {dimension_semantics = [#tpu.dimension_semantics<parallel>], iteration_bounds = array<i64: 1>, scalar_prefetch = 0 : i64, scratch_operands = 0 : i64, tpu.core_type = #tpu.core_type<tc>, window_params = [{transform_indices = @transform_0, window_bounds = array<i64: 32, 128>}, {pipeline_mode = #tpu.pipeline_mode<synchronous>, transform_indices = @transform_1, window_bounds = array<i64: 1, 128>}, {pipeline_mode = #tpu.pipeline_mode<synchronous>, transform_indices = @transform_2, window_bounds = array<i64: 1, 128>}, {transform_indices = @transform_3, window_bounds = array<i64: 32, 128>}]} {
    %c0 = arith.constant 0 : index
    %c0_0 = arith.constant 0 : index
    %0 = vector.load %arg1[%c0, %c0_0] : memref<32x128xf32, #tpu.memory_space<vmem>>, vector<32x128xf32>
    %c0_1 = arith.constant 0 : index
    %c0_2 = arith.constant 0 : index
    %1 = vector.load %arg2[%c0_1, %c0_2] : memref<1x128xf32, #tpu.memory_space<vmem>>, vector<1x128xf32>
    %2 = vector.broadcast %1 : vector<1x128xf32> to vector<32x128xf32>
    %3 = arith.mulf %0, %2 : vector<32x128xf32>
    %c0_3 = arith.constant 0 : index
    %c0_4 = arith.constant 0 : index
    %4 = vector.load %arg3[%c0_3, %c0_4] : memref<1x128xf32, #tpu.memory_space<vmem>>, vector<1x128xf32>
    %5 = vector.broadcast %4 : vector<1x128xf32> to vector<32x128xf32>
    %6 = arith.addf %3, %5 : vector<32x128xf32>
    %cst = arith.constant 0.000000e+00 : f32
    %7 = vector.broadcast %cst : f32 to vector<32x128xf32>
    %8 = arith.maximumf %6, %7 : vector<32x128xf32>
    %9 = arith.truncf %8 : vector<32x128xf32> to vector<32x128xbf16>
    %c0_5 = arith.constant 0 : index
    %c0_6 = arith.constant 0 : index
    %10 = vector.load %arg4[%c0_5, %c0_6] : memref<32x128xbf16, #tpu.memory_space<vmem>>, vector<32x128xbf16>
    tpu.vector_store %arg4[%c0_5, %c0_6], %9 {strides = array<i32>} : memref<32x128xbf16, #tpu.memory_space<vmem>>, vector<32x128xbf16>,
    return
  }
  func.func @transform_0(%arg0: i32) -> (i32, i32) {
    %c0_i32 = arith.constant 0 : i32
    %c0_i32_0 = arith.constant 0 : i32
    return %arg0, %c0_i32 : i32, i32
  }
  func.func @transform_1(%arg0: i32) -> (i32, i32) {
    %c0_i32 = arith.constant 0 : i32
    %c0_i32_0 = arith.constant 0 : i32
    %c0_i32_1 = arith.constant 0 : i32
    return %c0_i32, %c0_i32_0 : i32, i32
  }
  func.func @transform_2(%arg0: i32) -> (i32, i32) {
    %c0_i32 = arith.constant 0 : i32
    %c0_i32_0 = arith.constant 0 : i32
    %c0_i32_1 = arith.constant 0 : i32
    return %c0_i32, %c0_i32_0 : i32, i32
  }
  func.func @transform_3(%arg0: i32) -> (i32, i32) {
    %c0_i32 = arith.constant 0 : i32
    %c0_i32_0 = arith.constant 0 : i32
    return %arg0, %c0_i32 : i32, i32
  }
}

module attributes {stable_mosaic.version = 11 : i64} {
  func.func @kernel(%arg0: i32, %arg1: memref<128x288xbf16, #tpu.memory_space<vmem>>, %arg2: memref<288x128xbf16, #tpu.memory_space<vmem>>, %arg3: memref<1x128xf32, #tpu.memory_space<vmem>>, %arg4: memref<128x128xf32, #tpu.memory_space<vmem>>, %arg5: memref<1x8x128xf32, #tpu.memory_space<vmem>>) attributes {dimension_semantics = [#tpu.dimension_semantics<parallel>], iteration_bounds = array<i64: 1>, scalar_prefetch = 0 : i64, scratch_operands = 0 : i64, tpu.core_type = #tpu.core_type<tc>, window_params = [{transform_indices = @transform_0, window_bounds = array<i64: 128, 288>}, {pipeline_mode = #tpu.pipeline_mode<synchronous>, transform_indices = @transform_1, window_bounds = array<i64: 288, 128>}, {pipeline_mode = #tpu.pipeline_mode<synchronous>, transform_indices = @transform_2, window_bounds = array<i64: 1, 128>}, {transform_indices = @transform_3, window_bounds = array<i64: 128, 128>}, {transform_indices = @transform_4, window_bounds = array<i64: 1, 8, 128>}]} {
    %c0 = arith.constant 0 : index
    %c0_0 = arith.constant 0 : index
    %0 = vector.load %arg1[%c0, %c0_0] : memref<128x288xbf16, #tpu.memory_space<vmem>>, vector<128x288xbf16>
    %c0_1 = arith.constant 0 : index
    %c0_2 = arith.constant 0 : index
    %1 = vector.load %arg2[%c0_1, %c0_2] : memref<288x128xbf16, #tpu.memory_space<vmem>>, vector<288x128xbf16>
    %cst = arith.constant dense<0.000000e+00> : vector<128x128xf32>
    %2 = tpu.matmul %0, %1, %cst {dimension_numbers = #tpu.dot_dimension_numbers<[1], [0], [0], [1], [0, 0, 1, 1], [], []>} : vector<128x288xbf16>, vector<288x128xbf16>, vector<128x128xf32> -> vector<128x128xf32>
    %c0_3 = arith.constant 0 : index
    %c0_4 = arith.constant 0 : index
    %3 = vector.load %arg3[%c0_3, %c0_4] : memref<1x128xf32, #tpu.memory_space<vmem>>, vector<1x128xf32>
    %4 = vector.broadcast %3 : vector<1x128xf32> to vector<128x128xf32>
    %5 = arith.addf %2, %4 : vector<128x128xf32>
    %c0_5 = arith.constant 0 : index
    %c0_6 = arith.constant 0 : index
    %6 = vector.load %arg4[%c0_5, %c0_6] : memref<128x128xf32, #tpu.memory_space<vmem>>, vector<128x128xf32>
    tpu.vector_store %arg4[%c0_5, %c0_6], %5 {strides = array<i32>} : memref<128x128xf32, #tpu.memory_space<vmem>>, vector<128x128xf32>,
    %7 = arith.mulf %5, %5 : vector<128x128xf32>
    %cst_7 = arith.constant dense<0.000000e+00> : vector<128xf32>
    %8 = vector.multi_reduction <add>, %5, %cst_7 [0] : vector<128x128xf32> to vector<128xf32>
    %9 = vector.shape_cast %8 : vector<128xf32> to vector<1x128xf32>
    %cst_8 = arith.constant dense<0.000000e+00> : vector<128xf32>
    %10 = vector.multi_reduction <add>, %7, %cst_8 [0] : vector<128x128xf32> to vector<128xf32>
    %11 = vector.shape_cast %10 : vector<128xf32> to vector<1x128xf32>
    %12 = tpu.iota {dimensions = array<i32: 0>} : vector<8x1xi32>
    %c0_i32 = arith.constant 0 : i32
    %13 = vector.broadcast %c0_i32 : i32 to vector<8x1xi32>
    %14 = arith.cmpi eq, %12, %13 : vector<8x1xi32>
    %c1_i32 = arith.constant 1 : i32
    %15 = vector.broadcast %c1_i32 : i32 to vector<8x1xi32>
    %16 = arith.cmpi eq, %12, %15 : vector<8x1xi32>
    %cst_9 = arith.constant 0.000000e+00 : f32
    %17 = vector.shape_cast %16 : vector<8x1xi1> to vector<8x1xi1>
    %18 = vector.broadcast %17 : vector<8x1xi1> to vector<8x128xi1>
    %19 = vector.shape_cast %11 : vector<1x128xf32> to vector<1x128xf32>
    %20 = vector.broadcast %19 : vector<1x128xf32> to vector<8x128xf32>
    %21 = vector.broadcast %cst_9 : f32 to vector<8x128xf32>
    %22 = arith.select %18, %20, %21 : vector<8x128xi1>, vector<8x128xf32>
    %23 = vector.shape_cast %14 : vector<8x1xi1> to vector<8x1xi1>
    %24 = vector.broadcast %23 : vector<8x1xi1> to vector<8x128xi1>
    %25 = vector.shape_cast %9 : vector<1x128xf32> to vector<1x128xf32>
    %26 = vector.broadcast %25 : vector<1x128xf32> to vector<8x128xf32>
    %27 = arith.select %24, %26, %22 : vector<8x128xi1>, vector<8x128xf32>
    %28 = vector.shape_cast %27 : vector<8x128xf32> to vector<1x8x128xf32>
    %c0_10 = arith.constant 0 : index
    %c0_11 = arith.constant 0 : index
    %c0_12 = arith.constant 0 : index
    %29 = vector.load %arg5[%c0_10, %c0_11, %c0_12] : memref<1x8x128xf32, #tpu.memory_space<vmem>>, vector<1x8x128xf32>
    tpu.vector_store %arg5[%c0_10, %c0_11, %c0_12], %28 {strides = array<i32>} : memref<1x8x128xf32, #tpu.memory_space<vmem>>, vector<1x8x128xf32>,
    return
  }
  func.func @transform_0(%arg0: i32) -> (i32, i32) {
    %c0_i32 = arith.constant 0 : i32
    %c0_i32_0 = arith.constant 0 : i32
    return %arg0, %c0_i32 : i32, i32
  }
  func.func @transform_1(%arg0: i32) -> (i32, i32) {
    %c0_i32 = arith.constant 0 : i32
    %c0_i32_0 = arith.constant 0 : i32
    %c0_i32_1 = arith.constant 0 : i32
    return %c0_i32, %c0_i32_0 : i32, i32
  }
  func.func @transform_2(%arg0: i32) -> (i32, i32) {
    %c0_i32 = arith.constant 0 : i32
    %c0_i32_0 = arith.constant 0 : i32
    %c0_i32_1 = arith.constant 0 : i32
    return %c0_i32, %c0_i32_0 : i32, i32
  }
  func.func @transform_3(%arg0: i32) -> (i32, i32) {
    %c0_i32 = arith.constant 0 : i32
    %c0_i32_0 = arith.constant 0 : i32
    return %arg0, %c0_i32 : i32, i32
  }
  func.func @transform_4(%arg0: i32) -> (i32, i32, i32) {
    %c0_i32 = arith.constant 0 : i32
    %c0_i32_0 = arith.constant 0 : i32
    %c0_i32_1 = arith.constant 0 : i32
    return %arg0, %c0_i32, %c0_i32_0 : i32, i32, i32
  }
}

module attributes {stable_mosaic.version = 11 : i64} {
  func.func @_bn_relu_kernel(%arg0: i32, %arg1: memref<128x128xf32, #tpu.memory_space<vmem>>, %arg2: memref<1x128xf32, #tpu.memory_space<vmem>>, %arg3: memref<1x128xf32, #tpu.memory_space<vmem>>, %arg4: memref<128x128xbf16, #tpu.memory_space<vmem>>) attributes {dimension_semantics = [#tpu.dimension_semantics<parallel>], iteration_bounds = array<i64: 1>, scalar_prefetch = 0 : i64, scratch_operands = 0 : i64, tpu.core_type = #tpu.core_type<tc>, window_params = [{transform_indices = @transform_0, window_bounds = array<i64: 128, 128>}, {pipeline_mode = #tpu.pipeline_mode<synchronous>, transform_indices = @transform_1, window_bounds = array<i64: 1, 128>}, {pipeline_mode = #tpu.pipeline_mode<synchronous>, transform_indices = @transform_2, window_bounds = array<i64: 1, 128>}, {transform_indices = @transform_3, window_bounds = array<i64: 128, 128>}]} {
    %c0 = arith.constant 0 : index
    %c0_0 = arith.constant 0 : index
    %0 = vector.load %arg1[%c0, %c0_0] : memref<128x128xf32, #tpu.memory_space<vmem>>, vector<128x128xf32>
    %c0_1 = arith.constant 0 : index
    %c0_2 = arith.constant 0 : index
    %1 = vector.load %arg2[%c0_1, %c0_2] : memref<1x128xf32, #tpu.memory_space<vmem>>, vector<1x128xf32>
    %2 = vector.broadcast %1 : vector<1x128xf32> to vector<128x128xf32>
    %3 = arith.mulf %0, %2 : vector<128x128xf32>
    %c0_3 = arith.constant 0 : index
    %c0_4 = arith.constant 0 : index
    %4 = vector.load %arg3[%c0_3, %c0_4] : memref<1x128xf32, #tpu.memory_space<vmem>>, vector<1x128xf32>
    %5 = vector.broadcast %4 : vector<1x128xf32> to vector<128x128xf32>
    %6 = arith.addf %3, %5 : vector<128x128xf32>
    %cst = arith.constant 0.000000e+00 : f32
    %7 = vector.broadcast %cst : f32 to vector<128x128xf32>
    %8 = arith.maximumf %6, %7 : vector<128x128xf32>
    %9 = arith.truncf %8 : vector<128x128xf32> to vector<128x128xbf16>
    %c0_5 = arith.constant 0 : index
    %c0_6 = arith.constant 0 : index
    %10 = vector.load %arg4[%c0_5, %c0_6] : memref<128x128xbf16, #tpu.memory_space<vmem>>, vector<128x128xbf16>
    tpu.vector_store %arg4[%c0_5, %c0_6], %9 {strides = array<i32>} : memref<128x128xbf16, #tpu.memory_space<vmem>>, vector<128x128xbf16>,
    return
  }
  func.func @transform_0(%arg0: i32) -> (i32, i32) {
    %c0_i32 = arith.constant 0 : i32
    %c0_i32_0 = arith.constant 0 : i32
    return %arg0, %c0_i32 : i32, i32
  }
  func.func @transform_1(%arg0: i32) -> (i32, i32) {
    %c0_i32 = arith.constant 0 : i32
    %c0_i32_0 = arith.constant 0 : i32
    %c0_i32_1 = arith.constant 0 : i32
    return %c0_i32, %c0_i32_0 : i32, i32
  }
  func.func @transform_2(%arg0: i32) -> (i32, i32) {
    %c0_i32 = arith.constant 0 : i32
    %c0_i32_0 = arith.constant 0 : i32
    %c0_i32_1 = arith.constant 0 : i32
    return %c0_i32, %c0_i32_0 : i32, i32
  }
  func.func @transform_3(%arg0: i32) -> (i32, i32) {
    %c0_i32 = arith.constant 0 : i32
    %c0_i32_0 = arith.constant 0 : i32
    return %arg0, %c0_i32 : i32, i32
  }
}

module attributes {stable_mosaic.version = 11 : i64} {
  func.func @_bn_relu_kernel(%arg0: i32, %arg1: memref<512x128xf32, #tpu.memory_space<vmem>>, %arg2: memref<1x128xf32, #tpu.memory_space<vmem>>, %arg3: memref<1x128xf32, #tpu.memory_space<vmem>>, %arg4: memref<512x128xbf16, #tpu.memory_space<vmem>>) attributes {dimension_semantics = [#tpu.dimension_semantics<parallel>], iteration_bounds = array<i64: 1>, scalar_prefetch = 0 : i64, scratch_operands = 0 : i64, tpu.core_type = #tpu.core_type<tc>, window_params = [{transform_indices = @transform_0, window_bounds = array<i64: 512, 128>}, {pipeline_mode = #tpu.pipeline_mode<synchronous>, transform_indices = @transform_1, window_bounds = array<i64: 1, 128>}, {pipeline_mode = #tpu.pipeline_mode<synchronous>, transform_indices = @transform_2, window_bounds = array<i64: 1, 128>}, {transform_indices = @transform_3, window_bounds = array<i64: 512, 128>}]} {
    %c0 = arith.constant 0 : index
    %c0_0 = arith.constant 0 : index
    %0 = vector.load %arg1[%c0, %c0_0] : memref<512x128xf32, #tpu.memory_space<vmem>>, vector<512x128xf32>
    %c0_1 = arith.constant 0 : index
    %c0_2 = arith.constant 0 : index
    %1 = vector.load %arg2[%c0_1, %c0_2] : memref<1x128xf32, #tpu.memory_space<vmem>>, vector<1x128xf32>
    %2 = vector.broadcast %1 : vector<1x128xf32> to vector<512x128xf32>
    %3 = arith.mulf %0, %2 : vector<512x128xf32>
    %c0_3 = arith.constant 0 : index
    %c0_4 = arith.constant 0 : index
    %4 = vector.load %arg3[%c0_3, %c0_4] : memref<1x128xf32, #tpu.memory_space<vmem>>, vector<1x128xf32>
    %5 = vector.broadcast %4 : vector<1x128xf32> to vector<512x128xf32>
    %6 = arith.addf %3, %5 : vector<512x128xf32>
    %cst = arith.constant 0.000000e+00 : f32
    %7 = vector.broadcast %cst : f32 to vector<512x128xf32>
    %8 = arith.maximumf %6, %7 : vector<512x128xf32>
    %9 = arith.truncf %8 : vector<512x128xf32> to vector<512x128xbf16>
    %c0_5 = arith.constant 0 : index
    %c0_6 = arith.constant 0 : index
    %10 = vector.load %arg4[%c0_5, %c0_6] : memref<512x128xbf16, #tpu.memory_space<vmem>>, vector<512x128xbf16>
    tpu.vector_store %arg4[%c0_5, %c0_6], %9 {strides = array<i32>} : memref<512x128xbf16, #tpu.memory_space<vmem>>, vector<512x128xbf16>,
    return
  }
  func.func @transform_0(%arg0: i32) -> (i32, i32) {
    %c0_i32 = arith.constant 0 : i32
    %c0_i32_0 = arith.constant 0 : i32
    return %arg0, %c0_i32 : i32, i32
  }
  func.func @transform_1(%arg0: i32) -> (i32, i32) {
    %c0_i32 = arith.constant 0 : i32
    %c0_i32_0 = arith.constant 0 : i32
    %c0_i32_1 = arith.constant 0 : i32
    return %c0_i32, %c0_i32_0 : i32, i32
  }
  func.func @transform_2(%arg0: i32) -> (i32, i32) {
    %c0_i32 = arith.constant 0 : i32
    %c0_i32_0 = arith.constant 0 : i32
    %c0_i32_1 = arith.constant 0 : i32
    return %c0_i32, %c0_i32_0 : i32, i32
  }
  func.func @transform_3(%arg0: i32) -> (i32, i32) {
    %c0_i32 = arith.constant 0 : i32
    %c0_i32_0 = arith.constant 0 : i32
    return %arg0, %c0_i32 : i32, i32
  }
}

module attributes {stable_mosaic.version = 11 : i64} {
  func.func @kernel(%arg0: i32, %arg1: memref<512x144xbf16, #tpu.memory_space<vmem>>, %arg2: memref<144x128xbf16, #tpu.memory_space<vmem>>, %arg3: memref<1x128xf32, #tpu.memory_space<vmem>>, %arg4: memref<512x128xf32, #tpu.memory_space<vmem>>, %arg5: memref<1x8x128xf32, #tpu.memory_space<vmem>>) attributes {dimension_semantics = [#tpu.dimension_semantics<parallel>], iteration_bounds = array<i64: 1>, scalar_prefetch = 0 : i64, scratch_operands = 0 : i64, tpu.core_type = #tpu.core_type<tc>, window_params = [{transform_indices = @transform_0, window_bounds = array<i64: 512, 144>}, {pipeline_mode = #tpu.pipeline_mode<synchronous>, transform_indices = @transform_1, window_bounds = array<i64: 144, 128>}, {pipeline_mode = #tpu.pipeline_mode<synchronous>, transform_indices = @transform_2, window_bounds = array<i64: 1, 128>}, {transform_indices = @transform_3, window_bounds = array<i64: 512, 128>}, {transform_indices = @transform_4, window_bounds = array<i64: 1, 8, 128>}]} {
    %c0 = arith.constant 0 : index
    %c0_0 = arith.constant 0 : index
    %0 = vector.load %arg1[%c0, %c0_0] : memref<512x144xbf16, #tpu.memory_space<vmem>>, vector<512x144xbf16>
    %c0_1 = arith.constant 0 : index
    %c0_2 = arith.constant 0 : index
    %1 = vector.load %arg2[%c0_1, %c0_2] : memref<144x128xbf16, #tpu.memory_space<vmem>>, vector<144x128xbf16>
    %cst = arith.constant dense<0.000000e+00> : vector<512x128xf32>
    %2 = tpu.matmul %0, %1, %cst {dimension_numbers = #tpu.dot_dimension_numbers<[1], [0], [0], [1], [0, 0, 1, 1], [], []>} : vector<512x144xbf16>, vector<144x128xbf16>, vector<512x128xf32> -> vector<512x128xf32>
    %c0_3 = arith.constant 0 : index
    %c0_4 = arith.constant 0 : index
    %3 = vector.load %arg3[%c0_3, %c0_4] : memref<1x128xf32, #tpu.memory_space<vmem>>, vector<1x128xf32>
    %4 = vector.broadcast %3 : vector<1x128xf32> to vector<512x128xf32>
    %5 = arith.addf %2, %4 : vector<512x128xf32>
    %c0_5 = arith.constant 0 : index
    %c0_6 = arith.constant 0 : index
    %6 = vector.load %arg4[%c0_5, %c0_6] : memref<512x128xf32, #tpu.memory_space<vmem>>, vector<512x128xf32>
    tpu.vector_store %arg4[%c0_5, %c0_6], %5 {strides = array<i32>} : memref<512x128xf32, #tpu.memory_space<vmem>>, vector<512x128xf32>,
    %7 = arith.mulf %5, %5 : vector<512x128xf32>
    %cst_7 = arith.constant dense<0.000000e+00> : vector<128xf32>
    %8 = vector.multi_reduction <add>, %5, %cst_7 [0] : vector<512x128xf32> to vector<128xf32>
    %9 = vector.shape_cast %8 : vector<128xf32> to vector<1x128xf32>
    %cst_8 = arith.constant dense<0.000000e+00> : vector<128xf32>
    %10 = vector.multi_reduction <add>, %7, %cst_8 [0] : vector<512x128xf32> to vector<128xf32>
    %11 = vector.shape_cast %10 : vector<128xf32> to vector<1x128xf32>
    %12 = tpu.iota {dimensions = array<i32: 0>} : vector<8x1xi32>
    %c0_i32 = arith.constant 0 : i32
    %13 = vector.broadcast %c0_i32 : i32 to vector<8x1xi32>
    %14 = arith.cmpi eq, %12, %13 : vector<8x1xi32>
    %c1_i32 = arith.constant 1 : i32
    %15 = vector.broadcast %c1_i32 : i32 to vector<8x1xi32>
    %16 = arith.cmpi eq, %12, %15 : vector<8x1xi32>
    %cst_9 = arith.constant 0.000000e+00 : f32
    %17 = vector.shape_cast %16 : vector<8x1xi1> to vector<8x1xi1>
    %18 = vector.broadcast %17 : vector<8x1xi1> to vector<8x128xi1>
    %19 = vector.shape_cast %11 : vector<1x128xf32> to vector<1x128xf32>
    %20 = vector.broadcast %19 : vector<1x128xf32> to vector<8x128xf32>
    %21 = vector.broadcast %cst_9 : f32 to vector<8x128xf32>
    %22 = arith.select %18, %20, %21 : vector<8x128xi1>, vector<8x128xf32>
    %23 = vector.shape_cast %14 : vector<8x1xi1> to vector<8x1xi1>
    %24 = vector.broadcast %23 : vector<8x1xi1> to vector<8x128xi1>
    %25 = vector.shape_cast %9 : vector<1x128xf32> to vector<1x128xf32>
    %26 = vector.broadcast %25 : vector<1x128xf32> to vector<8x128xf32>
    %27 = arith.select %24, %26, %22 : vector<8x128xi1>, vector<8x128xf32>
    %28 = vector.shape_cast %27 : vector<8x128xf32> to vector<1x8x128xf32>
    %c0_10 = arith.constant 0 : index
    %c0_11 = arith.constant 0 : index
    %c0_12 = arith.constant 0 : index
    %29 = vector.load %arg5[%c0_10, %c0_11, %c0_12] : memref<1x8x128xf32, #tpu.memory_space<vmem>>, vector<1x8x128xf32>
    tpu.vector_store %arg5[%c0_10, %c0_11, %c0_12], %28 {strides = array<i32>} : memref<1x8x128xf32, #tpu.memory_space<vmem>>, vector<1x8x128xf32>,
    return
  }
  func.func @transform_0(%arg0: i32) -> (i32, i32) {
    %c0_i32 = arith.constant 0 : i32
    %c0_i32_0 = arith.constant 0 : i32
    return %arg0, %c0_i32 : i32, i32
  }
  func.func @transform_1(%arg0: i32) -> (i32, i32) {
    %c0_i32 = arith.constant 0 : i32
    %c0_i32_0 = arith.constant 0 : i32
    %c0_i32_1 = arith.constant 0 : i32
    return %c0_i32, %c0_i32_0 : i32, i32
  }
  func.func @transform_2(%arg0: i32) -> (i32, i32) {
    %c0_i32 = arith.constant 0 : i32
    %c0_i32_0 = arith.constant 0 : i32
    %c0_i32_1 = arith.constant 0 : i32
    return %c0_i32, %c0_i32_0 : i32, i32
  }
  func.func @transform_3(%arg0: i32) -> (i32, i32) {
    %c0_i32 = arith.constant 0 : i32
    %c0_i32_0 = arith.constant 0 : i32
    return %arg0, %c0_i32 : i32, i32
  }
  func.func @transform_4(%arg0: i32) -> (i32, i32, i32) {
    %c0_i32 = arith.constant 0 : i32
    %c0_i32_0 = arith.constant 0 : i32
    %c0_i32_1 = arith.constant 0 : i32
    return %arg0, %c0_i32, %c0_i32_0 : i32, i32, i32
  }
}

module attributes {stable_mosaic.version = 11 : i64} {
  func.func @kernel(%arg0: i32, %arg1: memref<512x72xbf16, #tpu.memory_space<vmem>>, %arg2: memref<72x128xbf16, #tpu.memory_space<vmem>>, %arg3: memref<1x128xf32, #tpu.memory_space<vmem>>, %arg4: memref<512x128xf32, #tpu.memory_space<vmem>>) attributes {dimension_semantics = [#tpu.dimension_semantics<parallel>], iteration_bounds = array<i64: 4>, scalar_prefetch = 0 : i64, scratch_operands = 0 : i64, tpu.core_type = #tpu.core_type<tc>, window_params = [{transform_indices = @transform_0, window_bounds = array<i64: 512, 72>}, {pipeline_mode = #tpu.pipeline_mode<synchronous>, transform_indices = @transform_1, window_bounds = array<i64: 72, 128>}, {pipeline_mode = #tpu.pipeline_mode<synchronous>, transform_indices = @transform_2, window_bounds = array<i64: 1, 128>}, {transform_indices = @transform_3, window_bounds = array<i64: 512, 128>}]} {
    %c0 = arith.constant 0 : index
    %c0_0 = arith.constant 0 : index
    %0 = vector.load %arg1[%c0, %c0_0] : memref<512x72xbf16, #tpu.memory_space<vmem>>, vector<512x72xbf16>
    %c0_1 = arith.constant 0 : index
    %c0_2 = arith.constant 0 : index
    %1 = vector.load %arg2[%c0_1, %c0_2] : memref<72x128xbf16, #tpu.memory_space<vmem>>, vector<72x128xbf16>
    %cst = arith.constant dense<0.000000e+00> : vector<512x128xf32>
    %2 = tpu.matmul %0, %1, %cst {dimension_numbers = #tpu.dot_dimension_numbers<[1], [0], [0], [1], [0, 0, 1, 1], [], []>} : vector<512x72xbf16>, vector<72x128xbf16>, vector<512x128xf32> -> vector<512x128xf32>
    %c0_3 = arith.constant 0 : index
    %c0_4 = arith.constant 0 : index
    %3 = vector.load %arg3[%c0_3, %c0_4] : memref<1x128xf32, #tpu.memory_space<vmem>>, vector<1x128xf32>
    %4 = vector.broadcast %3 : vector<1x128xf32> to vector<512x128xf32>
    %5 = arith.addf %2, %4 : vector<512x128xf32>
    %6 = math.tanh %5 : vector<512x128xf32>
    %c0_5 = arith.constant 0 : index
    %c0_6 = arith.constant 0 : index
    %7 = vector.load %arg4[%c0_5, %c0_6] : memref<512x128xf32, #tpu.memory_space<vmem>>, vector<512x128xf32>
    tpu.vector_store %arg4[%c0_5, %c0_6], %6 {strides = array<i32>} : memref<512x128xf32, #tpu.memory_space<vmem>>, vector<512x128xf32>,
    return
  }
  func.func @transform_0(%arg0: i32) -> (i32, i32) {
    %c0_i32 = arith.constant 0 : i32
    %c0_i32_0 = arith.constant 0 : i32
    return %arg0, %c0_i32 : i32, i32
  }
  func.func @transform_1(%arg0: i32) -> (i32, i32) {
    %c0_i32 = arith.constant 0 : i32
    %c0_i32_0 = arith.constant 0 : i32
    %c0_i32_1 = arith.constant 0 : i32
    return %c0_i32, %c0_i32_0 : i32, i32
  }
  func.func @transform_2(%arg0: i32) -> (i32, i32) {
    %c0_i32 = arith.constant 0 : i32
    %c0_i32_0 = arith.constant 0 : i32
    %c0_i32_1 = arith.constant 0 : i32
    return %c0_i32, %c0_i32_0 : i32, i32
  }
  func.func @transform_3(%arg0: i32) -> (i32, i32) {
    %c0_i32 = arith.constant 0 : i32
    %c0_i32_0 = arith.constant 0 : i32
    return %arg0, %c0_i32 : i32, i32
  }
}

</mosaic_0001>

<llo_original>
// kernel: tile.68
$region0: #{tile.68}
  #allocation0 [shape = 's32[1]{0}', space=sflag, size = 0x4, scoped, tag = 'scoped memory for tile.68']
  %s0 = inlined_call_operand.vmem [shape: f32[64], index: 0, kind: input, shape index: {}]
  %s1 = inlined_call_operand.vmem [shape: f32[16,64], index: 1, kind: output, shape index: {}]
  // Predicated region
  $region2: #{tile.68} parent=0 // pred_check
    _
  $region3: #{tile.68} parent=0 // pred_check_branch
    %3 = sbr.rel (0) target = $region5
  $region4: #{tile.68} parent=0 // pred_region
    _
  $region5: #{tile.68} parent=0 // pred_fallthru
    _
  %v4 = vld [vmem:[%s0] ss:$0 sm:$0xff]
  %5 = vst [vmem:[%s1] sm:$0xff] %v4
  %s6 = scalar_lea.vmem %s1, 8
  %7 = vst [vmem:[%s6] sm:$0xff] %v4

// kernel: tile.69
$region0: #{tile.69}
  %s0 = inlined_call_operand.vmem [shape: f32[16,64], index: 0, kind: input, shape index: {}]
  %s1 = inlined_call_operand.vmem [shape: f32[1,1024], index: 1, kind: output, shape index: {}]
  $region1: #{tile.69} parent=0
    #allocation0 [shape = 'u8[32768]{0}', space=vmem, size = 0x8000, scoped, tag = 'scoped mem for output reshape']
    %v2 = vld [vmem:[%s0] ss:$2 sm:$0xff]
    %vm3 = vcmask 523264
    %4 = vst.msk [vmem:[#allocation0] ss:$8 sm:$0xf] %vm3, %v2
    %5 = vst.msk [vmem:[#allocation0] ss:$8 sm:$0xf0] %vm3, %v2
    %s6 = scalar_lea.vmem %s0, 1
    %v7 = vld [vmem:[%s6] ss:$2 sm:$0xff]
    %8 = vrot.lane.b32.xlu0 %v7, 64
    %v9 = vpop.permute.xlu0 %8
    %vm10 = vcmask 1048064
    %11 = vst.msk [vmem:[#allocation0] ss:$8 sm:$0xf] %vm10, %v9
    %12 = vst.msk [vmem:[#allocation0] ss:$8 sm:$0xf0] %vm10, %v9
    %s14 = sshllo.u32 0, 1
    %v16 = vld [vmem:[#allocation0] sm:%s14]
    %s17 = sshllo.u32 0, 1
    %18 = vst [vmem:[%s1] sm:%s17] %v16
    %s19 = scalar_lea.vmem [#allocation0], 8
    %v20 = vld [vmem:[%s19] sm:%s14]
    %s21 = sshllo.u32 0, 1
    %s22 = scalar_lea.vmem %s1, 1
    %23 = vst [vmem:[%s22] sm:%s21] %v20
    %s24 = scalar_lea.vmem [#allocation0], 16
    %v25 = vld [vmem:[%s24] sm:%s14]
    %s26 = sshllo.u32 0, 1
    %s27 = smul.addr 1, 2
    %s28 = scalar_lea.vmem %s1, %s27
    %29 = vst [vmem:[%s28] sm:%s26] %v25
    %s30 = scalar_lea.vmem [#allocation0], 24
    %v31 = vld [vmem:[%s30] sm:%s14]
    %s32 = sshllo.u32 0, 1
    %s33 = smul.addr 1, 3
    %s34 = scalar_lea.vmem %s1, %s33
    %35 = vst [vmem:[%s34] sm:%s32] %v31
    %s36 = scalar_lea.vmem [#allocation0], 32
    %v37 = vld [vmem:[%s36] sm:%s14]
    %s38 = sshllo.u32 0, 1
    %s39 = smul.addr 1, 4
    %s40 = scalar_lea.vmem %s1, %s39
    %41 = vst [vmem:[%s40] sm:%s38] %v37
    %s42 = scalar_lea.vmem [#allocation0], 40
    %v43 = vld [vmem:[%s42] sm:%s14]
    %s44 = sshllo.u32 0, 1
    %s45 = smul.addr 1, 5
    %s46 = scalar_lea.vmem %s1, %s45
    %47 = vst [vmem:[%s46] sm:%s44] %v43
    %s48 = scalar_lea.vmem [#allocation0], 48
    %v49 = vld [vmem:[%s48] sm:%s14]
    %s50 = sshllo.u32 0, 1
    %s51 = smul.addr 1, 6
    %s52 = scalar_lea.vmem %s1, %s51
    %53 = vst [vmem:[%s52] sm:%s50] %v49
    %s54 = scalar_lea.vmem [#allocation0], 56
    %v55 = vld [vmem:[%s54] sm:%s14]
    %s56 = sshllo.u32 0, 1
    %s57 = smul.addr 1, 7
    %s58 = scalar_lea.vmem %s1, %s57
    %59 = vst [vmem:[%s58] sm:%s56] %v55

// kernel: tile.83
$region0: #{tile.83}
  #allocation0 [shape = 's32[1]{0}', space=sflag, size = 0x4, scoped, tag = 'scoped memory for tile.83']
  %s0 = inlined_call_operand.vmem [shape: f32[32], index: 0, kind: input, shape index: {}]
  %s1 = inlined_call_operand.vmem [shape: f32[4,32], index: 1, kind: output, shape index: {}]
  // Predicated region
  $region2: #{tile.83} parent=0 // pred_check
    _
  $region3: #{tile.83} parent=0 // pred_check_branch
    %3 = sbr.rel (0) target = $region5
  $region4: #{tile.83} parent=0 // pred_region
    _
  $region5: #{tile.83} parent=0 // pred_fallthru
    _
  %v4 = vld [vmem:[%s0] ss:$0 sm:$0xff]
  %5 = vst [vmem:[%s1] sm:$0xf] %v4

// kernel: tile.84
$region0: #{tile.84}
  %s0 = inlined_call_operand.vmem [shape: f32[4,32], index: 0, kind: input, shape index: {}]
  %s1 = inlined_call_operand.vmem [shape: f32[1,128], index: 1, kind: output, shape index: {}]
  $region1: #{tile.84} parent=0
    #allocation0 [shape = 'u8[4096]{0}', space=vmem, size = 0x1000, scoped, tag = 'scoped mem for output reshape']
    #allocation1 [shape = 'u8[4096]{0}', space=vmem, size = 0x1000, scoped, tag = 'scoped mem for input reshape']
    %s3 = sshllo.u32 0, 4
    %v4 = vld [vmem:[%s0] sm:%s3]
    %5 = vst [vmem:[#allocation1] sm:%s3] %v4
    %v6 = vld [vmem:[#allocation1] sm:$0x1]
    %vm7 = vcmask 261120
    %8 = vst.msk [vmem:[#allocation0] sm:$0x1] %vm7, %v6
    %s9 = scalar_lea.vmem [#allocation1], 3
    %v10 = vld [vmem:[%s9] sm:$0x1]
    %11 = vrot.lane.b32.xlu0 %v10, 96
    %v12 = vpop.permute.xlu0 %11
    %vm13 = vcmask 1048320
    %14 = vst.msk [vmem:[#allocation0] sm:$0x1] %vm13, %v12
    %s15 = scalar_lea.vmem [#allocation1], 2
    %v16 = vld [vmem:[%s15] sm:$0x1]
    %17 = vrot.lane.b32.xlu0 %v16, 64
    %v18 = vpop.permute.xlu0 %17
    %vm19 = vcmask 785920
    %20 = vst.msk [vmem:[#allocation0] sm:$0x1] %vm19, %v18
    %s21 = scalar_lea.vmem [#allocation1], 1
    %v22 = vld [vmem:[%s21] sm:$0x1]
    %23 = vrot.lane.b32.xlu0 %v22, 32
    %v24 = vpop.permute.xlu0 %23
    %vm25 = vcmask 523520
    %26 = vst.msk [vmem:[#allocation0] sm:$0x1] %vm25, %v24
    %s28 = sshllo.u32 0, 1
    %v30 = vld [vmem:[#allocation0] sm:%s28]
    %s31 = sshllo.u32 0, 1
    %32 = vst [vmem:[%s1] sm:%s31] %v30

// kernel: generator_forward.10
$region0: #{generator_forward.10}
  #allocation0 [shape = 'u32[]', space=smem, size = 0x4, offset = 0x4, fixed_abs, tag = 'smem constant byte address 0x4 - core index']
  #allocation1 [shape = 'u32[144,128]{1,0:T(1,128)}', space=vmem, size = 0x12000, scoped, tag = 'internal scratch']
  %s0 = inlined_call_operand.vmem [shape: f32[8,1024], index: 0, kind: input, shape index: {}]
  %s1 = inlined_call_operand.vmem [shape: f32[1,1024], index: 1, kind: input, shape index: {}]
  %s2 = inlined_call_operand.vmem [shape: f32[1,1024], index: 2, kind: input, shape index: {}]
  %s3 = inlined_call_operand.vmem [shape: bf16[8,1024], index: 3, kind: output, shape index: {}]
  %s4 = sld [smem:[#allocation0]]
  $region22: #{generator_forward.10} parent=0
    _
  %s6 = ssub.s32 1, %s4
  %s7 = scalar_select 0, %s6, %s4
  // Predicated region
  $region2: #{generator_forward.10} parent=0 // pred_check
    _
  $region3: #{generator_forward.10} parent=0 // pred_check_branch
    %9 = sbr.rel (0) target = $region5
  $region4: #{generator_forward.10} parent=0 // pred_region
    _
  $region5: #{generator_forward.10} parent=0 // pred_fallthru
    _
  // Predicated region
  $region6: #{generator_forward.10} parent=0 // pred_check
    _
  $region7: #{generator_forward.10} parent=0 // pred_check_branch
    %11 = sbr.rel (0) target = $region9
  $region8: #{generator_forward.10} parent=0 // pred_region
    _
  $region9: #{generator_forward.10} parent=0 // pred_fallthru
    _
  // Predicated region
  $region10: #{generator_forward.10} parent=0 // pred_check
    _
  $region11: #{generator_forward.10} parent=0 // pred_check_branch
    %13 = sbr.rel (0) target = $region13
  $region12: #{generator_forward.10} parent=0 // pred_region
    _
  $region13: #{generator_forward.10} parent=0 // pred_fallthru
    _
  %v14 = vld [vmem:[%s0] sm:$0xff]
  %v15 = vld [vmem:[%s0 + $0x8] sm:$0xff]
  %v16 = vld [vmem:[%s0 + $0x10] sm:$0xff]
  %v17 = vld [vmem:[%s0 + $0x18] sm:$0xff]
  %v18 = vld [vmem:[%s0 + $0x20] sm:$0xff]
  %v19 = vld [vmem:[%s0 + $0x28] sm:$0xff]
  %v20 = vld [vmem:[%s0 + $0x30] sm:$0xff]
  %v21 = vld [vmem:[%s0 + $0x38] sm:$0xff]
  %v22 = vld [vmem:[%s1] sm:$0xff]
  %v24 = vlaneseq
  %v25 = vshrl.u32 %v24, 7
  %v26 = vsub.s32 0, %v25
  %v27 = vrot.slane %v22, %v26
  %v28 = vlaneseq
  %v29 = vshrl.u32 %v28, 7
  %v30 = vsub.s32 1, %v29
  %v31 = vrot.slane %v22, %v30
  %v32 = vlaneseq
  %v33 = vshrl.u32 %v32, 7
  %v34 = vsub.s32 2, %v33
  %v35 = vrot.slane %v22, %v34
  %v36 = vlaneseq
  %v37 = vshrl.u32 %v36, 7
  %v38 = vsub.s32 3, %v37
  %v39 = vrot.slane %v22, %v38
  %v40 = vlaneseq
  %v41 = vshrl.u32 %v40, 7
  %v42 = vsub.s32 4, %v41
  %v43 = vrot.slane %v22, %v42
  %v44 = vlaneseq
  %v45 = vshrl.u32 %v44, 7
  %v46 = vsub.s32 5, %v45
  %v47 = vrot.slane %v22, %v46
  %v48 = vlaneseq
  %v49 = vshrl.u32 %v48, 7
  %v50 = vsub.s32 6, %v49
  %v51 = vrot.slane %v22, %v50
  %v52 = vlaneseq
  %v53 = vshrl.u32 %v52, 7
  %v54 = vsub.s32 7, %v53
  %v55 = vrot.slane %v22, %v54
  %v64 = vmul.f32 %v14, %v27
  %v65 = vmul.f32 %v15, %v31
  %v66 = vmul.f32 %v16, %v35
  %v67 = vmul.f32 %v17, %v39
  %v68 = vmul.f32 %v18, %v43
  %v69 = vmul.f32 %v19, %v47
  %v70 = vmul.f32 %v20, %v51
  %v71 = vmul.f32 %v21, %v55
  %v72 = vld [vmem:[%s2] sm:$0xff]
  %v74 = vlaneseq
  %v75 = vshrl.u32 %v74, 7
  %v76 = vsub.s32 0, %v75
  %v77 = vrot.slane %v72, %v76
  %v78 = vlaneseq
  %v79 = vshrl.u32 %v78, 7
  %v80 = vsub.s32 1, %v79
  %v81 = vrot.slane %v72, %v80
  %v82 = vlaneseq
  %v83 = vshrl.u32 %v82, 7
  %v84 = vsub.s32 2, %v83
  %v85 = vrot.slane %v72, %v84
  %v86 = vlaneseq
  %v87 = vshrl.u32 %v86, 7
  %v88 = vsub.s32 3, %v87
  %v89 = vrot.slane %v72, %v88
  %v90 = vlaneseq
  %v91 = vshrl.u32 %v90, 7
  %v92 = vsub.s32 4, %v91
  %v93 = vrot.slane %v72, %v92
  %v94 = vlaneseq
  %v95 = vshrl.u32 %v94, 7
  %v96 = vsub.s32 5, %v95
  %v97 = vrot.slane %v72, %v96
  %v98 = vlaneseq
  %v99 = vshrl.u32 %v98, 7
  %v100 = vsub.s32 6, %v99
  %v101 = vrot.slane %v72, %v100
  %v102 = vlaneseq
  %v103 = vshrl.u32 %v102, 7
  %v104 = vsub.s32 7, %v103
  %v105 = vrot.slane %v72, %v104
  %v114 = vadd.f32 %v64, %v77
  %v115 = vadd.f32 %v65, %v81
  %v116 = vadd.f32 %v66, %v85
  %v117 = vadd.f32 %v67, %v89
  %v118 = vadd.f32 %v68, %v93
  %v119 = vadd.f32 %v69, %v97
  %v120 = vadd.f32 %v70, %v101
  %v121 = vadd.f32 %v71, %v105
  %v122 = vmax.f32 %v114, 0.0
  %v123 = vmax.f32 %v115, 0.0
  %v124 = vmax.f32 %v116, 0.0
  %v125 = vmax.f32 %v117, 0.0
  %v126 = vmax.f32 %v118, 0.0
  %v127 = vmax.f32 %v119, 0.0
  %v128 = vmax.f32 %v120, 0.0
  %v129 = vmax.f32 %v121, 0.0
  %v130 = vpack.c.bf16 %v122, %v122
  %v131 = vpack.c.bf16 %v123, %v123
  %v132 = vpack.c.bf16 %v124, %v124
  %v133 = vpack.c.bf16 %v125, %v125
  %v134 = vpack.c.bf16 %v126, %v126
  %v135 = vpack.c.bf16 %v127, %v127
  %v136 = vpack.c.bf16 %v128, %v128
  %v137 = vpack.c.bf16 %v129, %v129
  %v146 = vunpack.c.l.b16 %v130
  %v147 = vunpack.c.l.b16 %v131
  %v148 = vunpack.c.l.b16 %v132
  %v149 = vunpack.c.l.b16 %v133
  %v150 = vunpack.c.l.b16 %v134
  %v151 = vunpack.c.l.b16 %v135
  %v152 = vunpack.c.l.b16 %v136
  %v153 = vunpack.c.l.b16 %v137
  %v154 = vpack.c.b16 %v147, %v146
  %v155 = vpack.c.b16 %v149, %v148
  %v156 = vpack.c.b16 %v151, %v150
  %v157 = vpack.c.b16 %v153, %v152
  %162 = vst [vmem:[%s3] sm:$0xff] %v154
  %163 = vst [vmem:[%s3 + $0x8] sm:$0xff] %v155
  %164 = vst [vmem:[%s3 + $0x10] sm:$0xff] %v156
  %165 = vst [vmem:[%s3 + $0x18] sm:$0xff] %v157
  // Predicated region
  $region14: #{generator_forward.10} parent=0 // pred_check
    _
  $region15: #{generator_forward.10} parent=0 // pred_check_branch
    %167 = sbr.rel (0) target = $region17
  $region16: #{generator_forward.10} parent=0 // pred_region
    _
  $region17: #{generator_forward.10} parent=0 // pred_fallthru
    _
  // Predicated region
  $region18: #{generator_forward.10} parent=0 // pred_check
    _
  $region19: #{generator_forward.10} parent=0 // pred_check_branch
    %169 = sbr.rel (0) target = $region21
  $region20: #{generator_forward.10} parent=0 // pred_region
    _
  $region21: #{generator_forward.10} parent=0 // pred_fallthru
    _

// kernel: generator_forward.9
$region0: #{generator_forward.9}
  #allocation0 [shape = 'u32[]', space=smem, size = 0x4, offset = 0x4, fixed_abs, tag = 'smem constant byte address 0x4 - core index']
  #allocation1 [shape = 'u32[144,128]{1,0:T(1,128)}', space=vmem, size = 0x12000, scoped, tag = 'internal scratch']
  %s0 = inlined_call_operand.vmem [shape: bf16[8,16], index: 0, kind: input, shape index: {}]
  %s1 = inlined_call_operand.vmem [shape: bf16[16,1024], index: 1, kind: input, shape index: {}]
  %s2 = inlined_call_operand.vmem [shape: f32[1,1024], index: 2, kind: input, shape index: {}]
  %s3 = inlined_call_operand.vmem [shape: f32[8,1024], index: 3, kind: output, shape index: {0}]
  %s4 = inlined_call_operand.vmem [shape: f32[1,8,1024], index: 4, kind: output, shape index: {1}]
  %5 = xla_tuple %s3, %s4
  %s6 = sld [smem:[#allocation0]]
  $region30: #{generator_forward.9} parent=0
    _
  %s8 = ssub.s32 1, %s6
  %s9 = scalar_select 0, %s8, %s6
  // Predicated region
  $region2: #{generator_forward.9} parent=0 // pred_check
    _
  $region3: #{generator_forward.9} parent=0 // pred_check_branch
    %11 = sbr.rel (0) target = $region5
  $region4: #{generator_forward.9} parent=0 // pred_region
    _
  $region5: #{generator_forward.9} parent=0 // pred_fallthru
    _
  // Predicated region
  $region6: #{generator_forward.9} parent=0 // pred_check
    _
  $region7: #{generator_forward.9} parent=0 // pred_check_branch
    %13 = sbr.rel (0) target = $region9
  $region8: #{generator_forward.9} parent=0 // pred_region
    _
  $region9: #{generator_forward.9} parent=0 // pred_fallthru
    _
  // Predicated region
  $region10: #{generator_forward.9} parent=0 // pred_check
    _
  $region11: #{generator_forward.9} parent=0 // pred_check_branch
    %15 = sbr.rel (0) target = $region13
  $region12: #{generator_forward.9} parent=0 // pred_region
    _
  $region13: #{generator_forward.9} parent=0 // pred_fallthru
    _
  %v17 = vld [vmem:[%s0] sm:$0xf]
  %v18 = vld [vmem:[%s1] sm:$0xff]
  %v19 = vld [vmem:[%s1 + $0x8] sm:$0xff]
  %v20 = vld [vmem:[%s1 + $0x10] sm:$0xff]
  %v21 = vld [vmem:[%s1 + $0x18] sm:$0xff]
  %v22 = vld [vmem:[%s1 + $0x20] sm:$0xff]
  %v23 = vld [vmem:[%s1 + $0x28] sm:$0xff]
  %v24 = vld [vmem:[%s1 + $0x30] sm:$0xff]
  %v25 = vld [vmem:[%s1 + $0x38] sm:$0xff]
  %v26 = vld [vmem:[%s2] sm:$0xff]
  %v28 = vlaneseq
  %v29 = vshrl.u32 %v28, 7
  %v30 = vsub.s32 0, %v29
  %v31 = vrot.slane %v26, %v30
  %v32 = vlaneseq
  %v33 = vshrl.u32 %v32, 7
  %v34 = vsub.s32 1, %v33
  %v35 = vrot.slane %v26, %v34
  %v36 = vlaneseq
  %v37 = vshrl.u32 %v36, 7
  %v38 = vsub.s32 2, %v37
  %v39 = vrot.slane %v26, %v38
  %v40 = vlaneseq
  %v41 = vshrl.u32 %v40, 7
  %v42 = vsub.s32 3, %v41
  %v43 = vrot.slane %v26, %v42
  %v44 = vlaneseq
  %v45 = vshrl.u32 %v44, 7
  %v46 = vsub.s32 4, %v45
  %v47 = vrot.slane %v26, %v46
  %v48 = vlaneseq
  %v49 = vshrl.u32 %v48, 7
  %v50 = vsub.s32 5, %v49
  %v51 = vrot.slane %v26, %v50
  %v52 = vlaneseq
  %v53 = vshrl.u32 %v52, 7
  %v54 = vsub.s32 6, %v53
  %v55 = vrot.slane %v26, %v54
  %v56 = vlaneseq
  %v57 = vshrl.u32 %v56, 7
  %v58 = vsub.s32 7, %v57
  %v59 = vrot.slane %v26, %v58
  %v76 = vunpack.c.l.b16 %v18
  %v77 = vunpack.c.h.b16 %v18
  %v78 = vunpack.c.l.b16 %v19
  %v79 = vunpack.c.h.b16 %v19
  %v80 = vunpack.c.l.b16 %v20
  %v81 = vunpack.c.h.b16 %v20
  %v82 = vunpack.c.l.b16 %v21
  %v83 = vunpack.c.h.b16 %v21
  %v84 = vunpack.c.l.b16 %v22
  %v85 = vunpack.c.h.b16 %v22
  %v86 = vunpack.c.l.b16 %v23
  %v87 = vunpack.c.h.b16 %v23
  %v88 = vunpack.c.l.b16 %v24
  %v89 = vunpack.c.h.b16 %v24
  %v90 = vunpack.c.l.b16 %v25
  %v91 = vunpack.c.h.b16 %v25
  %v92 = vpack.c.b16 %v84, %v76
  %v93 = vpack.c.b16 %v85, %v77
  %v94 = vpack.c.b16 %v86, %v78
  %v95 = vpack.c.b16 %v87, %v79
  %v96 = vpack.c.b16 %v88, %v80
  %v97 = vpack.c.b16 %v89, %v81
  %v98 = vpack.c.b16 %v90, %v82
  %v99 = vpack.c.b16 %v91, %v83
  %vm108 = vcmask 130048
  %v110 = vsel %vm108, %v17, 0
  %112 = vmatprep.subr.bf16.mxu0 %v93
  %113 = vmatpush1.bf16.msra.mxu0 %v92
  %114 = vmatprep.subr.bf16.mxu0 0
  %115 = vmatpush1.bf16.msra.mxu0 0
  %116 = vmatprep.subr.bf16.mxu0 0
  %117 = vmatpush1.bf16.msra.mxu0 0
  %118 = vmatprep.subr.bf16.mxu0 0
  %119 = vmatpush1.bf16.msra.mxu0 0
  %120 = vmatprep.subr.bf16.mxu0 0
  %121 = vmatpush1.bf16.msra.mxu0 0
  %122 = vmatprep.subr.bf16.mxu0 0
  %123 = vmatpush1.bf16.msra.mxu0 0
  %124 = vmatprep.subr.bf16.mxu0 0
  %125 = vmatpush1.bf16.msra.mxu0 0
  %126 = vmatprep.subr.bf16.mxu0 0
  %127 = vmatpush1.bf16.msra.mxu0 0
  %128 = vmatprep.subr.bf16.mxu0 0
  %129 = vmatpush1.bf16.msra.mxu0 0
  %130 = vmatprep.subr.bf16.mxu0 0
  %131 = vmatpush1.bf16.msra.mxu0 0
  %132 = vmatprep.subr.bf16.mxu0 0
  %133 = vmatpush1.bf16.msra.mxu0 0
  %134 = vmatprep.subr.bf16.mxu0 0
  %135 = vmatpush1.bf16.msra.mxu0 0
  %136 = vmatprep.subr.bf16.mxu0 0
  %137 = vmatpush1.bf16.msra.mxu0 0
  %138 = vmatprep.subr.bf16.mxu0 0
  %139 = vmatpush1.bf16.msra.mxu0 0
  %140 = vmatprep.subr.bf16.mxu0 0
  %141 = vmatpush1.bf16.msra.mxu0 0
  %142 = vmatprep.subr.bf16.mxu0 0
  %143 = vmatpush1.bf16.msra.mxu0 0
  %144 = vmatprep.mubr.bf16.mxu0 0
  %145 = vmatmul.mubr.bf16.gmra.mrb[0].mxu0 %v110
  %v146 = vpop.f32.mrb[0].mxu0
  %v147 = vadd.f32 %v31, %v146
  %v148 = vpop.f32.mrb[0].mxu0
  %v149 = vadd.f32 %v35, %v148
  %v150 = vpop.f32.mrb[0].mxu0
  %v151 = vpop.f32.mrb[0].mxu0
  %152 = vdwg.mxu0
  %153 = vmatprep.subr.bf16.mxu0 %v95
  %154 = vmatpush1.bf16.msra.mxu0 %v94
  %155 = vmatprep.subr.bf16.mxu0 0
  %156 = vmatpush1.bf16.msra.mxu0 0
  %157 = vmatprep.subr.bf16.mxu0 0
  %158 = vmatpush1.bf16.msra.mxu0 0
  %159 = vmatprep.subr.bf16.mxu0 0
  %160 = vmatpush1.bf16.msra.mxu0 0
  %161 = vmatprep.subr.bf16.mxu0 0
  %162 = vmatpush1.bf16.msra.mxu0 0
  %163 = vmatprep.subr.bf16.mxu0 0
  %164 = vmatpush1.bf16.msra.mxu0 0
  %165 = vmatprep.subr.bf16.mxu0 0
  %166 = vmatpush1.bf16.msra.mxu0 0
  %167 = vmatprep.subr.bf16.mxu0 0
  %168 = vmatpush1.bf16.msra.mxu0 0
  %169 = vmatprep.subr.bf16.mxu0 0
  %170 = vmatpush1.bf16.msra.mxu0 0
  %171 = vmatprep.subr.bf16.mxu0 0
  %172 = vmatpush1.bf16.msra.mxu0 0
  %173 = vmatprep.subr.bf16.mxu0 0
  %174 = vmatpush1.bf16.msra.mxu0 0
  %175 = vmatprep.subr.bf16.mxu0 0
  %176 = vmatpush1.bf16.msra.mxu0 0
  %177 = vmatprep.subr.bf16.mxu0 0
  %178 = vmatpush1.bf16.msra.mxu0 0
  %179 = vmatprep.subr.bf16.mxu0 0
  %180 = vmatpush1.bf16.msra.mxu0 0
  %181 = vmatprep.subr.bf16.mxu0 0
  %182 = vmatpush1.bf16.msra.mxu0 0
  %183 = vmatprep.subr.bf16.mxu0 0
  %184 = vmatpush1.bf16.msra.mxu0 0
  %185 = vmatprep.mubr.bf16.mxu0 0
  %186 = vmatmul.mubr.bf16.gmra.mrb[0].mxu0 %v110
  %v187 = vpop.f32.mrb[0].mxu0
  %v188 = vadd.f32 %v39, %v187
  %v189 = vpop.f32.mrb[0].mxu0
  %v190 = vadd.f32 %v43, %v189
  %v191 = vpop.f32.mrb[0].mxu0
  %v192 = vpop.f32.mrb[0].mxu0
  %193 = vdwg.mxu0
  %194 = vmatprep.subr.bf16.mxu0 %v97
  %195 = vmatpush1.bf16.msra.mxu0 %v96
  %196 = vmatprep.subr.bf16.mxu0 0
  %197 = vmatpush1.bf16.msra.mxu0 0
  %198 = vmatprep.subr.bf16.mxu0 0
  %199 = vmatpush1.bf16.msra.mxu0 0
  %200 = vmatprep.subr.bf16.mxu0 0
  %201 = vmatpush1.bf16.msra.mxu0 0
  %202 = vmatprep.subr.bf16.mxu0 0
  %203 = vmatpush1.bf16.msra.mxu0 0
  %204 = vmatprep.subr.bf16.mxu0 0
  %205 = vmatpush1.bf16.msra.mxu0 0
  %206 = vmatprep.subr.bf16.mxu0 0
  %207 = vmatpush1.bf16.msra.mxu0 0
  %208 = vmatprep.subr.bf16.mxu0 0
  %209 = vmatpush1.bf16.msra.mxu0 0
  %210 = vmatprep.subr.bf16.mxu0 0
  %211 = vmatpush1.bf16.msra.mxu0 0
  %212 = vmatprep.subr.bf16.mxu0 0
  %213 = vmatpush1.bf16.msra.mxu0 0
  %214 = vmatprep.subr.bf16.mxu0 0
  %215 = vmatpush1.bf16.msra.mxu0 0
  %216 = vmatprep.subr.bf16.mxu0 0
  %217 = vmatpush1.bf16.msra.mxu0 0
  %218 = vmatprep.subr.bf16.mxu0 0
  %219 = vmatpush1.bf16.msra.mxu0 0
  %220 = vmatprep.subr.bf16.mxu0 0
  %221 = vmatpush1.bf16.msra.mxu0 0
  %222 = vmatprep.subr.bf16.mxu0 0
  %223 = vmatpush1.bf16.msra.mxu0 0
  %224 = vmatprep.subr.bf16.mxu0 0
  %225 = vmatpush1.bf16.msra.mxu0 0
  %226 = vmatprep.mubr.bf16.mxu0 0
  %227 = vmatmul.mubr.bf16.gmra.mrb[0].mxu0 %v110
  %v228 = vpop.f32.mrb[0].mxu0
  %v229 = vadd.f32 %v47, %v228
  %v230 = vpop.f32.mrb[0].mxu0
  %v231 = vadd.f32 %v51, %v230
  %v232 = vpop.f32.mrb[0].mxu0
  %v233 = vpop.f32.mrb[0].mxu0
  %234 = vdwg.mxu0
  %235 = vmatprep.subr.bf16.mxu0 %v99
  %236 = vmatpush1.bf16.msra.mxu0 %v98
  %237 = vmatprep.subr.bf16.mxu0 0
  %238 = vmatpush1.bf16.msra.mxu0 0
  %239 = vmatprep.subr.bf16.mxu0 0
  %240 = vmatpush1.bf16.msra.mxu0 0
  %241 = vmatprep.subr.bf16.mxu0 0
  %242 = vmatpush1.bf16.msra.mxu0 0
  %243 = vmatprep.subr.bf16.mxu0 0
  %244 = vmatpush1.bf16.msra.mxu0 0
  %245 = vmatprep.subr.bf16.mxu0 0
  %246 = vmatpush1.bf16.msra.mxu0 0
  %247 = vmatprep.subr.bf16.mxu0 0
  %248 = vmatpush1.bf16.msra.mxu0 0
  %249 = vmatprep.subr.bf16.mxu0 0
  %250 = vmatpush1.bf16.msra.mxu0 0
  %251 = vmatprep.subr.bf16.mxu0 0
  %252 = vmatpush1.bf16.msra.mxu0 0
  %253 = vmatprep.subr.bf16.mxu0 0
  %254 = vmatpush1.bf16.msra.mxu0 0
  %255 = vmatprep.subr.bf16.mxu0 0
  %256 = vmatpush1.bf16.msra.mxu0 0
  %257 = vmatprep.subr.bf16.mxu0 0
  %258 = vmatpush1.bf16.msra.mxu0 0
  %259 = vmatprep.subr.bf16.mxu0 0
  %260 = vmatpush1.bf16.msra.mxu0 0
  %261 = vmatprep.subr.bf16.mxu0 0
  %262 = vmatpush1.bf16.msra.mxu0 0
  %263 = vmatprep.subr.bf16.mxu0 0
  %264 = vmatpush1.bf16.msra.mxu0 0
  %265 = vmatprep.subr.bf16.mxu0 0
  %266 = vmatpush1.bf16.msra.mxu0 0
  %267 = vmatprep.mubr.bf16.mxu0 0
  %268 = vmatmul.mubr.bf16.gmra.mrb[0].mxu0 %v110
  %v269 = vpop.f32.mrb[0].mxu0
  %v270 = vadd.f32 %v55, %v269
  %v271 = vpop.f32.mrb[0].mxu0
  %v272 = vadd.f32 %v59, %v271
  %v273 = vpop.f32.mrb[0].mxu0
  %v274 = vpop.f32.mrb[0].mxu0
  %275 = vdwg.mxu0
  %276 = vst [vmem:[%s3] sm:$0xff] %v147
  %277 = vst [vmem:[%s3 + $0x8] sm:$0xff] %v149
  %278 = vst [vmem:[%s3 + $0x10] sm:$0xff] %v188
  %279 = vst [vmem:[%s3 + $0x18] sm:$0xff] %v190
  %280 = vst [vmem:[%s3 + $0x20] sm:$0xff] %v229
  %281 = vst [vmem:[%s3 + $0x28] sm:$0xff] %v231
  %282 = vst [vmem:[%s3 + $0x30] sm:$0xff] %v270
  %283 = vst [vmem:[%s3 + $0x38] sm:$0xff] %v272
  %s284 = smul.u32 0, 8
  %v285 = vlaneseq
  %v286 = vshrl.u32 %v285, 7
  %v287 = vstv %s284
  %v288 = vadd.s32 %v287, %v286
  %vm289 = vcmp.lt.s32.totalorder %v288, 2
  %v290 = vsel %vm289, 1, 0
  %v291 = vcvt.s32.f32 %v290
  %v292 = vmul.f32 %v147, %v291
  %v293 = vmul.f32 %v149, %v291
  %v294 = vmul.f32 %v188, %v291
  %v295 = vmul.f32 %v190, %v291
  %v296 = vmul.f32 %v229, %v291
  %v297 = vmul.f32 %v231, %v291
  %v298 = vmul.f32 %v270, %v291
  %v299 = vmul.f32 %v272, %v291
  %v300 = vmul.f32 %v147, %v147
  %v301 = vmul.f32 %v149, %v149
  %v302 = vmul.f32 %v188, %v188
  %v303 = vmul.f32 %v190, %v190
  %v304 = vmul.f32 %v229, %v229
  %v305 = vmul.f32 %v231, %v231
  %v306 = vmul.f32 %v270, %v270
  %v307 = vmul.f32 %v272, %v272
  %v308 = vmul.f32 %v300, %v291
  %v309 = vmul.f32 %v301, %v291
  %v310 = vmul.f32 %v302, %v291
  %v311 = vmul.f32 %v303, %v291
  %v312 = vmul.f32 %v304, %v291
  %v313 = vmul.f32 %v305, %v291
  %v314 = vmul.f32 %v306, %v291
  %v315 = vmul.f32 %v307, %v291
  %v316 = vrot.slane %v292, 4
  %v317 = vadd.f32 %v292, %v316
  %v318 = vrot.slane %v317, 2
  %v319 = vadd.f32 %v317, %v318
  %v320 = vrot.slane %v319, 1
  %v321 = vadd.f32 %v319, %v320
  %v322 = vrot.slane %v293, 4
  %v323 = vadd.f32 %v293, %v322
  %v324 = vrot.slane %v323, 2
  %v325 = vadd.f32 %v323, %v324
  %v326 = vrot.slane %v325, 1
  %v327 = vadd.f32 %v325, %v326
  %v328 = vrot.slane %v294, 4
  %v329 = vadd.f32 %v294, %v328
  %v330 = vrot.slane %v329, 2
  %v331 = vadd.f32 %v329, %v330
  %v332 = vrot.slane %v331, 1
  %v333 = vadd.f32 %v331, %v332
  %v334 = vrot.slane %v295, 4
  %v335 = vadd.f32 %v295, %v334
  %v336 = vrot.slane %v335, 2
  %v337 = vadd.f32 %v335, %v336
  %v338 = vrot.slane %v337, 1
  %v339 = vadd.f32 %v337, %v338
  %v340 = vrot.slane %v296, 4
  %v341 = vadd.f32 %v296, %v340
  %v342 = vrot.slane %v341, 2
  %v343 = vadd.f32 %v341, %v342
  %v344 = vrot.slane %v343, 1
  %v345 = vadd.f32 %v343, %v344
  %v346 = vrot.slane %v297, 4
  %v347 = vadd.f32 %v297, %v346
  %v348 = vrot.slane %v347, 2
  %v349 = vadd.f32 %v347, %v348
  %v350 = vrot.slane %v349, 1
  %v351 = vadd.f32 %v349, %v350
  %v352 = vrot.slane %v298, 4
  %v353 = vadd.f32 %v298, %v352
  %v354 = vrot.slane %v353, 2
  %v355 = vadd.f32 %v353, %v354
  %v356 = vrot.slane %v355, 1
  %v357 = vadd.f32 %v355, %v356
  %v358 = vrot.slane %v299, 4
  %v359 = vadd.f32 %v299, %v358
  %v360 = vrot.slane %v359, 2
  %v361 = vadd.f32 %v359, %v360
  %v362 = vrot.slane %v361, 1
  %v363 = vadd.f32 %v361, %v362
  %v364 = vrot.slane %v308, 4
  %v365 = vadd.f32 %v308, %v364
  %v366 = vrot.slane %v365, 2
  %v367 = vadd.f32 %v365, %v366
  %v368 = vrot.slane %v367, 1
  %v369 = vadd.f32 %v367, %v368
  %v370 = vrot.slane %v309, 4
  %v371 = vadd.f32 %v309, %v370
  %v372 = vrot.slane %v371, 2
  %v373 = vadd.f32 %v371, %v372
  %v374 = vrot.slane %v373, 1
  %v375 = vadd.f32 %v373, %v374
  %v376 = vrot.slane %v310, 4
  %v377 = vadd.f32 %v310, %v376
  %v378 = vrot.slane %v377, 2
  %v379 = vadd.f32 %v377, %v378
  %v380 = vrot.slane %v379, 1
  %v381 = vadd.f32 %v379, %v380
  %v382 = vrot.slane %v311, 4
  %v383 = vadd.f32 %v311, %v382
  %v384 = vrot.slane %v383, 2
  %v385 = vadd.f32 %v383, %v384
  %v386 = vrot.slane %v385, 1
  %v387 = vadd.f32 %v385, %v386
  %v388 = vrot.slane %v312, 4
  %v389 = vadd.f32 %v312, %v388
  %v390 = vrot.slane %v389, 2
  %v391 = vadd.f32 %v389, %v390
  %v392 = vrot.slane %v391, 1
  %v393 = vadd.f32 %v391, %v392
  %v394 = vrot.slane %v313, 4
  %v395 = vadd.f32 %v313, %v394
  %v396 = vrot.slane %v395, 2
  %v397 = vadd.f32 %v395, %v396
  %v398 = vrot.slane %v397, 1
  %v399 = vadd.f32 %v397, %v398
  %v400 = vrot.slane %v314, 4
  %v401 = vadd.f32 %v314, %v400
  %v402 = vrot.slane %v401, 2
  %v403 = vadd.f32 %v401, %v402
  %v404 = vrot.slane %v403, 1
  %v405 = vadd.f32 %v403, %v404
  %v406 = vrot.slane %v315, 4
  %v407 = vadd.f32 %v315, %v406
  %v408 = vrot.slane %v407, 2
  %v409 = vadd.f32 %v407, %v408
  %v410 = vrot.slane %v409, 1
  %v411 = vadd.f32 %v409, %v410
  %vm412 = vcmp.eq.s32.totalorder %v286, 0
  %vm413 = vcmp.eq.s32.totalorder %v286, 1
  %v414 = vsel %vm413, 1, 0
  %vm415 = vcmp.eq.s32.totalorder %v414, 1
  %v416 = vsel %vm415, %v369, 0.0
  %v417 = vsel %vm415, %v375, 0.0
  %v418 = vsel %vm415, %v381, 0.0
  %v419 = vsel %vm415, %v387, 0.0
  %v420 = vsel %vm415, %v393, 0.0
  %v421 = vsel %vm415, %v399, 0.0
  %v422 = vsel %vm415, %v405, 0.0
  %v423 = vsel %vm415, %v411, 0.0
  %v424 = vsel %vm412, 1, 0
  %vm425 = vcmp.eq.s32.totalorder %v424, 1
  %v426 = vsel %vm425, %v321, %v416
  %v427 = vsel %vm425, %v327, %v417
  %v428 = vsel %vm425, %v333, %v418
  %v429 = vsel %vm425, %v339, %v419
  %v430 = vsel %vm425, %v345, %v420
  %v431 = vsel %vm425, %v351, %v421
  %v432 = vsel %vm425, %v357, %v422
  %v433 = vsel %vm425, %v363, %v423
  %434 = vst [vmem:[%s4] sm:$0xff] %v426
  %435 = vst [vmem:[%s4 + $0x8] sm:$0xff] %v427
  %436 = vst [vmem:[%s4 + $0x10] sm:$0xff] %v428
  %437 = vst [vmem:[%s4 + $0x18] sm:$0xff] %v429
  %438 = vst [vmem:[%s4 + $0x20] sm:$0xff] %v430
  %439 = vst [vmem:[%s4 + $0x28] sm:$0xff] %v431
  %440 = vst [vmem:[%s4 + $0x30] sm:$0xff] %v432
  %441 = vst [vmem:[%s4 + $0x38] sm:$0xff] %v433
  // Predicated region
  $region14: #{generator_forward.9} parent=0 // pred_check
    _
  $region15: #{generator_forward.9} parent=0 // pred_check_branch
    %443 = sbr.rel (0) target = $region17
  $region16: #{generator_forward.9} parent=0 // pred_region
    _
  $region17: #{generator_forward.9} parent=0 // pred_fallthru
    _
  // Predicated region
  $region18: #{generator_forward.9} parent=0 // pred_check
    _
  $region19: #{generator_forward.9} parent=0 // pred_check_branch
    %445 = sbr.rel (0) target = $region21
  $region20: #{generator_forward.9} parent=0 // pred_region
    _
  $region21: #{generator_forward.9} parent=0 // pred_fallthru
    _
  // Predicated region
  $region22: #{generator_forward.9} parent=0 // pred_check
    _
  $region23: #{generator_forward.9} parent=0 // pred_check_branch
    %447 = sbr.rel (0) target = $region25
  $region24: #{generator_forward.9} parent=0 // pred_region
    _
  $region25: #{generator_forward.9} parent=0 // pred_fallthru
    _
  // Predicated region
  $region26: #{generator_forward.9} parent=0 // pred_check
    _
  $region27: #{generator_forward.9} parent=0 // pred_check_branch
    %449 = sbr.rel (0) target = $region29
  $region28: #{generator_forward.9} parent=0 // pred_region
    _
  $region29: #{generator_forward.9} parent=0 // pred_fallthru
    _

// kernel: generator_forward.12
$region0: #{generator_forward.12}
  #allocation0 [shape = 'u32[]', space=smem, size = 0x4, offset = 0x4, fixed_abs, tag = 'smem constant byte address 0x4 - core index']
  #allocation1 [shape = 'u32[144,128]{1,0:T(1,128)}', space=vmem, size = 0x12000, scoped, tag = 'internal scratch']
  %s0 = inlined_call_operand.vmem [shape: f32[32,128], index: 0, kind: input, shape index: {}]
  %s1 = inlined_call_operand.vmem [shape: f32[1,128], index: 1, kind: input, shape index: {}]
  %s2 = inlined_call_operand.vmem [shape: f32[1,128], index: 2, kind: input, shape index: {}]
  %s3 = inlined_call_operand.vmem [shape: bf16[32,128], index: 3, kind: output, shape index: {}]
  %s4 = sld [smem:[#allocation0]]
  $region22: #{generator_forward.12} parent=0
    _
  %s6 = ssub.s32 1, %s4
  %s7 = scalar_select 0, %s6, %s4
  // Predicated region
  $region2: #{generator_forward.12} parent=0 // pred_check
    _
  $region3: #{generator_forward.12} parent=0 // pred_check_branch
    %9 = sbr.rel (0) target = $region5
  $region4: #{generator_forward.12} parent=0 // pred_region
    _
  $region5: #{generator_forward.12} parent=0 // pred_fallthru
    _
  // Predicated region
  $region6: #{generator_forward.12} parent=0 // pred_check
    _
  $region7: #{generator_forward.12} parent=0 // pred_check_branch
    %11 = sbr.rel (0) target = $region9
  $region8: #{generator_forward.12} parent=0 // pred_region
    _
  $region9: #{generator_forward.12} parent=0 // pred_fallthru
    _
  // Predicated region
  $region10: #{generator_forward.12} parent=0 // pred_check
    _
  $region11: #{generator_forward.12} parent=0 // pred_check_branch
    %13 = sbr.rel (0) target = $region13
  $region12: #{generator_forward.12} parent=0 // pred_region
    _
  $region13: #{generator_forward.12} parent=0 // pred_fallthru
    _
  %v14 = vld [vmem:[%s0] sm:$0xff]
  %v15 = vld [vmem:[%s0 + $0x8] sm:$0xff]
  %v16 = vld [vmem:[%s0 + $0x10] sm:$0xff]
  %v17 = vld [vmem:[%s0 + $0x18] sm:$0xff]
  %v18 = vld [vmem:[%s1] sm:$0x1]
  %v20 = vlaneseq
  %v21 = vshrl.u32 %v20, 7
  %v22 = vsub.s32 0, %v21
  %v23 = vrot.slane %v18, %v22
  %v25 = vmul.f32 %v14, %v23
  %v26 = vmul.f32 %v15, %v23
  %v27 = vmul.f32 %v16, %v23
  %v28 = vmul.f32 %v17, %v23
  %v29 = vld [vmem:[%s2] sm:$0x1]
  %v31 = vlaneseq
  %v32 = vshrl.u32 %v31, 7
  %v33 = vsub.s32 0, %v32
  %v34 = vrot.slane %v29, %v33
  %v36 = vadd.f32 %v25, %v34
  %v37 = vadd.f32 %v26, %v34
  %v38 = vadd.f32 %v27, %v34
  %v39 = vadd.f32 %v28, %v34
  %v40 = vmax.f32 %v36, 0.0
  %v41 = vmax.f32 %v37, 0.0
  %v42 = vmax.f32 %v38, 0.0
  %v43 = vmax.f32 %v39, 0.0
  %v44 = vpack.c.bf16 %v41, %v40
  %v45 = vpack.c.bf16 %v43, %v42
  %v48 = vunpack.c.l.b16 %v44
  %v49 = vunpack.c.h.b16 %v44
  %v50 = vunpack.c.l.b16 %v45
  %v51 = vunpack.c.h.b16 %v45
  %v52 = vpack.c.b16 %v48, %v48
  %v53 = vpack.c.b16 %v49, %v49
  %v54 = vpack.c.b16 %v50, %v50
  %v55 = vpack.c.b16 %v51, %v51
  %60 = vst [vmem:[%s3] sm:$0xf] %v52
  %61 = vst [vmem:[%s3 + $0x4] sm:$0xf] %v53
  %62 = vst [vmem:[%s3 + $0x8] sm:$0xf] %v54
  %63 = vst [vmem:[%s3 + $0xc] sm:$0xf] %v55
  // Predicated region
  $region14: #{generator_forward.12} parent=0 // pred_check
    _
  $region15: #{generator_forward.12} parent=0 // pred_check_branch
    %65 = sbr.rel (0) target = $region17
  $region16: #{generator_forward.12} parent=0 // pred_region
    _
  $region17: #{generator_forward.12} parent=0 // pred_fallthru
    _
  // Predicated region
  $region18: #{generator_forward.12} parent=0 // pred_check
    _
  $region19: #{generator_forward.12} parent=0 // pred_check_branch
    %67 = sbr.rel (0) target = $region21
  $region20: #{generator_forward.12} parent=0 // pred_region
    _
  $region21: #{generator_forward.12} parent=0 // pred_fallthru
    _

// kernel: generator_forward.11
$region0: #{generator_forward.11}
  #allocation0 [shape = 'u32[]', space=smem, size = 0x4, offset = 0x4, fixed_abs, tag = 'smem constant byte address 0x4 - core index']
  #allocation1 [shape = 'u32[144,128]{1,0:T(1,128)}', space=vmem, size = 0x12000, scoped, tag = 'internal scratch']
  %s0 = inlined_call_operand.vmem [shape: bf16[32,576], index: 0, kind: input, shape index: {}]
  %s1 = inlined_call_operand.vmem [shape: bf16[576,128], index: 1, kind: input, shape index: {}]
  %s2 = inlined_call_operand.vmem [shape: f32[1,128], index: 2, kind: input, shape index: {}]
  %s3 = inlined_call_operand.vmem [shape: f32[32,128], index: 3, kind: output, shape index: {0}]
  %s4 = inlined_call_operand.vmem [shape: f32[1,8,128], index: 4, kind: output, shape index: {1}]
  %5 = xla_tuple %s3, %s4
  %s6 = sld [smem:[#allocation0]]
  $region30: #{generator_forward.11} parent=0
    _
  %s8 = ssub.s32 1, %s6
  %s9 = scalar_select 0, %s8, %s6
  // Predicated region
  $region2: #{generator_forward.11} parent=0 // pred_check
    _
  $region3: #{generator_forward.11} parent=0 // pred_check_branch
    %11 = sbr.rel (0) target = $region5
  $region4: #{generator_forward.11} parent=0 // pred_region
    _
  $region5: #{generator_forward.11} parent=0 // pred_fallthru
    _
  // Predicated region
  $region6: #{generator_forward.11} parent=0 // pred_check
    _
  $region7: #{generator_forward.11} parent=0 // pred_check_branch
    %13 = sbr.rel (0) target = $region9
  $region8: #{generator_forward.11} parent=0 // pred_region
    _
  $region9: #{generator_forward.11} parent=0 // pred_fallthru
    _
  // Predicated region
  $region10: #{generator_forward.11} parent=0 // pred_check
    _
  $region11: #{generator_forward.11} parent=0 // pred_check_branch
    %15 = sbr.rel (0) target = $region13
  $region12: #{generator_forward.11} parent=0 // pred_region
    _
  $region13: #{generator_forward.11} parent=0 // pred_fallthru
    _
  %v17 = vld [vmem:[%s0] sm:$0xff]
  %v18 = vld [vmem:[%s0 + $0x8] sm:$0xff]
  %v19 = vld [vmem:[%s0 + $0x10] sm:$0xf]
  %v20 = vld [vmem:[%s0 + $0x14] sm:$0xff]
  %v21 = vld [vmem:[%s0 + $0x1c] sm:$0xff]
  %v22 = vld [vmem:[%s0 + $0x24] sm:$0xf]
  %v23 = vld [vmem:[%s0 + $0x28] sm:$0xff]
  %v24 = vld [vmem:[%s0 + $0x30] sm:$0xff]
  %v25 = vld [vmem:[%s0 + $0x38] sm:$0xf]
  %v26 = vld [vmem:[%s0 + $0x3c] sm:$0xff]
  %v27 = vld [vmem:[%s0 + $0x44] sm:$0xff]
  %v28 = vld [vmem:[%s0 + $0x4c] sm:$0xf]
  %v29 = vld [vmem:[%s1] sm:$0xf]
  %v30 = vld [vmem:[%s1 + $0x4] sm:$0xf]
  %v31 = vld [vmem:[%s1 + $0x8] sm:$0xf]
  %v32 = vld [vmem:[%s1 + $0xc] sm:$0xf]
  %v33 = vld [vmem:[%s1 + $0x10] sm:$0xf]
  %v34 = vld [vmem:[%s1 + $0x14] sm:$0xf]
  %v35 = vld [vmem:[%s1 + $0x18] sm:$0xf]
  %v36 = vld [vmem:[%s1 + $0x1c] sm:$0xf]
  %v37 = vld [vmem:[%s1 + $0x20] sm:$0xf]
  %v38 = vld [vmem:[%s1 + $0x24] sm:$0xf]
  %v39 = vld [vmem:[%s1 + $0x28] sm:$0xf]
  %v40 = vld [vmem:[%s1 + $0x2c] sm:$0xf]
  %v41 = vld [vmem:[%s1 + $0x30] sm:$0xf]
  %v42 = vld [vmem:[%s1 + $0x34] sm:$0xf]
  %v43 = vld [vmem:[%s1 + $0x38] sm:$0xf]
  %v44 = vld [vmem:[%s1 + $0x3c] sm:$0xf]
  %v45 = vld [vmem:[%s1 + $0x40] sm:$0xf]
  %v46 = vld [vmem:[%s1 + $0x44] sm:$0xf]
  %v47 = vld [vmem:[%s1 + $0x48] sm:$0xf]
  %v48 = vld [vmem:[%s1 + $0x4c] sm:$0xf]
  %v49 = vld [vmem:[%s1 + $0x50] sm:$0xf]
  %v50 = vld [vmem:[%s1 + $0x54] sm:$0xf]
  %v51 = vld [vmem:[%s1 + $0x58] sm:$0xf]
  %v52 = vld [vmem:[%s1 + $0x5c] sm:$0xf]
  %v53 = vld [vmem:[%s1 + $0x60] sm:$0xf]
  %v54 = vld [vmem:[%s1 + $0x64] sm:$0xf]
  %v55 = vld [vmem:[%s1 + $0x68] sm:$0xf]
  %v56 = vld [vmem:[%s1 + $0x6c] sm:$0xf]
  %v57 = vld [vmem:[%s1 + $0x70] sm:$0xf]
  %v58 = vld [vmem:[%s1 + $0x74] sm:$0xf]
  %v59 = vld [vmem:[%s1 + $0x78] sm:$0xf]
  %v60 = vld [vmem:[%s1 + $0x7c] sm:$0xf]
  %v61 = vld [vmem:[%s1 + $0x80] sm:$0xf]
  %v62 = vld [vmem:[%s1 + $0x84] sm:$0xf]
  %v63 = vld [vmem:[%s1 + $0x88] sm:$0xf]
  %v64 = vld [vmem:[%s1 + $0x8c] sm:$0xf]
  %v65 = vld [vmem:[%s1 + $0x90] sm:$0xf]
  %v66 = vld [vmem:[%s1 + $0x94] sm:$0xf]
  %v67 = vld [vmem:[%s1 + $0x98] sm:$0xf]
  %v68 = vld [vmem:[%s1 + $0x9c] sm:$0xf]
  %v69 = vld [vmem:[%s1 + $0xa0] sm:$0xf]
  %v70 = vld [vmem:[%s1 + $0xa4] sm:$0xf]
  %v71 = vld [vmem:[%s1 + $0xa8] sm:$0xf]
  %v72 = vld [vmem:[%s1 + $0xac] sm:$0xf]
  %v73 = vld [vmem:[%s1 + $0xb0] sm:$0xf]
  %v74 = vld [vmem:[%s1 + $0xb4] sm:$0xf]
  %v75 = vld [vmem:[%s1 + $0xb8] sm:$0xf]
  %v76 = vld [vmem:[%s1 + $0xbc] sm:$0xf]
  %v77 = vld [vmem:[%s1 + $0xc0] sm:$0xf]
  %v78 = vld [vmem:[%s1 + $0xc4] sm:$0xf]
  %v79 = vld [vmem:[%s1 + $0xc8] sm:$0xf]
  %v80 = vld [vmem:[%s1 + $0xcc] sm:$0xf]
  %v81 = vld [vmem:[%s1 + $0xd0] sm:$0xf]
  %v82 = vld [vmem:[%s1 + $0xd4] sm:$0xf]
  %v83 = vld [vmem:[%s1 + $0xd8] sm:$0xf]
  %v84 = vld [vmem:[%s1 + $0xdc] sm:$0xf]
  %v85 = vld [vmem:[%s1 + $0xe0] sm:$0xf]
  %v86 = vld [vmem:[%s1 + $0xe4] sm:$0xf]
  %v87 = vld [vmem:[%s1 + $0xe8] sm:$0xf]
  %v88 = vld [vmem:[%s1 + $0xec] sm:$0xf]
  %v89 = vld [vmem:[%s1 + $0xf0] sm:$0xf]
  %v90 = vld [vmem:[%s1 + $0xf4] sm:$0xf]
  %v91 = vld [vmem:[%s1 + $0xf8] sm:$0xf]
  %v92 = vld [vmem:[%s1 + $0xfc] sm:$0xf]
  %v93 = vld [vmem:[%s1 + $0x100] sm:$0xf]
  %v94 = vld [vmem:[%s1 + $0x104] sm:$0xf]
  %v95 = vld [vmem:[%s1 + $0x108] sm:$0xf]
  %v96 = vld [vmem:[%s1 + $0x10c] sm:$0xf]
  %v97 = vld [vmem:[%s1 + $0x110] sm:$0xf]
  %v98 = vld [vmem:[%s1 + $0x114] sm:$0xf]
  %v99 = vld [vmem:[%s1 + $0x118] sm:$0xf]
  %v100 = vld [vmem:[%s1 + $0x11c] sm:$0xf]
  %v101 = vld [vmem:[%s2] sm:$0x1]
  %v103 = vlaneseq
  %v104 = vshrl.u32 %v103, 7
  %v105 = vsub.s32 0, %v104
  %v106 = vrot.slane %v101, %v105
  %v120 = vunpack.c.l.b16 %v17
  %v121 = vunpack.c.h.b16 %v17
  %v122 = vunpack.c.l.b16 %v18
  %v123 = vunpack.c.h.b16 %v18
  %v124 = vunpack.c.l.b16 %v19
  %v125 = vunpack.c.l.b16 %v20
  %v126 = vunpack.c.h.b16 %v20
  %v127 = vunpack.c.l.b16 %v21
  %v128 = vunpack.c.h.b16 %v21
  %v129 = vunpack.c.l.b16 %v22
  %v130 = vunpack.c.l.b16 %v23
  %v131 = vunpack.c.h.b16 %v23
  %v132 = vunpack.c.l.b16 %v24
  %v133 = vunpack.c.h.b16 %v24
  %v134 = vunpack.c.l.b16 %v25
  %v135 = vunpack.c.l.b16 %v26
  %v136 = vunpack.c.h.b16 %v26
  %v137 = vunpack.c.l.b16 %v27
  %v138 = vunpack.c.h.b16 %v27
  %v139 = vunpack.c.l.b16 %v28
  %v140 = vpack.c.b16 %v125, %v120
  %v141 = vpack.c.b16 %v126, %v121
  %v142 = vpack.c.b16 %v127, %v122
  %v143 = vpack.c.b16 %v128, %v123
  %v144 = vpack.c.b16 %v129, %v124
  %v145 = vpack.c.b16 %v135, %v130
  %v146 = vpack.c.b16 %v136, %v131
  %v147 = vpack.c.b16 %v137, %v132
  %v148 = vpack.c.b16 %v138, %v133
  %v149 = vpack.c.b16 %v139, %v134
  %v230 = vunpack.c.l.b16 %v29
  %v231 = vunpack.c.l.b16 %v30
  %v232 = vunpack.c.l.b16 %v31
  %v233 = vunpack.c.l.b16 %v32
  %v234 = vunpack.c.l.b16 %v33
  %v235 = vunpack.c.l.b16 %v34
  %v236 = vunpack.c.l.b16 %v35
  %v237 = vunpack.c.l.b16 %v36
  %v238 = vunpack.c.l.b16 %v37
  %v239 = vunpack.c.l.b16 %v38
  %v240 = vunpack.c.l.b16 %v39
  %v241 = vunpack.c.l.b16 %v40
  %v242 = vunpack.c.l.b16 %v41
  %v243 = vunpack.c.l.b16 %v42
  %v244 = vunpack.c.l.b16 %v43
  %v245 = vunpack.c.l.b16 %v44
  %v246 = vunpack.c.l.b16 %v45
  %v247 = vunpack.c.l.b16 %v46
  %v248 = vunpack.c.l.b16 %v47
  %v249 = vunpack.c.l.b16 %v48
  %v250 = vunpack.c.l.b16 %v49
  %v251 = vunpack.c.l.b16 %v50
  %v252 = vunpack.c.l.b16 %v51
  %v253 = vunpack.c.l.b16 %v52
  %v254 = vunpack.c.l.b16 %v53
  %v255 = vunpack.c.l.b16 %v54
  %v256 = vunpack.c.l.b16 %v55
  %v257 = vunpack.c.l.b16 %v56
  %v258 = vunpack.c.l.b16 %v57
  %v259 = vunpack.c.l.b16 %v58
  %v260 = vunpack.c.l.b16 %v59
  %v261 = vunpack.c.l.b16 %v60
  %v262 = vunpack.c.l.b16 %v61
  %v263 = vunpack.c.l.b16 %v62
  %v264 = vunpack.c.l.b16 %v63
  %v265 = vunpack.c.l.b16 %v64
  %v266 = vunpack.c.l.b16 %v65
  %v267 = vunpack.c.l.b16 %v66
  %v268 = vunpack.c.l.b16 %v67
  %v269 = vunpack.c.l.b16 %v68
  %v270 = vunpack.c.l.b16 %v69
  %v271 = vunpack.c.l.b16 %v70
  %v272 = vunpack.c.l.b16 %v71
  %v273 = vunpack.c.l.b16 %v72
  %v274 = vunpack.c.l.b16 %v73
  %v275 = vunpack.c.l.b16 %v74
  %v276 = vunpack.c.l.b16 %v75
  %v277 = vunpack.c.l.b16 %v76
  %v278 = vunpack.c.l.b16 %v77
  %v279 = vunpack.c.l.b16 %v78
  %v280 = vunpack.c.l.b16 %v79
  %v281 = vunpack.c.l.b16 %v80
  %v282 = vunpack.c.l.b16 %v81
  %v283 = vunpack.c.l.b16 %v82
  %v284 = vunpack.c.l.b16 %v83
  %v285 = vunpack.c.l.b16 %v84
  %v286 = vunpack.c.l.b16 %v85
  %v287 = vunpack.c.l.b16 %v86
  %v288 = vunpack.c.l.b16 %v87
  %v289 = vunpack.c.l.b16 %v88
  %v290 = vunpack.c.l.b16 %v89
  %v291 = vunpack.c.l.b16 %v90
  %v292 = vunpack.c.l.b16 %v91
  %v293 = vunpack.c.l.b16 %v92
  %v294 = vunpack.c.l.b16 %v93
  %v295 = vunpack.c.l.b16 %v94
  %v296 = vunpack.c.l.b16 %v95
  %v297 = vunpack.c.l.b16 %v96
  %v298 = vunpack.c.l.b16 %v97
  %v299 = vunpack.c.l.b16 %v98
  %v300 = vunpack.c.l.b16 %v99
  %v301 = vunpack.c.l.b16 %v100
  %v302 = vpack.c.b16 %v231, %v230
  %v303 = vpack.c.b16 %v233, %v232
  %v304 = vpack.c.b16 %v235, %v234
  %v305 = vpack.c.b16 %v237, %v236
  %v306 = vpack.c.b16 %v239, %v238
  %v307 = vpack.c.b16 %v241, %v240
  %v308 = vpack.c.b16 %v243, %v242
  %v309 = vpack.c.b16 %v245, %v244
  %v310 = vpack.c.b16 %v247, %v246
  %v311 = vpack.c.b16 %v249, %v248
  %v312 = vpack.c.b16 %v251, %v250
  %v313 = vpack.c.b16 %v253, %v252
  %v314 = vpack.c.b16 %v255, %v254
  %v315 = vpack.c.b16 %v257, %v256
  %v316 = vpack.c.b16 %v259, %v258
  %v317 = vpack.c.b16 %v261, %v260
  %v318 = vpack.c.b16 %v263, %v262
  %v319 = vpack.c.b16 %v265, %v264
  %v320 = vpack.c.b16 %v267, %v266
  %v321 = vpack.c.b16 %v269, %v268
  %v322 = vpack.c.b16 %v271, %v270
  %v323 = vpack.c.b16 %v273, %v272
  %v324 = vpack.c.b16 %v275, %v274
  %v325 = vpack.c.b16 %v277, %v276
  %v326 = vpack.c.b16 %v279, %v278
  %v327 = vpack.c.b16 %v281, %v280
  %v328 = vpack.c.b16 %v283, %v282
  %v329 = vpack.c.b16 %v285, %v284
  %v330 = vpack.c.b16 %v287, %v286
  %v331 = vpack.c.b16 %v289, %v288
  %v332 = vpack.c.b16 %v291, %v290
  %v333 = vpack.c.b16 %v293, %v292
  %v334 = vpack.c.b16 %v295, %v294
  %v335 = vpack.c.b16 %v297, %v296
  %v336 = vpack.c.b16 %v299, %v298
  %v337 = vpack.c.b16 %v301, %v300
  %vm374 = vcmask 523264
  %v376 = vsel %vm374, %v144, 0
  %v379 = vsel %vm374, %v149, 0
  %381 = vmatprep.subr.bf16.mxu0 0
  %382 = vmatpush1.bf16.msra.mxu0 %v302
  %383 = vmatprep.subr.bf16.mxu0 0
  %384 = vmatpush1.bf16.msra.mxu0 %v303
  %385 = vmatprep.subr.bf16.mxu0 0
  %386 = vmatpush1.bf16.msra.mxu0 %v304
  %387 = vmatprep.subr.bf16.mxu0 0
  %388 = vmatpush1.bf16.msra.mxu0 %v305
  %389 = vmatprep.subr.bf16.mxu0 0
  %390 = vmatpush1.bf16.msra.mxu0 %v306
  %391 = vmatprep.subr.bf16.mxu0 0
  %392 = vmatpush1.bf16.msra.mxu0 %v307
  %393 = vmatprep.subr.bf16.mxu0 0
  %394 = vmatpush1.bf16.msra.mxu0 %v308
  %395 = vmatprep.subr.bf16.mxu0 0
  %396 = vmatpush1.bf16.msra.mxu0 %v309
  %397 = vmatprep.subr.bf16.mxu0 0
  %398 = vmatpush1.bf16.msra.mxu0 %v310
  %399 = vmatprep.subr.bf16.mxu0 0
  %400 = vmatpush1.bf16.msra.mxu0 %v311
  %401 = vmatprep.subr.bf16.mxu0 0
  %402 = vmatpush1.bf16.msra.mxu0 %v312
  %403 = vmatprep.subr.bf16.mxu0 0
  %404 = vmatpush1.bf16.msra.mxu0 %v313
  %405 = vmatprep.subr.bf16.mxu0 0
  %406 = vmatpush1.bf16.msra.mxu0 %v314
  %407 = vmatprep.subr.bf16.mxu0 0
  %408 = vmatpush1.bf16.msra.mxu0 %v315
  %409 = vmatprep.subr.bf16.mxu0 0
  %410 = vmatpush1.bf16.msra.mxu0 %v316
  %411 = vmatprep.subr.bf16.mxu0 0
  %412 = vmatpush1.bf16.msra.mxu0 %v317
  %413 = vmatprep.mubr.bf16.mxu0 %v141
  %414 = vmatmul.mubr.bf16.gmra.mrb[0].mxu0 %v140
  %v415 = vpop.f32.mrb[0].mxu0
  %v416 = vadd.f32 %v106, %v415
  %v417 = vpop.f32.mrb[0].mxu0
  %v418 = vpop.f32.mrb[0].mxu0
  %v419 = vadd.f32 %v106, %v418
  %v420 = vpop.f32.mrb[0].mxu0
  %421 = vmatprep.mubr.bf16.mxu0 %v146
  %422 = vmatmul.mubr.bf16.gmra.mrb[0].mxu0 %v145
  %v423 = vpop.f32.mrb[0].mxu0
  %v424 = vadd.f32 %v106, %v423
  %v425 = vpop.f32.mrb[0].mxu0
  %v426 = vpop.f32.mrb[0].mxu0
  %v427 = vadd.f32 %v106, %v426
  %v428 = vpop.f32.mrb[0].mxu0
  %429 = vdwg.mxu0
  %430 = vmatprep.subr.bf16.mxu0 0
  %431 = vmatpush1.bf16.msra.mxu0 %v318
  %432 = vmatprep.subr.bf16.mxu0 0
  %433 = vmatpush1.bf16.msra.mxu0 %v319
  %434 = vmatprep.subr.bf16.mxu0 0
  %435 = vmatpush1.bf16.msra.mxu0 %v320
  %436 = vmatprep.subr.bf16.mxu0 0
  %437 = vmatpush1.bf16.msra.mxu0 %v321
  %438 = vmatprep.subr.bf16.mxu0 0
  %439 = vmatpush1.bf16.msra.mxu0 %v322
  %440 = vmatprep.subr.bf16.mxu0 0
  %441 = vmatpush1.bf16.msra.mxu0 %v323
  %442 = vmatprep.subr.bf16.mxu0 0
  %443 = vmatpush1.bf16.msra.mxu0 %v324
  %444 = vmatprep.subr.bf16.mxu0 0
  %445 = vmatpush1.bf16.msra.mxu0 %v325
  %446 = vmatprep.subr.bf16.mxu0 0
  %447 = vmatpush1.bf16.msra.mxu0 %v326
  %448 = vmatprep.subr.bf16.mxu0 0
  %449 = vmatpush1.bf16.msra.mxu0 %v327
  %450 = vmatprep.subr.bf16.mxu0 0
  %451 = vmatpush1.bf16.msra.mxu0 %v328
  %452 = vmatprep.subr.bf16.mxu0 0
  %453 = vmatpush1.bf16.msra.mxu0 %v329
  %454 = vmatprep.subr.bf16.mxu0 0
  %455 = vmatpush1.bf16.msra.mxu0 %v330
  %456 = vmatprep.subr.bf16.mxu0 0
  %457 = vmatpush1.bf16.msra.mxu0 %v331
  %458 = vmatprep.subr.bf16.mxu0 0
  %459 = vmatpush1.bf16.msra.mxu0 %v332
  %460 = vmatprep.subr.bf16.mxu0 0
  %461 = vmatpush1.bf16.msra.mxu0 %v333
  %462 = vmatprep.mubr.bf16.mxu0 %v143
  %463 = vmatmul.mubr.bf16.gmra.mrb[0].mxu0 %v142
  %v464 = vpop.f32.mrb[0].mxu0
  %v465 = vadd.f32 %v416, %v464
  %v466 = vpop.f32.mrb[0].mxu0
  %v467 = vpop.f32.mrb[0].mxu0
  %v468 = vadd.f32 %v419, %v467
  %v469 = vpop.f32.mrb[0].mxu0
  %470 = vmatprep.mubr.bf16.mxu0 %v148
  %471 = vmatmul.mubr.bf16.gmra.mrb[0].mxu0 %v147
  %v472 = vpop.f32.mrb[0].mxu0
  %v473 = vadd.f32 %v424, %v472
  %v474 = vpop.f32.mrb[0].mxu0
  %v475 = vpop.f32.mrb[0].mxu0
  %v476 = vadd.f32 %v427, %v475
  %v477 = vpop.f32.mrb[0].mxu0
  %478 = vdwg.mxu0
  %479 = vmatprep.subr.bf16.mxu0 0
  %480 = vmatpush1.bf16.msra.mxu0 %v334
  %481 = vmatprep.subr.bf16.mxu0 0
  %482 = vmatpush1.bf16.msra.mxu0 %v335
  %483 = vmatprep.subr.bf16.mxu0 0
  %484 = vmatpush1.bf16.msra.mxu0 %v336
  %485 = vmatprep.subr.bf16.mxu0 0
  %486 = vmatpush1.bf16.msra.mxu0 %v337
  %487 = vmatprep.subr.bf16.mxu0 0
  %488 = vmatpush1.bf16.msra.mxu0 0
  %489 = vmatprep.subr.bf16.mxu0 0
  %490 = vmatpush1.bf16.msra.mxu0 0
  %491 = vmatprep.subr.bf16.mxu0 0
  %492 = vmatpush1.bf16.msra.mxu0 0
  %493 = vmatprep.subr.bf16.mxu0 0
  %494 = vmatpush1.bf16.msra.mxu0 0
  %495 = vmatprep.subr.bf16.mxu0 0
  %496 = vmatpush1.bf16.msra.mxu0 0
  %497 = vmatprep.subr.bf16.mxu0 0
  %498 = vmatpush1.bf16.msra.mxu0 0
  %499 = vmatprep.subr.bf16.mxu0 0
  %500 = vmatpush1.bf16.msra.mxu0 0
  %501 = vmatprep.subr.bf16.mxu0 0
  %502 = vmatpush1.bf16.msra.mxu0 0
  %503 = vmatprep.subr.bf16.mxu0 0
  %504 = vmatpush1.bf16.msra.mxu0 0
  %505 = vmatprep.subr.bf16.mxu0 0
  %506 = vmatpush1.bf16.msra.mxu0 0
  %507 = vmatprep.subr.bf16.mxu0 0
  %508 = vmatpush1.bf16.msra.mxu0 0
  %509 = vmatprep.subr.bf16.mxu0 0
  %510 = vmatpush1.bf16.msra.mxu0 0
  %511 = vmatprep.mubr.bf16.mxu0 0
  %512 = vmatmul.mubr.bf16.gmra.mrb[0].mxu0 %v376
  %v513 = vpop.f32.mrb[0].mxu0
  %v514 = vadd.f32 %v465, %v513
  %v515 = vpop.f32.mrb[0].mxu0
  %v516 = vpop.f32.mrb[0].mxu0
  %v517 = vadd.f32 %v468, %v516
  %v518 = vpop.f32.mrb[0].mxu0
  %519 = vmatprep.mubr.bf16.mxu0 0
  %520 = vmatmul.mubr.bf16.gmra.mrb[0].mxu0 %v379
  %v521 = vpop.f32.mrb[0].mxu0
  %v522 = vadd.f32 %v473, %v521
  %v523 = vpop.f32.mrb[0].mxu0
  %v524 = vpop.f32.mrb[0].mxu0
  %v525 = vadd.f32 %v476, %v524
  %v526 = vpop.f32.mrb[0].mxu0
  %527 = vdwg.mxu0
  %528 = vst [vmem:[%s3] sm:$0xff] %v514
  %529 = vst [vmem:[%s3 + $0x8] sm:$0xff] %v517
  %530 = vst [vmem:[%s3 + $0x10] sm:$0xff] %v522
  %531 = vst [vmem:[%s3 + $0x18] sm:$0xff] %v525
  %v532 = vmul.f32 %v514, %v514
  %v533 = vmul.f32 %v517, %v517
  %v534 = vmul.f32 %v522, %v522
  %v535 = vmul.f32 %v525, %v525
  %v536 = vadd.f32 %v514, %v517
  %v537 = vadd.f32 %v536, %v522
  %v538 = vadd.f32 %v537, %v525
  %v539 = vrot.slane %v538, 4
  %v540 = vadd.f32 %v538, %v539
  %v541 = vrot.slane %v540, 2
  %v542 = vadd.f32 %v540, %v541
  %v543 = vrot.slane %v542, 1
  %v544 = vadd.f32 %v542, %v543
  %v545 = vadd.f32 %v532, %v533
  %v546 = vadd.f32 %v545, %v534
  %v547 = vadd.f32 %v546, %v535
  %v548 = vrot.slane %v547, 4
  %v549 = vadd.f32 %v547, %v548
  %v550 = vrot.slane %v549, 2
  %v551 = vadd.f32 %v549, %v550
  %v552 = vrot.slane %v551, 1
  %v553 = vadd.f32 %v551, %v552
  %v554 = vlaneseq
  %v555 = vshrl.u32 %v554, 7
  %vm556 = vcmp.eq.s32.totalorder %v555, 0
  %vm557 = vcmp.eq.s32.totalorder %v555, 1
  %v558 = vsel %vm557, 1, 0
  %vm559 = vcmp.eq.s32.totalorder %v558, 1
  %v560 = vsel %vm559, %v553, 0.0
  %v561 = vsel %vm556, 1, 0
  %vm562 = vcmp.eq.s32.totalorder %v561, 1
  %v563 = vsel %vm562, %v544, %v560
  %564 = vst [vmem:[%s4] sm:$0xff] %v563
  // Predicated region
  $region14: #{generator_forward.11} parent=0 // pred_check
    _
  $region15: #{generator_forward.11} parent=0 // pred_check_branch
    %566 = sbr.rel (0) target = $region17
  $region16: #{generator_forward.11} parent=0 // pred_region
    _
  $region17: #{generator_forward.11} parent=0 // pred_fallthru
    _
  // Predicated region
  $region18: #{generator_forward.11} parent=0 // pred_check
    _
  $region19: #{generator_forward.11} parent=0 // pred_check_branch
    %568 = sbr.rel (0) target = $region21
  $region20: #{generator_forward.11} parent=0 // pred_region
    _
  $region21: #{generator_forward.11} parent=0 // pred_fallthru
    _
  // Predicated region
  $region22: #{generator_forward.11} parent=0 // pred_check
    _
  $region23: #{generator_forward.11} parent=0 // pred_check_branch
    %570 = sbr.rel (0) target = $region25
  $region24: #{generator_forward.11} parent=0 // pred_region
    _
  $region25: #{generator_forward.11} parent=0 // pred_fallthru
    _
  // Predicated region
  $region26: #{generator_forward.11} parent=0 // pred_check
    _
  $region27: #{generator_forward.11} parent=0 // pred_check_branch
    %572 = sbr.rel (0) target = $region29
  $region28: #{generator_forward.11} parent=0 // pred_region
    _
  $region29: #{generator_forward.11} parent=0 // pred_fallthru
    _

// kernel: tile.98
$region0: #{tile.98}
  #allocation0 [shape = 's32[1]{0}', space=sflag, size = 0x4, scoped, tag = 'scoped memory for tile.98']
  %s0 = inlined_call_operand.vmem [shape: f32[16], index: 0, kind: input, shape index: {}]
  %s1 = inlined_call_operand.vmem [shape: f32[4,16], index: 1, kind: output, shape index: {}]
  // Predicated region
  $region2: #{tile.98} parent=0 // pred_check
    _
  $region3: #{tile.98} parent=0 // pred_check_branch
    %3 = sbr.rel (0) target = $region5
  $region4: #{tile.98} parent=0 // pred_region
    _
  $region5: #{tile.98} parent=0 // pred_fallthru
    _
  %v4 = vld [vmem:[%s0] ss:$0 sm:$0xff]
  %5 = vst [vmem:[%s1] sm:$0xf] %v4

// kernel: tile.99
$region0: #{tile.99}
  %s0 = inlined_call_operand.vmem [shape: f32[4,16], index: 0, kind: input, shape index: {}]
  %s1 = inlined_call_operand.vmem [shape: f32[64], index: 1, kind: output, shape index: {}]
  $region1: #{tile.99} parent=0
    #allocation0 [shape = 'u8[4096]{0}', space=vmem, size = 0x1000, scoped, tag = 'scoped mem for output reshape']
    #allocation1 [shape = 'u8[4096]{0}', space=vmem, size = 0x1000, scoped, tag = 'scoped mem for input reshape']
    %s3 = sshllo.u32 0, 4
    %v4 = vld [vmem:[%s0] sm:%s3]
    %5 = vst [vmem:[#allocation1] sm:%s3] %v4
    %v6 = vld [vmem:[#allocation1] sm:$0x1]
    %vm7 = vcmask 130048
    %8 = vst.msk [vmem:[#allocation0] sm:$0x1] %vm7, %v6
    %s9 = scalar_lea.vmem [#allocation1], 3
    %v10 = vld [vmem:[%s9] sm:$0x1]
    %11 = vrot.lane.b32.xlu0 %v10, 48
    %v12 = vpop.permute.xlu0 %11
    %vm13 = vcmask 523648
    %14 = vst.msk [vmem:[#allocation0] sm:$0x1] %vm13, %v12
    %s15 = scalar_lea.vmem [#allocation1], 2
    %v16 = vld [vmem:[%s15] sm:$0x1]
    %17 = vrot.lane.b32.xlu0 %v16, 32
    %v18 = vpop.permute.xlu0 %17
    %vm19 = vcmask 392448
    %20 = vst.msk [vmem:[#allocation0] sm:$0x1] %vm19, %v18
    %s21 = scalar_lea.vmem [#allocation1], 1
    %v22 = vld [vmem:[%s21] sm:$0x1]
    %23 = vrot.lane.b32.xlu0 %v22, 16
    %v24 = vpop.permute.xlu0 %23
    %vm25 = vcmask 261248
    %26 = vst.msk [vmem:[#allocation0] sm:$0x1] %vm25, %v24
    %s28 = sshllo.u32 0, 1
    %v30 = vld [vmem:[#allocation0] sm:%s28]
    %s31 = sshllo.u32 0, 1
    %32 = vst [vmem:[%s1] sm:%s31] %v30

// kernel: generator_forward.13
$region0: #{generator_forward.13}
  #allocation0 [shape = 'u32[]', space=smem, size = 0x4, offset = 0x4, fixed_abs, tag = 'smem constant byte address 0x4 - core index']
  #allocation1 [shape = 'u32[144,128]{1,0:T(1,128)}', space=vmem, size = 0x12000, scoped, tag = 'internal scratch']
  %s0 = inlined_call_operand.vmem [shape: bf16[128,288], index: 0, kind: input, shape index: {}]
  %s1 = inlined_call_operand.vmem [shape: bf16[288,128], index: 1, kind: input, shape index: {}]
  %s2 = inlined_call_operand.vmem [shape: f32[1,128], index: 2, kind: input, shape index: {}]
  %s3 = inlined_call_operand.vmem [shape: f32[128,128], index: 3, kind: output, shape index: {0}]
  %s4 = inlined_call_operand.vmem [shape: f32[1,8,128], index: 4, kind: output, shape index: {1}]
  %5 = xla_tuple %s3, %s4
  %s6 = sld [smem:[#allocation0]]
  $region30: #{generator_forward.13} parent=0
    _
  %s8 = ssub.s32 1, %s6
  %s9 = scalar_select 0, %s8, %s6
  // Predicated region
  $region2: #{generator_forward.13} parent=0 // pred_check
    _
  $region3: #{generator_forward.13} parent=0 // pred_check_branch
    %11 = sbr.rel (0) target = $region5
  $region4: #{generator_forward.13} parent=0 // pred_region
    _
  $region5: #{generator_forward.13} parent=0 // pred_fallthru
    _
  // Predicated region
  $region6: #{generator_forward.13} parent=0 // pred_check
    _
  $region7: #{generator_forward.13} parent=0 // pred_check_branch
    %13 = sbr.rel (0) target = $region9
  $region8: #{generator_forward.13} parent=0 // pred_region
    _
  $region9: #{generator_forward.13} parent=0 // pred_fallthru
    _
  // Predicated region
  $region10: #{generator_forward.13} parent=0 // pred_check
    _
  $region11: #{generator_forward.13} parent=0 // pred_check_branch
    %15 = sbr.rel (0) target = $region13
  $region12: #{generator_forward.13} parent=0 // pred_region
    _
  $region13: #{generator_forward.13} parent=0 // pred_fallthru
    _
  %v17 = vld [vmem:[%s0] sm:$0xff]
  %v18 = vld [vmem:[%s0 + $0x8] sm:$0xf]
  %v19 = vld [vmem:[%s0 + $0xc] sm:$0xff]
  %v20 = vld [vmem:[%s0 + $0x14] sm:$0xf]
  %v21 = vld [vmem:[%s0 + $0x18] sm:$0xff]
  %v22 = vld [vmem:[%s0 + $0x20] sm:$0xf]
  %v23 = vld [vmem:[%s0 + $0x24] sm:$0xff]
  %v24 = vld [vmem:[%s0 + $0x2c] sm:$0xf]
  %v25 = vld [vmem:[%s0 + $0x30] sm:$0xff]
  %v26 = vld [vmem:[%s0 + $0x38] sm:$0xf]
  %v27 = vld [vmem:[%s0 + $0x3c] sm:$0xff]
  %v28 = vld [vmem:[%s0 + $0x44] sm:$0xf]
  %v29 = vld [vmem:[%s0 + $0x48] sm:$0xff]
  %v30 = vld [vmem:[%s0 + $0x50] sm:$0xf]
  %v31 = vld [vmem:[%s0 + $0x54] sm:$0xff]
  %v32 = vld [vmem:[%s0 + $0x5c] sm:$0xf]
  %v33 = vld [vmem:[%s0 + $0x60] sm:$0xff]
  %v34 = vld [vmem:[%s0 + $0x68] sm:$0xf]
  %v35 = vld [vmem:[%s0 + $0x6c] sm:$0xff]
  %v36 = vld [vmem:[%s0 + $0x74] sm:$0xf]
  %v37 = vld [vmem:[%s0 + $0x78] sm:$0xff]
  %v38 = vld [vmem:[%s0 + $0x80] sm:$0xf]
  %v39 = vld [vmem:[%s0 + $0x84] sm:$0xff]
  %v40 = vld [vmem:[%s0 + $0x8c] sm:$0xf]
  %v41 = vld [vmem:[%s0 + $0x90] sm:$0xff]
  %v42 = vld [vmem:[%s0 + $0x98] sm:$0xf]
  %v43 = vld [vmem:[%s0 + $0x9c] sm:$0xff]
  %v44 = vld [vmem:[%s0 + $0xa4] sm:$0xf]
  %v45 = vld [vmem:[%s0 + $0xa8] sm:$0xff]
  %v46 = vld [vmem:[%s0 + $0xb0] sm:$0xf]
  %v47 = vld [vmem:[%s0 + $0xb4] sm:$0xff]
  %v48 = vld [vmem:[%s0 + $0xbc] sm:$0xf]
  %v49 = vld [vmem:[%s1] sm:$0xf]
  %v50 = vld [vmem:[%s1 + $0x4] sm:$0xf]
  %v51 = vld [vmem:[%s1 + $0x8] sm:$0xf]
  %v52 = vld [vmem:[%s1 + $0xc] sm:$0xf]
  %v53 = vld [vmem:[%s1 + $0x10] sm:$0xf]
  %v54 = vld [vmem:[%s1 + $0x14] sm:$0xf]
  %v55 = vld [vmem:[%s1 + $0x18] sm:$0xf]
  %v56 = vld [vmem:[%s1 + $0x1c] sm:$0xf]
  %v57 = vld [vmem:[%s1 + $0x20] sm:$0xf]
  %v58 = vld [vmem:[%s1 + $0x24] sm:$0xf]
  %v59 = vld [vmem:[%s1 + $0x28] sm:$0xf]
  %v60 = vld [vmem:[%s1 + $0x2c] sm:$0xf]
  %v61 = vld [vmem:[%s1 + $0x30] sm:$0xf]
  %v62 = vld [vmem:[%s1 + $0x34] sm:$0xf]
  %v63 = vld [vmem:[%s1 + $0x38] sm:$0xf]
  %v64 = vld [vmem:[%s1 + $0x3c] sm:$0xf]
  %v65 = vld [vmem:[%s1 + $0x40] sm:$0xf]
  %v66 = vld [vmem:[%s1 + $0x44] sm:$0xf]
  %v67 = vld [vmem:[%s1 + $0x48] sm:$0xf]
  %v68 = vld [vmem:[%s1 + $0x4c] sm:$0xf]
  %v69 = vld [vmem:[%s1 + $0x50] sm:$0xf]
  %v70 = vld [vmem:[%s1 + $0x54] sm:$0xf]
  %v71 = vld [vmem:[%s1 + $0x58] sm:$0xf]
  %v72 = vld [vmem:[%s1 + $0x5c] sm:$0xf]
  %v73 = vld [vmem:[%s1 + $0x60] sm:$0xf]
  %v74 = vld [vmem:[%s1 + $0x64] sm:$0xf]
  %v75 = vld [vmem:[%s1 + $0x68] sm:$0xf]
  %v76 = vld [vmem:[%s1 + $0x6c] sm:$0xf]
  %v77 = vld [vmem:[%s1 + $0x70] sm:$0xf]
  %v78 = vld [vmem:[%s1 + $0x74] sm:$0xf]
  %v79 = vld [vmem:[%s1 + $0x78] sm:$0xf]
  %v80 = vld [vmem:[%s1 + $0x7c] sm:$0xf]
  %v81 = vld [vmem:[%s1 + $0x80] sm:$0xf]
  %v82 = vld [vmem:[%s1 + $0x84] sm:$0xf]
  %v83 = vld [vmem:[%s1 + $0x88] sm:$0xf]
  %v84 = vld [vmem:[%s1 + $0x8c] sm:$0xf]
  %v85 = vld [vmem:[%s2] sm:$0x1]
  %v87 = vlaneseq
  %v88 = vshrl.u32 %v87, 7
  %v89 = vsub.s32 0, %v88
  %v90 = vrot.slane %v85, %v89
  %v124 = vunpack.c.l.b16 %v17
  %v125 = vunpack.c.h.b16 %v17
  %v126 = vunpack.c.l.b16 %v18
  %v127 = vunpack.c.l.b16 %v19
  %v128 = vunpack.c.h.b16 %v19
  %v129 = vunpack.c.l.b16 %v20
  %v130 = vunpack.c.l.b16 %v21
  %v131 = vunpack.c.h.b16 %v21
  %v132 = vunpack.c.l.b16 %v22
  %v133 = vunpack.c.l.b16 %v23
  %v134 = vunpack.c.h.b16 %v23
  %v135 = vunpack.c.l.b16 %v24
  %v136 = vunpack.c.l.b16 %v25
  %v137 = vunpack.c.h.b16 %v25
  %v138 = vunpack.c.l.b16 %v26
  %v139 = vunpack.c.l.b16 %v27
  %v140 = vunpack.c.h.b16 %v27
  %v141 = vunpack.c.l.b16 %v28
  %v142 = vunpack.c.l.b16 %v29
  %v143 = vunpack.c.h.b16 %v29
  %v144 = vunpack.c.l.b16 %v30
  %v145 = vunpack.c.l.b16 %v31
  %v146 = vunpack.c.h.b16 %v31
  %v147 = vunpack.c.l.b16 %v32
  %v148 = vunpack.c.l.b16 %v33
  %v149 = vunpack.c.h.b16 %v33
  %v150 = vunpack.c.l.b16 %v34
  %v151 = vunpack.c.l.b16 %v35
  %v152 = vunpack.c.h.b16 %v35
  %v153 = vunpack.c.l.b16 %v36
  %v154 = vunpack.c.l.b16 %v37
  %v155 = vunpack.c.h.b16 %v37
  %v156 = vunpack.c.l.b16 %v38
  %v157 = vunpack.c.l.b16 %v39
  %v158 = vunpack.c.h.b16 %v39
  %v159 = vunpack.c.l.b16 %v40
  %v160 = vunpack.c.l.b16 %v41
  %v161 = vunpack.c.h.b16 %v41
  %v162 = vunpack.c.l.b16 %v42
  %v163 = vunpack.c.l.b16 %v43
  %v164 = vunpack.c.h.b16 %v43
  %v165 = vunpack.c.l.b16 %v44
  %v166 = vunpack.c.l.b16 %v45
  %v167 = vunpack.c.h.b16 %v45
  %v168 = vunpack.c.l.b16 %v46
  %v169 = vunpack.c.l.b16 %v47
  %v170 = vunpack.c.h.b16 %v47
  %v171 = vunpack.c.l.b16 %v48
  %v172 = vpack.c.b16 %v127, %v124
  %v173 = vpack.c.b16 %v128, %v125
  %v174 = vpack.c.b16 %v129, %v126
  %v175 = vpack.c.b16 %v133, %v130
  %v176 = vpack.c.b16 %v134, %v131
  %v177 = vpack.c.b16 %v135, %v132
  %v178 = vpack.c.b16 %v139, %v136
  %v179 = vpack.c.b16 %v140, %v137
  %v180 = vpack.c.b16 %v141, %v138
  %v181 = vpack.c.b16 %v145, %v142
  %v182 = vpack.c.b16 %v146, %v143
  %v183 = vpack.c.b16 %v147, %v144
  %v184 = vpack.c.b16 %v151, %v148
  %v185 = vpack.c.b16 %v152, %v149
  %v186 = vpack.c.b16 %v153, %v150
  %v187 = vpack.c.b16 %v157, %v154
  %v188 = vpack.c.b16 %v158, %v155
  %v189 = vpack.c.b16 %v159, %v156
  %v190 = vpack.c.b16 %v163, %v160
  %v191 = vpack.c.b16 %v164, %v161
  %v192 = vpack.c.b16 %v165, %v162
  %v193 = vpack.c.b16 %v169, %v166
  %v194 = vpack.c.b16 %v170, %v167
  %v195 = vpack.c.b16 %v171, %v168
  %v248 = vunpack.c.l.b16 %v49
  %v249 = vunpack.c.l.b16 %v50
  %v250 = vunpack.c.l.b16 %v51
  %v251 = vunpack.c.l.b16 %v52
  %v252 = vunpack.c.l.b16 %v53
  %v253 = vunpack.c.l.b16 %v54
  %v254 = vunpack.c.l.b16 %v55
  %v255 = vunpack.c.l.b16 %v56
  %v256 = vunpack.c.l.b16 %v57
  %v257 = vunpack.c.l.b16 %v58
  %v258 = vunpack.c.l.b16 %v59
  %v259 = vunpack.c.l.b16 %v60
  %v260 = vunpack.c.l.b16 %v61
  %v261 = vunpack.c.l.b16 %v62
  %v262 = vunpack.c.l.b16 %v63
  %v263 = vunpack.c.l.b16 %v64
  %v264 = vunpack.c.l.b16 %v65
  %v265 = vunpack.c.l.b16 %v66
  %v266 = vunpack.c.l.b16 %v67
  %v267 = vunpack.c.l.b16 %v68
  %v268 = vunpack.c.l.b16 %v69
  %v269 = vunpack.c.l.b16 %v70
  %v270 = vunpack.c.l.b16 %v71
  %v271 = vunpack.c.l.b16 %v72
  %v272 = vunpack.c.l.b16 %v73
  %v273 = vunpack.c.l.b16 %v74
  %v274 = vunpack.c.l.b16 %v75
  %v275 = vunpack.c.l.b16 %v76
  %v276 = vunpack.c.l.b16 %v77
  %v277 = vunpack.c.l.b16 %v78
  %v278 = vunpack.c.l.b16 %v79
  %v279 = vunpack.c.l.b16 %v80
  %v280 = vunpack.c.l.b16 %v81
  %v281 = vunpack.c.l.b16 %v82
  %v282 = vunpack.c.l.b16 %v83
  %v283 = vunpack.c.l.b16 %v84
  %v284 = vpack.c.b16 %v249, %v248
  %v285 = vpack.c.b16 %v251, %v250
  %v286 = vpack.c.b16 %v253, %v252
  %v287 = vpack.c.b16 %v255, %v254
  %v288 = vpack.c.b16 %v257, %v256
  %v289 = vpack.c.b16 %v259, %v258
  %v290 = vpack.c.b16 %v261, %v260
  %v291 = vpack.c.b16 %v263, %v262
  %v292 = vpack.c.b16 %v265, %v264
  %v293 = vpack.c.b16 %v267, %v266
  %v294 = vpack.c.b16 %v269, %v268
  %v295 = vpack.c.b16 %v271, %v270
  %v296 = vpack.c.b16 %v273, %v272
  %v297 = vpack.c.b16 %v275, %v274
  %v298 = vpack.c.b16 %v277, %v276
  %v299 = vpack.c.b16 %v279, %v278
  %v300 = vpack.c.b16 %v281, %v280
  %v301 = vpack.c.b16 %v283, %v282
  %vm320 = vcmask 261120
  %v322 = vsel %vm320, %v174, 0
  %v325 = vsel %vm320, %v177, 0
  %v328 = vsel %vm320, %v180, 0
  %v331 = vsel %vm320, %v183, 0
  %v334 = vsel %vm320, %v186, 0
  %v337 = vsel %vm320, %v189, 0
  %v340 = vsel %vm320, %v192, 0
  %v343 = vsel %vm320, %v195, 0
  %345 = vmatprep.subr.bf16.mxu0 0
  %346 = vmatpush1.bf16.msra.mxu0 %v284
  %347 = vmatprep.subr.bf16.mxu0 0
  %348 = vmatpush1.bf16.msra.mxu0 %v285
  %349 = vmatprep.subr.bf16.mxu0 0
  %350 = vmatpush1.bf16.msra.mxu0 %v286
  %351 = vmatprep.subr.bf16.mxu0 0
  %352 = vmatpush1.bf16.msra.mxu0 %v287
  %353 = vmatprep.subr.bf16.mxu0 0
  %354 = vmatpush1.bf16.msra.mxu0 %v288
  %355 = vmatprep.subr.bf16.mxu0 0
  %356 = vmatpush1.bf16.msra.mxu0 %v289
  %357 = vmatprep.subr.bf16.mxu0 0
  %358 = vmatpush1.bf16.msra.mxu0 %v290
  %359 = vmatprep.subr.bf16.mxu0 0
  %360 = vmatpush1.bf16.msra.mxu0 %v291
  %361 = vmatprep.subr.bf16.mxu0 0
  %362 = vmatpush1.bf16.msra.mxu0 %v292
  %363 = vmatprep.subr.bf16.mxu0 0
  %364 = vmatpush1.bf16.msra.mxu0 %v293
  %365 = vmatprep.subr.bf16.mxu0 0
  %366 = vmatpush1.bf16.msra.mxu0 %v294
  %367 = vmatprep.subr.bf16.mxu0 0
  %368 = vmatpush1.bf16.msra.mxu0 %v295
  %369 = vmatprep.subr.bf16.mxu0 0
  %370 = vmatpush1.bf16.msra.mxu0 %v296
  %371 = vmatprep.subr.bf16.mxu0 0
  %372 = vmatpush1.bf16.msra.mxu0 %v297
  %373 = vmatprep.subr.bf16.mxu0 0
  %374 = vmatpush1.bf16.msra.mxu0 %v298
  %375 = vmatprep.subr.bf16.mxu0 0
  %376 = vmatpush1.bf16.msra.mxu0 %v299
  %377 = vmatprep.mubr.bf16.mxu0 %v173
  %378 = vmatmul.mubr.bf16.gmra.mrb[0].mxu0 %v172
  %v379 = vpop.f32.mrb[0].mxu0
  %v380 = vadd.f32 %v90, %v379
  %v381 = vpop.f32.mrb[0].mxu0
  %v382 = vpop.f32.mrb[0].mxu0
  %v383 = vadd.f32 %v90, %v382
  %v384 = vpop.f32.mrb[0].mxu0
  %385 = vmatprep.mubr.bf16.mxu0 %v176
  %386 = vmatmul.mubr.bf16.gmra.mrb[0].mxu0 %v175
  %v387 = vpop.f32.mrb[0].mxu0
  %v388 = vadd.f32 %v90, %v387
  %v389 = vpop.f32.mrb[0].mxu0
  %v390 = vpop.f32.mrb[0].mxu0
  %v391 = vadd.f32 %v90, %v390
  %v392 = vpop.f32.mrb[0].mxu0
  %393 = vmatprep.mubr.bf16.mxu0 %v179
  %394 = vmatmul.mubr.bf16.gmra.mrb[0].mxu0 %v178
  %v395 = vpop.f32.mrb[0].mxu0
  %v396 = vadd.f32 %v90, %v395
  %v397 = vpop.f32.mrb[0].mxu0
  %v398 = vpop.f32.mrb[0].mxu0
  %v399 = vadd.f32 %v90, %v398
  %v400 = vpop.f32.mrb[0].mxu0
  %401 = vmatprep.mubr.bf16.mxu0 %v182
  %402 = vmatmul.mubr.bf16.gmra.mrb[0].mxu0 %v181
  %v403 = vpop.f32.mrb[0].mxu0
  %v404 = vadd.f32 %v90, %v403
  %v405 = vpop.f32.mrb[0].mxu0
  %v406 = vpop.f32.mrb[0].mxu0
  %v407 = vadd.f32 %v90, %v406
  %v408 = vpop.f32.mrb[0].mxu0
  %409 = vmatprep.mubr.bf16.mxu0 %v185
  %410 = vmatmul.mubr.bf16.gmra.mrb[0].mxu0 %v184
  %v411 = vpop.f32.mrb[0].mxu0
  %v412 = vadd.f32 %v90, %v411
  %v413 = vpop.f32.mrb[0].mxu0
  %v414 = vpop.f32.mrb[0].mxu0
  %v415 = vadd.f32 %v90, %v414
  %v416 = vpop.f32.mrb[0].mxu0
  %417 = vmatprep.mubr.bf16.mxu0 %v188
  %418 = vmatmul.mubr.bf16.gmra.mrb[0].mxu0 %v187
  %v419 = vpop.f32.mrb[0].mxu0
  %v420 = vadd.f32 %v90, %v419
  %v421 = vpop.f32.mrb[0].mxu0
  %v422 = vpop.f32.mrb[0].mxu0
  %v423 = vadd.f32 %v90, %v422
  %v424 = vpop.f32.mrb[0].mxu0
  %425 = vmatprep.mubr.bf16.mxu0 %v191
  %426 = vmatmul.mubr.bf16.gmra.mrb[0].mxu0 %v190
  %v427 = vpop.f32.mrb[0].mxu0
  %v428 = vadd.f32 %v90, %v427
  %v429 = vpop.f32.mrb[0].mxu0
  %v430 = vpop.f32.mrb[0].mxu0
  %v431 = vadd.f32 %v90, %v430
  %v432 = vpop.f32.mrb[0].mxu0
  %433 = vmatprep.mubr.bf16.mxu0 %v194
  %434 = vmatmul.mubr.bf16.gmra.mrb[0].mxu0 %v193
  %v435 = vpop.f32.mrb[0].mxu0
  %v436 = vadd.f32 %v90, %v435
  %v437 = vpop.f32.mrb[0].mxu0
  %v438 = vpop.f32.mrb[0].mxu0
  %v439 = vadd.f32 %v90, %v438
  %v440 = vpop.f32.mrb[0].mxu0
  %441 = vdwg.mxu0
  %442 = vmatprep.subr.bf16.mxu0 0
  %443 = vmatpush1.bf16.msra.mxu0 %v300
  %444 = vmatprep.subr.bf16.mxu0 0
  %445 = vmatpush1.bf16.msra.mxu0 %v301
  %446 = vmatprep.subr.bf16.mxu0 0
  %447 = vmatpush1.bf16.msra.mxu0 0
  %448 = vmatprep.subr.bf16.mxu0 0
  %449 = vmatpush1.bf16.msra.mxu0 0
  %450 = vmatprep.subr.bf16.mxu0 0
  %451 = vmatpush1.bf16.msra.mxu0 0
  %452 = vmatprep.subr.bf16.mxu0 0
  %453 = vmatpush1.bf16.msra.mxu0 0
  %454 = vmatprep.subr.bf16.mxu0 0
  %455 = vmatpush1.bf16.msra.mxu0 0
  %456 = vmatprep.subr.bf16.mxu0 0
  %457 = vmatpush1.bf16.msra.mxu0 0
  %458 = vmatprep.subr.bf16.mxu0 0
  %459 = vmatpush1.bf16.msra.mxu0 0
  %460 = vmatprep.subr.bf16.mxu0 0
  %461 = vmatpush1.bf16.msra.mxu0 0
  %462 = vmatprep.subr.bf16.mxu0 0
  %463 = vmatpush1.bf16.msra.mxu0 0
  %464 = vmatprep.subr.bf16.mxu0 0
  %465 = vmatpush1.bf16.msra.mxu0 0
  %466 = vmatprep.subr.bf16.mxu0 0
  %467 = vmatpush1.bf16.msra.mxu0 0
  %468 = vmatprep.subr.bf16.mxu0 0
  %469 = vmatpush1.bf16.msra.mxu0 0
  %470 = vmatprep.subr.bf16.mxu0 0
  %471 = vmatpush1.bf16.msra.mxu0 0
  %472 = vmatprep.subr.bf16.mxu0 0
  %473 = vmatpush1.bf16.msra.mxu0 0
  %474 = vmatprep.mubr.bf16.mxu0 0
  %475 = vmatmul.mubr.bf16.gmra.mrb[0].mxu0 %v322
  %v476 = vpop.f32.mrb[0].mxu0
  %v477 = vadd.f32 %v380, %v476
  %v478 = vpop.f32.mrb[0].mxu0
  %v479 = vpop.f32.mrb[0].mxu0
  %v480 = vadd.f32 %v383, %v479
  %v481 = vpop.f32.mrb[0].mxu0
  %482 = vmatprep.mubr.bf16.mxu0 0
  %483 = vmatmul.mubr.bf16.gmra.mrb[0].mxu0 %v325
  %v484 = vpop.f32.mrb[0].mxu0
  %v485 = vadd.f32 %v388, %v484
  %v486 = vpop.f32.mrb[0].mxu0
  %v487 = vpop.f32.mrb[0].mxu0
  %v488 = vadd.f32 %v391, %v487
  %v489 = vpop.f32.mrb[0].mxu0
  %490 = vmatprep.mubr.bf16.mxu0 0
  %491 = vmatmul.mubr.bf16.gmra.mrb[0].mxu0 %v328
  %v492 = vpop.f32.mrb[0].mxu0
  %v493 = vadd.f32 %v396, %v492
  %v494 = vpop.f32.mrb[0].mxu0
  %v495 = vpop.f32.mrb[0].mxu0
  %v496 = vadd.f32 %v399, %v495
  %v497 = vpop.f32.mrb[0].mxu0
  %498 = vmatprep.mubr.bf16.mxu0 0
  %499 = vmatmul.mubr.bf16.gmra.mrb[0].mxu0 %v331
  %v500 = vpop.f32.mrb[0].mxu0
  %v501 = vadd.f32 %v404, %v500
  %v502 = vpop.f32.mrb[0].mxu0
  %v503 = vpop.f32.mrb[0].mxu0
  %v504 = vadd.f32 %v407, %v503
  %v505 = vpop.f32.mrb[0].mxu0
  %506 = vmatprep.mubr.bf16.mxu0 0
  %507 = vmatmul.mubr.bf16.gmra.mrb[0].mxu0 %v334
  %v508 = vpop.f32.mrb[0].mxu0
  %v509 = vadd.f32 %v412, %v508
  %v510 = vpop.f32.mrb[0].mxu0
  %v511 = vpop.f32.mrb[0].mxu0
  %v512 = vadd.f32 %v415, %v511
  %v513 = vpop.f32.mrb[0].mxu0
  %514 = vmatprep.mubr.bf16.mxu0 0
  %515 = vmatmul.mubr.bf16.gmra.mrb[0].mxu0 %v337
  %v516 = vpop.f32.mrb[0].mxu0
  %v517 = vadd.f32 %v420, %v516
  %v518 = vpop.f32.mrb[0].mxu0
  %v519 = vpop.f32.mrb[0].mxu0
  %v520 = vadd.f32 %v423, %v519
  %v521 = vpop.f32.mrb[0].mxu0
  %522 = vmatprep.mubr.bf16.mxu0 0
  %523 = vmatmul.mubr.bf16.gmra.mrb[0].mxu0 %v340
  %v524 = vpop.f32.mrb[0].mxu0
  %v525 = vadd.f32 %v428, %v524
  %v526 = vpop.f32.mrb[0].mxu0
  %v527 = vpop.f32.mrb[0].mxu0
  %v528 = vadd.f32 %v431, %v527
  %v529 = vpop.f32.mrb[0].mxu0
  %530 = vmatprep.mubr.bf16.mxu0 0
  %531 = vmatmul.mubr.bf16.gmra.mrb[0].mxu0 %v343
  %v532 = vpop.f32.mrb[0].mxu0
  %v533 = vadd.f32 %v436, %v532
  %v534 = vpop.f32.mrb[0].mxu0
  %v535 = vpop.f32.mrb[0].mxu0
  %v536 = vadd.f32 %v439, %v535
  %v537 = vpop.f32.mrb[0].mxu0
  %538 = vdwg.mxu0
  %539 = vst [vmem:[%s3] sm:$0xff] %v477
  %540 = vst [vmem:[%s3 + $0x8] sm:$0xff] %v480
  %541 = vst [vmem:[%s3 + $0x10] sm:$0xff] %v485
  %542 = vst [vmem:[%s3 + $0x18] sm:$0xff] %v488
  %543 = vst [vmem:[%s3 + $0x20] sm:$0xff] %v493
  %544 = vst [vmem:[%s3 + $0x28] sm:$0xff] %v496
  %545 = vst [vmem:[%s3 + $0x30] sm:$0xff] %v501
  %546 = vst [vmem:[%s3 + $0x38] sm:$0xff] %v504
  %547 = vst [vmem:[%s3 + $0x40] sm:$0xff] %v509
  %548 = vst [vmem:[%s3 + $0x48] sm:$0xff] %v512
  %549 = vst [vmem:[%s3 + $0x50] sm:$0xff] %v517
  %550 = vst [vmem:[%s3 + $0x58] sm:$0xff] %v520
  %551 = vst [vmem:[%s3 + $0x60] sm:$0xff] %v525
  %552 = vst [vmem:[%s3 + $0x68] sm:$0xff] %v528
  %553 = vst [vmem:[%s3 + $0x70] sm:$0xff] %v533
  %554 = vst [vmem:[%s3 + $0x78] sm:$0xff] %v536
  %v555 = vmul.f32 %v477, %v477
  %v556 = vmul.f32 %v480, %v480
  %v557 = vmul.f32 %v485, %v485
  %v558 = vmul.f32 %v488, %v488
  %v559 = vmul.f32 %v493, %v493
  %v560 = vmul.f32 %v496, %v496
  %v561 = vmul.f32 %v501, %v501
  %v562 = vmul.f32 %v504, %v504
  %v563 = vmul.f32 %v509, %v509
  %v564 = vmul.f32 %v512, %v512
  %v565 = vmul.f32 %v517, %v517
  %v566 = vmul.f32 %v520, %v520
  %v567 = vmul.f32 %v525, %v525
  %v568 = vmul.f32 %v528, %v528
  %v569 = vmul.f32 %v533, %v533
  %v570 = vmul.f32 %v536, %v536
  %v571 = vadd.f32 %v477, %v480
  %v572 = vadd.f32 %v571, %v485
  %v573 = vadd.f32 %v572, %v488
  %v574 = vadd.f32 %v573, %v493
  %v575 = vadd.f32 %v574, %v496
  %v576 = vadd.f32 %v575, %v501
  %v577 = vadd.f32 %v576, %v504
  %v578 = vadd.f32 %v577, %v509
  %v579 = vadd.f32 %v578, %v512
  %v580 = vadd.f32 %v579, %v517
  %v581 = vadd.f32 %v580, %v520
  %v582 = vadd.f32 %v581, %v525
  %v583 = vadd.f32 %v582, %v528
  %v584 = vadd.f32 %v583, %v533
  %v585 = vadd.f32 %v584, %v536
  %v586 = vrot.slane %v585, 4
  %v587 = vadd.f32 %v585, %v586
  %v588 = vrot.slane %v587, 2
  %v589 = vadd.f32 %v587, %v588
  %v590 = vrot.slane %v589, 1
  %v591 = vadd.f32 %v589, %v590
  %v592 = vadd.f32 %v555, %v556
  %v593 = vadd.f32 %v592, %v557
  %v594 = vadd.f32 %v593, %v558
  %v595 = vadd.f32 %v594, %v559
  %v596 = vadd.f32 %v595, %v560
  %v597 = vadd.f32 %v596, %v561
  %v598 = vadd.f32 %v597, %v562
  %v599 = vadd.f32 %v598, %v563
  %v600 = vadd.f32 %v599, %v564
  %v601 = vadd.f32 %v600, %v565
  %v602 = vadd.f32 %v601, %v566
  %v603 = vadd.f32 %v602, %v567
  %v604 = vadd.f32 %v603, %v568
  %v605 = vadd.f32 %v604, %v569
  %v606 = vadd.f32 %v605, %v570
  %v607 = vrot.slane %v606, 4
  %v608 = vadd.f32 %v606, %v607
  %v609 = vrot.slane %v608, 2
  %v610 = vadd.f32 %v608, %v609
  %v611 = vrot.slane %v610, 1
  %v612 = vadd.f32 %v610, %v611
  %v613 = vlaneseq
  %v614 = vshrl.u32 %v613, 7
  %vm615 = vcmp.eq.s32.totalorder %v614, 0
  %vm616 = vcmp.eq.s32.totalorder %v614, 1
  %v617 = vsel %vm616, 1, 0
  %vm618 = vcmp.eq.s32.totalorder %v617, 1
  %v619 = vsel %vm618, %v612, 0.0
  %v620 = vsel %vm615, 1, 0
  %vm621 = vcmp.eq.s32.totalorder %v620, 1
  %v622 = vsel %vm621, %v591, %v619
  %623 = vst [vmem:[%s4] sm:$0xff] %v622
  // Predicated region
  $region14: #{generator_forward.13} parent=0 // pred_check
    _
  $region15: #{generator_forward.13} parent=0 // pred_check_branch
    %625 = sbr.rel (0) target = $region17
  $region16: #{generator_forward.13} parent=0 // pred_region
    _
  $region17: #{generator_forward.13} parent=0 // pred_fallthru
    _
  // Predicated region
  $region18: #{generator_forward.13} parent=0 // pred_check
    _
  $region19: #{generator_forward.13} parent=0 // pred_check_branch
    %627 = sbr.rel (0) target = $region21
  $region20: #{generator_forward.13} parent=0 // pred_region
    _
  $region21: #{generator_forward.13} parent=0 // pred_fallthru
    _
  // Predicated region
  $region22: #{generator_forward.13} parent=0 // pred_check
    _
  $region23: #{generator_forward.13} parent=0 // pred_check_branch
    %629 = sbr.rel (0) target = $region25
  $region24: #{generator_forward.13} parent=0 // pred_region
    _
  $region25: #{generator_forward.13} parent=0 // pred_fallthru
    _
  // Predicated region
  $region26: #{generator_forward.13} parent=0 // pred_check
    _
  $region27: #{generator_forward.13} parent=0 // pred_check_branch
    %631 = sbr.rel (0) target = $region29
  $region28: #{generator_forward.13} parent=0 // pred_region
    _
  $region29: #{generator_forward.13} parent=0 // pred_fallthru
    _

// kernel: generator_forward.14
$region0: #{generator_forward.14}
  #allocation0 [shape = 'u32[]', space=smem, size = 0x4, offset = 0x4, fixed_abs, tag = 'smem constant byte address 0x4 - core index']
  #allocation1 [shape = 'u32[144,128]{1,0:T(1,128)}', space=vmem, size = 0x12000, scoped, tag = 'internal scratch']
  %s0 = inlined_call_operand.vmem [shape: f32[128,128], index: 0, kind: input, shape index: {}]
  %s1 = inlined_call_operand.vmem [shape: f32[1,128], index: 1, kind: input, shape index: {}]
  %s2 = inlined_call_operand.vmem [shape: f32[1,128], index: 2, kind: input, shape index: {}]
  %s3 = inlined_call_operand.vmem [shape: bf16[128,128], index: 3, kind: output, shape index: {}]
  %s4 = sld [smem:[#allocation0]]
  $region22: #{generator_forward.14} parent=0
    _
  %s6 = ssub.s32 1, %s4
  %s7 = scalar_select 0, %s6, %s4
  // Predicated region
  $region2: #{generator_forward.14} parent=0 // pred_check
    _
  $region3: #{generator_forward.14} parent=0 // pred_check_branch
    %9 = sbr.rel (0) target = $region5
  $region4: #{generator_forward.14} parent=0 // pred_region
    _
  $region5: #{generator_forward.14} parent=0 // pred_fallthru
    _
  // Predicated region
  $region6: #{generator_forward.14} parent=0 // pred_check
    _
  $region7: #{generator_forward.14} parent=0 // pred_check_branch
    %11 = sbr.rel (0) target = $region9
  $region8: #{generator_forward.14} parent=0 // pred_region
    _
  $region9: #{generator_forward.14} parent=0 // pred_fallthru
    _
  // Predicated region
  $region10: #{generator_forward.14} parent=0 // pred_check
    _
  $region11: #{generator_forward.14} parent=0 // pred_check_branch
    %13 = sbr.rel (0) target = $region13
  $region12: #{generator_forward.14} parent=0 // pred_region
    _
  $region13: #{generator_forward.14} parent=0 // pred_fallthru
    _
  %v14 = vld [vmem:[%s0] sm:$0xff]
  %v15 = vld [vmem:[%s0 + $0x8] sm:$0xff]
  %v16 = vld [vmem:[%s0 + $0x10] sm:$0xff]
  %v17 = vld [vmem:[%s0 + $0x18] sm:$0xff]
  %v18 = vld [vmem:[%s0 + $0x20] sm:$0xff]
  %v19 = vld [vmem:[%s0 + $0x28] sm:$0xff]
  %v20 = vld [vmem:[%s0 + $0x30] sm:$0xff]
  %v21 = vld [vmem:[%s0 + $0x38] sm:$0xff]
  %v22 = vld [vmem:[%s0 + $0x40] sm:$0xff]
  %v23 = vld [vmem:[%s0 + $0x48] sm:$0xff]
  %v24 = vld [vmem:[%s0 + $0x50] sm:$0xff]
  %v25 = vld [vmem:[%s0 + $0x58] sm:$0xff]
  %v26 = vld [vmem:[%s0 + $0x60] sm:$0xff]
  %v27 = vld [vmem:[%s0 + $0x68] sm:$0xff]
  %v28 = vld [vmem:[%s0 + $0x70] sm:$0xff]
  %v29 = vld [vmem:[%s0 + $0x78] sm:$0xff]
  %v30 = vld [vmem:[%s1] sm:$0x1]
  %v32 = vlaneseq
  %v33 = vshrl.u32 %v32, 7
  %v34 = vsub.s32 0, %v33
  %v35 = vrot.slane %v30, %v34
  %v37 = vmul.f32 %v14, %v35
  %v38 = vmul.f32 %v15, %v35
  %v39 = vmul.f32 %v16, %v35
  %v40 = vmul.f32 %v17, %v35
  %v41 = vmul.f32 %v18, %v35
  %v42 = vmul.f32 %v19, %v35
  %v43 = vmul.f32 %v20, %v35
  %v44 = vmul.f32 %v21, %v35
  %v45 = vmul.f32 %v22, %v35
  %v46 = vmul.f32 %v23, %v35
  %v47 = vmul.f32 %v24, %v35
  %v48 = vmul.f32 %v25, %v35
  %v49 = vmul.f32 %v26, %v35
  %v50 = vmul.f32 %v27, %v35
  %v51 = vmul.f32 %v28, %v35
  %v52 = vmul.f32 %v29, %v35
  %v53 = vld [vmem:[%s2] sm:$0x1]
  %v55 = vlaneseq
  %v56 = vshrl.u32 %v55, 7
  %v57 = vsub.s32 0, %v56
  %v58 = vrot.slane %v53, %v57
  %v60 = vadd.f32 %v37, %v58
  %v61 = vadd.f32 %v38, %v58
  %v62 = vadd.f32 %v39, %v58
  %v63 = vadd.f32 %v40, %v58
  %v64 = vadd.f32 %v41, %v58
  %v65 = vadd.f32 %v42, %v58
  %v66 = vadd.f32 %v43, %v58
  %v67 = vadd.f32 %v44, %v58
  %v68 = vadd.f32 %v45, %v58
  %v69 = vadd.f32 %v46, %v58
  %v70 = vadd.f32 %v47, %v58
  %v71 = vadd.f32 %v48, %v58
  %v72 = vadd.f32 %v49, %v58
  %v73 = vadd.f32 %v50, %v58
  %v74 = vadd.f32 %v51, %v58
  %v75 = vadd.f32 %v52, %v58
  %v76 = vmax.f32 %v60, 0.0
  %v77 = vmax.f32 %v61, 0.0
  %v78 = vmax.f32 %v62, 0.0
  %v79 = vmax.f32 %v63, 0.0
  %v80 = vmax.f32 %v64, 0.0
  %v81 = vmax.f32 %v65, 0.0
  %v82 = vmax.f32 %v66, 0.0
  %v83 = vmax.f32 %v67, 0.0
  %v84 = vmax.f32 %v68, 0.0
  %v85 = vmax.f32 %v69, 0.0
  %v86 = vmax.f32 %v70, 0.0
  %v87 = vmax.f32 %v71, 0.0
  %v88 = vmax.f32 %v72, 0.0
  %v89 = vmax.f32 %v73, 0.0
  %v90 = vmax.f32 %v74, 0.0
  %v91 = vmax.f32 %v75, 0.0
  %v92 = vpack.c.bf16 %v77, %v76
  %v93 = vpack.c.bf16 %v79, %v78
  %v94 = vpack.c.bf16 %v81, %v80
  %v95 = vpack.c.bf16 %v83, %v82
  %v96 = vpack.c.bf16 %v85, %v84
  %v97 = vpack.c.bf16 %v87, %v86
  %v98 = vpack.c.bf16 %v89, %v88
  %v99 = vpack.c.bf16 %v91, %v90
  %v108 = vunpack.c.l.b16 %v92
  %v109 = vunpack.c.h.b16 %v92
  %v110 = vunpack.c.l.b16 %v93
  %v111 = vunpack.c.h.b16 %v93
  %v112 = vunpack.c.l.b16 %v94
  %v113 = vunpack.c.h.b16 %v94
  %v114 = vunpack.c.l.b16 %v95
  %v115 = vunpack.c.h.b16 %v95
  %v116 = vunpack.c.l.b16 %v96
  %v117 = vunpack.c.h.b16 %v96
  %v118 = vunpack.c.l.b16 %v97
  %v119 = vunpack.c.h.b16 %v97
  %v120 = vunpack.c.l.b16 %v98
  %v121 = vunpack.c.h.b16 %v98
  %v122 = vunpack.c.l.b16 %v99
  %v123 = vunpack.c.h.b16 %v99
  %v124 = vpack.c.b16 %v108, %v108
  %v125 = vpack.c.b16 %v109, %v109
  %v126 = vpack.c.b16 %v110, %v110
  %v127 = vpack.c.b16 %v111, %v111
  %v128 = vpack.c.b16 %v112, %v112
  %v129 = vpack.c.b16 %v113, %v113
  %v130 = vpack.c.b16 %v114, %v114
  %v131 = vpack.c.b16 %v115, %v115
  %v132 = vpack.c.b16 %v116, %v116
  %v133 = vpack.c.b16 %v117, %v117
  %v134 = vpack.c.b16 %v118, %v118
  %v135 = vpack.c.b16 %v119, %v119
  %v136 = vpack.c.b16 %v120, %v120
  %v137 = vpack.c.b16 %v121, %v121
  %v138 = vpack.c.b16 %v122, %v122
  %v139 = vpack.c.b16 %v123, %v123
  %156 = vst [vmem:[%s3] sm:$0xf] %v124
  %157 = vst [vmem:[%s3 + $0x4] sm:$0xf] %v125
  %158 = vst [vmem:[%s3 + $0x8] sm:$0xf] %v126
  %159 = vst [vmem:[%s3 + $0xc] sm:$0xf] %v127
  %160 = vst [vmem:[%s3 + $0x10] sm:$0xf] %v128
  %161 = vst [vmem:[%s3 + $0x14] sm:$0xf] %v129
  %162 = vst [vmem:[%s3 + $0x18] sm:$0xf] %v130
  %163 = vst [vmem:[%s3 + $0x1c] sm:$0xf] %v131
  %164 = vst [vmem:[%s3 + $0x20] sm:$0xf] %v132
  %165 = vst [vmem:[%s3 + $0x24] sm:$0xf] %v133
  %166 = vst [vmem:[%s3 + $0x28] sm:$0xf] %v134
  %167 = vst [vmem:[%s3 + $0x2c] sm:$0xf] %v135
  %168 = vst [vmem:[%s3 + $0x30] sm:$0xf] %v136
  %169 = vst [vmem:[%s3 + $0x34] sm:$0xf] %v137
  %170 = vst [vmem:[%s3 + $0x38] sm:$0xf] %v138
  %171 = vst [vmem:[%s3 + $0x3c] sm:$0xf] %v139
  // Predicated region
  $region14: #{generator_forward.14} parent=0 // pred_check
    _
  $region15: #{generator_forward.14} parent=0 // pred_check_branch
    %173 = sbr.rel (0) target = $region17
  $region16: #{generator_forward.14} parent=0 // pred_region
    _
  $region17: #{generator_forward.14} parent=0 // pred_fallthru
    _
  // Predicated region
  $region18: #{generator_forward.14} parent=0 // pred_check
    _
  $region19: #{generator_forward.14} parent=0 // pred_check_branch
    %175 = sbr.rel (0) target = $region21
  $region20: #{generator_forward.14} parent=0 // pred_region
    _
  $region21: #{generator_forward.14} parent=0 // pred_fallthru
    _

// kernel: tile.113
$region0: #{tile.113}
  #allocation0 [shape = 's32[1]{0}', space=sflag, size = 0x4, scoped, tag = 'scoped memory for tile.113']
  %s0 = inlined_call_operand.vmem [shape: f32[8], index: 0, kind: input, shape index: {}]
  %s1 = inlined_call_operand.vmem [shape: f32[4,8], index: 1, kind: output, shape index: {}]
  // Predicated region
  $region2: #{tile.113} parent=0 // pred_check
    _
  $region3: #{tile.113} parent=0 // pred_check_branch
    %3 = sbr.rel (0) target = $region5
  $region4: #{tile.113} parent=0 // pred_region
    _
  $region5: #{tile.113} parent=0 // pred_fallthru
    _
  %v4 = vld [vmem:[%s0] ss:$0 sm:$0xff]
  %5 = vst [vmem:[%s1] sm:$0xf] %v4

// kernel: tile.114
$region0: #{tile.114}
  %s0 = inlined_call_operand.vmem [shape: f32[4,8], index: 0, kind: input, shape index: {}]
  %s1 = inlined_call_operand.vmem [shape: f32[32], index: 1, kind: output, shape index: {}]
  $region1: #{tile.114} parent=0
    #allocation0 [shape = 'u8[4096]{0}', space=vmem, size = 0x1000, scoped, tag = 'scoped mem for output reshape']
    #allocation1 [shape = 'u8[4096]{0}', space=vmem, size = 0x1000, scoped, tag = 'scoped mem for input reshape']
    %s3 = sshllo.u32 0, 4
    %v4 = vld [vmem:[%s0] sm:%s3]
    %5 = vst [vmem:[#allocation1] sm:%s3] %v4
    %v6 = vld [vmem:[#allocation1] sm:$0x1]
    %vm7 = vcmask 64512
    %8 = vst.msk [vmem:[#allocation0] sm:$0x1] %vm7, %v6
    %s9 = scalar_lea.vmem [#allocation1], 3
    %v10 = vld [vmem:[%s9] sm:$0x1]
    %11 = vrot.lane.b32.xlu0 %v10, 24
    %v12 = vpop.permute.xlu0 %11
    %vm13 = vcmask 261312
    %14 = vst.msk [vmem:[#allocation0] sm:$0x1] %vm13, %v12
    %s15 = scalar_lea.vmem [#allocation1], 2
    %v16 = vld [vmem:[%s15] sm:$0x1]
    %17 = vrot.lane.b32.xlu0 %v16, 16
    %v18 = vpop.permute.xlu0 %17
    %vm19 = vcmask 195712
    %20 = vst.msk [vmem:[#allocation0] sm:$0x1] %vm19, %v18
    %s21 = scalar_lea.vmem [#allocation1], 1
    %v22 = vld [vmem:[%s21] sm:$0x1]
    %23 = vrot.lane.b32.xlu0 %v22, 8
    %v24 = vpop.permute.xlu0 %23
    %vm25 = vcmask 130112
    %26 = vst.msk [vmem:[#allocation0] sm:$0x1] %vm25, %v24
    %s28 = sshllo.u32 0, 1
    %v30 = vld [vmem:[#allocation0] sm:%s28]
    %s31 = sshllo.u32 0, 1
    %32 = vst [vmem:[%s1] sm:%s31] %v30

// kernel: generator_forward.16
$region0: #{generator_forward.16}
  #allocation0 [shape = 'u32[]', space=smem, size = 0x4, offset = 0x4, fixed_abs, tag = 'smem constant byte address 0x4 - core index']
  #allocation1 [shape = 'u32[144,128]{1,0:T(1,128)}', space=vmem, size = 0x12000, scoped, tag = 'internal scratch']
  %s0 = inlined_call_operand.vmem [shape: f32[512,128], index: 0, kind: input, shape index: {}]
  %s1 = inlined_call_operand.vmem [shape: f32[1,128], index: 1, kind: input, shape index: {}]
  %s2 = inlined_call_operand.vmem [shape: f32[1,128], index: 2, kind: input, shape index: {}]
  %s3 = inlined_call_operand.vmem [shape: bf16[512,128], index: 3, kind: output, shape index: {}]
  %s4 = sld [smem:[#allocation0]]
  $region22: #{generator_forward.16} parent=0
    _
  %s6 = ssub.s32 1, %s4
  %s7 = scalar_select 0, %s6, %s4
  // Predicated region
  $region2: #{generator_forward.16} parent=0 // pred_check
    _
  $region3: #{generator_forward.16} parent=0 // pred_check_branch
    %9 = sbr.rel (0) target = $region5
  $region4: #{generator_forward.16} parent=0 // pred_region
    _
  $region5: #{generator_forward.16} parent=0 // pred_fallthru
    _
  // Predicated region
  $region6: #{generator_forward.16} parent=0 // pred_check
    _
  $region7: #{generator_forward.16} parent=0 // pred_check_branch
    %11 = sbr.rel (0) target = $region9
  $region8: #{generator_forward.16} parent=0 // pred_region
    _
  $region9: #{generator_forward.16} parent=0 // pred_fallthru
    _
  // Predicated region
  $region10: #{generator_forward.16} parent=0 // pred_check
    _
  $region11: #{generator_forward.16} parent=0 // pred_check_branch
    %13 = sbr.rel (0) target = $region13
  $region12: #{generator_forward.16} parent=0 // pred_region
    _
  $region13: #{generator_forward.16} parent=0 // pred_fallthru
    _
  %v14 = vld [vmem:[%s0] sm:$0xff]
  %v15 = vld [vmem:[%s0 + $0x8] sm:$0xff]
  %v16 = vld [vmem:[%s0 + $0x10] sm:$0xff]
  %v17 = vld [vmem:[%s0 + $0x18] sm:$0xff]
  %v18 = vld [vmem:[%s0 + $0x20] sm:$0xff]
  %v19 = vld [vmem:[%s0 + $0x28] sm:$0xff]
  %v20 = vld [vmem:[%s0 + $0x30] sm:$0xff]
  %v21 = vld [vmem:[%s0 + $0x38] sm:$0xff]
  %v22 = vld [vmem:[%s0 + $0x40] sm:$0xff]
  %v23 = vld [vmem:[%s0 + $0x48] sm:$0xff]
  %v24 = vld [vmem:[%s0 + $0x50] sm:$0xff]
  %v25 = vld [vmem:[%s0 + $0x58] sm:$0xff]
  %v26 = vld [vmem:[%s0 + $0x60] sm:$0xff]
  %v27 = vld [vmem:[%s0 + $0x68] sm:$0xff]
  %v28 = vld [vmem:[%s0 + $0x70] sm:$0xff]
  %v29 = vld [vmem:[%s0 + $0x78] sm:$0xff]
  %v30 = vld [vmem:[%s0 + $0x80] sm:$0xff]
  %v31 = vld [vmem:[%s0 + $0x88] sm:$0xff]
  %v32 = vld [vmem:[%s0 + $0x90] sm:$0xff]
  %v33 = vld [vmem:[%s0 + $0x98] sm:$0xff]
  %v34 = vld [vmem:[%s0 + $0xa0] sm:$0xff]
  %v35 = vld [vmem:[%s0 + $0xa8] sm:$0xff]
  %v36 = vld [vmem:[%s0 + $0xb0] sm:$0xff]
  %v37 = vld [vmem:[%s0 + $0xb8] sm:$0xff]
  %v38 = vld [vmem:[%s0 + $0xc0] sm:$0xff]
  %v39 = vld [vmem:[%s0 + $0xc8] sm:$0xff]
  %v40 = vld [vmem:[%s0 + $0xd0] sm:$0xff]
  %v41 = vld [vmem:[%s0 + $0xd8] sm:$0xff]
  %v42 = vld [vmem:[%s0 + $0xe0] sm:$0xff]
  %v43 = vld [vmem:[%s0 + $0xe8] sm:$0xff]
  %v44 = vld [vmem:[%s0 + $0xf0] sm:$0xff]
  %v45 = vld [vmem:[%s0 + $0xf8] sm:$0xff]
  %v46 = vld [vmem:[%s0 + $0x100] sm:$0xff]
  %v47 = vld [vmem:[%s0 + $0x108] sm:$0xff]
  %v48 = vld [vmem:[%s0 + $0x110] sm:$0xff]
  %v49 = vld [vmem:[%s0 + $0x118] sm:$0xff]
  %v50 = vld [vmem:[%s0 + $0x120] sm:$0xff]
  %v51 = vld [vmem:[%s0 + $0x128] sm:$0xff]
  %v52 = vld [vmem:[%s0 + $0x130] sm:$0xff]
  %v53 = vld [vmem:[%s0 + $0x138] sm:$0xff]
  %v54 = vld [vmem:[%s0 + $0x140] sm:$0xff]
  %v55 = vld [vmem:[%s0 + $0x148] sm:$0xff]
  %v56 = vld [vmem:[%s0 + $0x150] sm:$0xff]
  %v57 = vld [vmem:[%s0 + $0x158] sm:$0xff]
  %v58 = vld [vmem:[%s0 + $0x160] sm:$0xff]
  %v59 = vld [vmem:[%s0 + $0x168] sm:$0xff]
  %v60 = vld [vmem:[%s0 + $0x170] sm:$0xff]
  %v61 = vld [vmem:[%s0 + $0x178] sm:$0xff]
  %v62 = vld [vmem:[%s0 + $0x180] sm:$0xff]
  %v63 = vld [vmem:[%s0 + $0x188] sm:$0xff]
  %v64 = vld [vmem:[%s0 + $0x190] sm:$0xff]
  %v65 = vld [vmem:[%s0 + $0x198] sm:$0xff]
  %v66 = vld [vmem:[%s0 + $0x1a0] sm:$0xff]
  %v67 = vld [vmem:[%s0 + $0x1a8] sm:$0xff]
  %v68 = vld [vmem:[%s0 + $0x1b0] sm:$0xff]
  %v69 = vld [vmem:[%s0 + $0x1b8] sm:$0xff]
  %v70 = vld [vmem:[%s0 + $0x1c0] sm:$0xff]
  %v71 = vld [vmem:[%s0 + $0x1c8] sm:$0xff]
  %v72 = vld [vmem:[%s0 + $0x1d0] sm:$0xff]
  %v73 = vld [vmem:[%s0 + $0x1d8] sm:$0xff]
  %v74 = vld [vmem:[%s0 + $0x1e0] sm:$0xff]
  %v75 = vld [vmem:[%s0 + $0x1e8] sm:$0xff]
  %v76 = vld [vmem:[%s0 + $0x1f0] sm:$0xff]
  %v77 = vld [vmem:[%s0 + $0x1f8] sm:$0xff]
  %v78 = vld [vmem:[%s1] sm:$0x1]
  %v80 = vlaneseq
  %v81 = vshrl.u32 %v80, 7
  %v82 = vsub.s32 0, %v81
  %v83 = vrot.slane %v78, %v82
  %v85 = vmul.f32 %v14, %v83
  %v86 = vmul.f32 %v15, %v83
  %v87 = vmul.f32 %v16, %v83
  %v88 = vmul.f32 %v17, %v83
  %v89 = vmul.f32 %v18, %v83
  %v90 = vmul.f32 %v19, %v83
  %v91 = vmul.f32 %v20, %v83
  %v92 = vmul.f32 %v21, %v83
  %v93 = vmul.f32 %v22, %v83
  %v94 = vmul.f32 %v23, %v83
  %v95 = vmul.f32 %v24, %v83
  %v96 = vmul.f32 %v25, %v83
  %v97 = vmul.f32 %v26, %v83
  %v98 = vmul.f32 %v27, %v83
  %v99 = vmul.f32 %v28, %v83
  %v100 = vmul.f32 %v29, %v83
  %v101 = vmul.f32 %v30, %v83
  %v102 = vmul.f32 %v31, %v83
  %v103 = vmul.f32 %v32, %v83
  %v104 = vmul.f32 %v33, %v83
  %v105 = vmul.f32 %v34, %v83
  %v106 = vmul.f32 %v35, %v83
  %v107 = vmul.f32 %v36, %v83
  %v108 = vmul.f32 %v37, %v83
  %v109 = vmul.f32 %v38, %v83
  %v110 = vmul.f32 %v39, %v83
  %v111 = vmul.f32 %v40, %v83
  %v112 = vmul.f32 %v41, %v83
  %v113 = vmul.f32 %v42, %v83
  %v114 = vmul.f32 %v43, %v83
  %v115 = vmul.f32 %v44, %v83
  %v116 = vmul.f32 %v45, %v83
  %v117 = vmul.f32 %v46, %v83
  %v118 = vmul.f32 %v47, %v83
  %v119 = vmul.f32 %v48, %v83
  %v120 = vmul.f32 %v49, %v83
  %v121 = vmul.f32 %v50, %v83
  %v122 = vmul.f32 %v51, %v83
  %v123 = vmul.f32 %v52, %v83
  %v124 = vmul.f32 %v53, %v83
  %v125 = vmul.f32 %v54, %v83
  %v126 = vmul.f32 %v55, %v83
  %v127 = vmul.f32 %v56, %v83
  %v128 = vmul.f32 %v57, %v83
  %v129 = vmul.f32 %v58, %v83
  %v130 = vmul.f32 %v59, %v83
  %v131 = vmul.f32 %v60, %v83
  %v132 = vmul.f32 %v61, %v83
  %v133 = vmul.f32 %v62, %v83
  %v134 = vmul.f32 %v63, %v83
  %v135 = vmul.f32 %v64, %v83
  %v136 = vmul.f32 %v65, %v83
  %v137 = vmul.f32 %v66, %v83
  %v138 = vmul.f32 %v67, %v83
  %v139 = vmul.f32 %v68, %v83
  %v140 = vmul.f32 %v69, %v83
  %v141 = vmul.f32 %v70, %v83
  %v142 = vmul.f32 %v71, %v83
  %v143 = vmul.f32 %v72, %v83
  %v144 = vmul.f32 %v73, %v83
  %v145 = vmul.f32 %v74, %v83
  %v146 = vmul.f32 %v75, %v83
  %v147 = vmul.f32 %v76, %v83
  %v148 = vmul.f32 %v77, %v83
  %v149 = vld [vmem:[%s2] sm:$0x1]
  %v151 = vlaneseq
  %v152 = vshrl.u32 %v151, 7
  %v153 = vsub.s32 0, %v152
  %v154 = vrot.slane %v149, %v153
  %v156 = vadd.f32 %v85, %v154
  %v157 = vadd.f32 %v86, %v154
  %v158 = vadd.f32 %v87, %v154
  %v159 = vadd.f32 %v88, %v154
  %v160 = vadd.f32 %v89, %v154
  %v161 = vadd.f32 %v90, %v154
  %v162 = vadd.f32 %v91, %v154
  %v163 = vadd.f32 %v92, %v154
  %v164 = vadd.f32 %v93, %v154
  %v165 = vadd.f32 %v94, %v154
  %v166 = vadd.f32 %v95, %v154
  %v167 = vadd.f32 %v96, %v154
  %v168 = vadd.f32 %v97, %v154
  %v169 = vadd.f32 %v98, %v154
  %v170 = vadd.f32 %v99, %v154
  %v171 = vadd.f32 %v100, %v154
  %v172 = vadd.f32 %v101, %v154
  %v173 = vadd.f32 %v102, %v154
  %v174 = vadd.f32 %v103, %v154
  %v175 = vadd.f32 %v104, %v154
  %v176 = vadd.f32 %v105, %v154
  %v177 = vadd.f32 %v106, %v154
  %v178 = vadd.f32 %v107, %v154
  %v179 = vadd.f32 %v108, %v154
  %v180 = vadd.f32 %v109, %v154
  %v181 = vadd.f32 %v110, %v154
  %v182 = vadd.f32 %v111, %v154
  %v183 = vadd.f32 %v112, %v154
  %v184 = vadd.f32 %v113, %v154
  %v185 = vadd.f32 %v114, %v154
  %v186 = vadd.f32 %v115, %v154
  %v187 = vadd.f32 %v116, %v154
  %v188 = vadd.f32 %v117, %v154
  %v189 = vadd.f32 %v118, %v154
  %v190 = vadd.f32 %v119, %v154
  %v191 = vadd.f32 %v120, %v154
  %v192 = vadd.f32 %v121, %v154
  %v193 = vadd.f32 %v122, %v154
  %v194 = vadd.f32 %v123, %v154
  %v195 = vadd.f32 %v124, %v154
  %v196 = vadd.f32 %v125, %v154
  %v197 = vadd.f32 %v126, %v154
  %v198 = vadd.f32 %v127, %v154
  %v199 = vadd.f32 %v128, %v154
  %v200 = vadd.f32 %v129, %v154
  %v201 = vadd.f32 %v130, %v154
  %v202 = vadd.f32 %v131, %v154
  %v203 = vadd.f32 %v132, %v154
  %v204 = vadd.f32 %v133, %v154
  %v205 = vadd.f32 %v134, %v154
  %v206 = vadd.f32 %v135, %v154
  %v207 = vadd.f32 %v136, %v154
  %v208 = vadd.f32 %v137, %v154
  %v209 = vadd.f32 %v138, %v154
  %v210 = vadd.f32 %v139, %v154
  %v211 = vadd.f32 %v140, %v154
  %v212 = vadd.f32 %v141, %v154
  %v213 = vadd.f32 %v142, %v154
  %v214 = vadd.f32 %v143, %v154
  %v215 = vadd.f32 %v144, %v154
  %v216 = vadd.f32 %v145, %v154
  %v217 = vadd.f32 %v146, %v154
  %v218 = vadd.f32 %v147, %v154
  %v219 = vadd.f32 %v148, %v154
  %v220 = vmax.f32 %v156, 0.0
  %v221 = vmax.f32 %v157, 0.0
  %v222 = vmax.f32 %v158, 0.0
  %v223 = vmax.f32 %v159, 0.0
  %v224 = vmax.f32 %v160, 0.0
  %v225 = vmax.f32 %v161, 0.0
  %v226 = vmax.f32 %v162, 0.0
  %v227 = vmax.f32 %v163, 0.0
  %v228 = vmax.f32 %v164, 0.0
  %v229 = vmax.f32 %v165, 0.0
  %v230 = vmax.f32 %v166, 0.0
  %v231 = vmax.f32 %v167, 0.0
  %v232 = vmax.f32 %v168, 0.0
  %v233 = vmax.f32 %v169, 0.0
  %v234 = vmax.f32 %v170, 0.0
  %v235 = vmax.f32 %v171, 0.0
  %v236 = vmax.f32 %v172, 0.0
  %v237 = vmax.f32 %v173, 0.0
  %v238 = vmax.f32 %v174, 0.0
  %v239 = vmax.f32 %v175, 0.0
  %v240 = vmax.f32 %v176, 0.0
  %v241 = vmax.f32 %v177, 0.0
  %v242 = vmax.f32 %v178, 0.0
  %v243 = vmax.f32 %v179, 0.0
  %v244 = vmax.f32 %v180, 0.0
  %v245 = vmax.f32 %v181, 0.0
  %v246 = vmax.f32 %v182, 0.0
  %v247 = vmax.f32 %v183, 0.0
  %v248 = vmax.f32 %v184, 0.0
  %v249 = vmax.f32 %v185, 0.0
  %v250 = vmax.f32 %v186, 0.0
  %v251 = vmax.f32 %v187, 0.0
  %v252 = vmax.f32 %v188, 0.0
  %v253 = vmax.f32 %v189, 0.0
  %v254 = vmax.f32 %v190, 0.0
  %v255 = vmax.f32 %v191, 0.0
  %v256 = vmax.f32 %v192, 0.0
  %v257 = vmax.f32 %v193, 0.0
  %v258 = vmax.f32 %v194, 0.0
  %v259 = vmax.f32 %v195, 0.0
  %v260 = vmax.f32 %v196, 0.0
  %v261 = vmax.f32 %v197, 0.0
  %v262 = vmax.f32 %v198, 0.0
  %v263 = vmax.f32 %v199, 0.0
  %v264 = vmax.f32 %v200, 0.0
  %v265 = vmax.f32 %v201, 0.0
  %v266 = vmax.f32 %v202, 0.0
  %v267 = vmax.f32 %v203, 0.0
  %v268 = vmax.f32 %v204, 0.0
  %v269 = vmax.f32 %v205, 0.0
  %v270 = vmax.f32 %v206, 0.0
  %v271 = vmax.f32 %v207, 0.0
  %v272 = vmax.f32 %v208, 0.0
  %v273 = vmax.f32 %v209, 0.0
  %v274 = vmax.f32 %v210, 0.0
  %v275 = vmax.f32 %v211, 0.0
  %v276 = vmax.f32 %v212, 0.0
  %v277 = vmax.f32 %v213, 0.0
  %v278 = vmax.f32 %v214, 0.0
  %v279 = vmax.f32 %v215, 0.0
  %v280 = vmax.f32 %v216, 0.0
  %v281 = vmax.f32 %v217, 0.0
  %v282 = vmax.f32 %v218, 0.0
  %v283 = vmax.f32 %v219, 0.0
  %v284 = vpack.c.bf16 %v221, %v220
  %v285 = vpack.c.bf16 %v223, %v222
  %v286 = vpack.c.bf16 %v225, %v224
  %v287 = vpack.c.bf16 %v227, %v226
  %v288 = vpack.c.bf16 %v229, %v228
  %v289 = vpack.c.bf16 %v231, %v230
  %v290 = vpack.c.bf16 %v233, %v232
  %v291 = vpack.c.bf16 %v235, %v234
  %v292 = vpack.c.bf16 %v237, %v236
  %v293 = vpack.c.bf16 %v239, %v238
  %v294 = vpack.c.bf16 %v241, %v240
  %v295 = vpack.c.bf16 %v243, %v242
  %v296 = vpack.c.bf16 %v245, %v244
  %v297 = vpack.c.bf16 %v247, %v246
  %v298 = vpack.c.bf16 %v249, %v248
  %v299 = vpack.c.bf16 %v251, %v250
  %v300 = vpack.c.bf16 %v253, %v252
  %v301 = vpack.c.bf16 %v255, %v254
  %v302 = vpack.c.bf16 %v257, %v256
  %v303 = vpack.c.bf16 %v259, %v258
  %v304 = vpack.c.bf16 %v261, %v260
  %v305 = vpack.c.bf16 %v263, %v262
  %v306 = vpack.c.bf16 %v265, %v264
  %v307 = vpack.c.bf16 %v267, %v266
  %v308 = vpack.c.bf16 %v269, %v268
  %v309 = vpack.c.bf16 %v271, %v270
  %v310 = vpack.c.bf16 %v273, %v272
  %v311 = vpack.c.bf16 %v275, %v274
  %v312 = vpack.c.bf16 %v277, %v276
  %v313 = vpack.c.bf16 %v279, %v278
  %v314 = vpack.c.bf16 %v281, %v280
  %v315 = vpack.c.bf16 %v283, %v282
  %v348 = vunpack.c.l.b16 %v284
  %v349 = vunpack.c.h.b16 %v284
  %v350 = vunpack.c.l.b16 %v285
  %v351 = vunpack.c.h.b16 %v285
  %v352 = vunpack.c.l.b16 %v286
  %v353 = vunpack.c.h.b16 %v286
  %v354 = vunpack.c.l.b16 %v287
  %v355 = vunpack.c.h.b16 %v287
  %v356 = vunpack.c.l.b16 %v288
  %v357 = vunpack.c.h.b16 %v288
  %v358 = vunpack.c.l.b16 %v289
  %v359 = vunpack.c.h.b16 %v289
  %v360 = vunpack.c.l.b16 %v290
  %v361 = vunpack.c.h.b16 %v290
  %v362 = vunpack.c.l.b16 %v291
  %v363 = vunpack.c.h.b16 %v291
  %v364 = vunpack.c.l.b16 %v292
  %v365 = vunpack.c.h.b16 %v292
  %v366 = vunpack.c.l.b16 %v293
  %v367 = vunpack.c.h.b16 %v293
  %v368 = vunpack.c.l.b16 %v294
  %v369 = vunpack.c.h.b16 %v294
  %v370 = vunpack.c.l.b16 %v295
  %v371 = vunpack.c.h.b16 %v295
  %v372 = vunpack.c.l.b16 %v296
  %v373 = vunpack.c.h.b16 %v296
  %v374 = vunpack.c.l.b16 %v297
  %v375 = vunpack.c.h.b16 %v297
  %v376 = vunpack.c.l.b16 %v298
  %v377 = vunpack.c.h.b16 %v298
  %v378 = vunpack.c.l.b16 %v299
  %v379 = vunpack.c.h.b16 %v299
  %v380 = vunpack.c.l.b16 %v300
  %v381 = vunpack.c.h.b16 %v300
  %v382 = vunpack.c.l.b16 %v301
  %v383 = vunpack.c.h.b16 %v301
  %v384 = vunpack.c.l.b16 %v302
  %v385 = vunpack.c.h.b16 %v302
  %v386 = vunpack.c.l.b16 %v303
  %v387 = vunpack.c.h.b16 %v303
  %v388 = vunpack.c.l.b16 %v304
  %v389 = vunpack.c.h.b16 %v304
  %v390 = vunpack.c.l.b16 %v305
  %v391 = vunpack.c.h.b16 %v305
  %v392 = vunpack.c.l.b16 %v306
  %v393 = vunpack.c.h.b16 %v306
  %v394 = vunpack.c.l.b16 %v307
  %v395 = vunpack.c.h.b16 %v307
  %v396 = vunpack.c.l.b16 %v308
  %v397 = vunpack.c.h.b16 %v308
  %v398 = vunpack.c.l.b16 %v309
  %v399 = vunpack.c.h.b16 %v309
  %v400 = vunpack.c.l.b16 %v310
  %v401 = vunpack.c.h.b16 %v310
  %v402 = vunpack.c.l.b16 %v311
  %v403 = vunpack.c.h.b16 %v311
  %v404 = vunpack.c.l.b16 %v312
  %v405 = vunpack.c.h.b16 %v312
  %v406 = vunpack.c.l.b16 %v313
  %v407 = vunpack.c.h.b16 %v313
  %v408 = vunpack.c.l.b16 %v314
  %v409 = vunpack.c.h.b16 %v314
  %v410 = vunpack.c.l.b16 %v315
  %v411 = vunpack.c.h.b16 %v315
  %v412 = vpack.c.b16 %v348, %v348
  %v413 = vpack.c.b16 %v349, %v349
  %v414 = vpack.c.b16 %v350, %v350
  %v415 = vpack.c.b16 %v351, %v351
  %v416 = vpack.c.b16 %v352, %v352
  %v417 = vpack.c.b16 %v353, %v353
  %v418 = vpack.c.b16 %v354, %v354
  %v419 = vpack.c.b16 %v355, %v355
  %v420 = vpack.c.b16 %v356, %v356
  %v421 = vpack.c.b16 %v357, %v357
  %v422 = vpack.c.b16 %v358, %v358
  %v423 = vpack.c.b16 %v359, %v359
  %v424 = vpack.c.b16 %v360, %v360
  %v425 = vpack.c.b16 %v361, %v361
  %v426 = vpack.c.b16 %v362, %v362
  %v427 = vpack.c.b16 %v363, %v363
  %v428 = vpack.c.b16 %v364, %v364
  %v429 = vpack.c.b16 %v365, %v365
  %v430 = vpack.c.b16 %v366, %v366
  %v431 = vpack.c.b16 %v367, %v367
  %v432 = vpack.c.b16 %v368, %v368
  %v433 = vpack.c.b16 %v369, %v369
  %v434 = vpack.c.b16 %v370, %v370
  %v435 = vpack.c.b16 %v371, %v371
  %v436 = vpack.c.b16 %v372, %v372
  %v437 = vpack.c.b16 %v373, %v373
  %v438 = vpack.c.b16 %v374, %v374
  %v439 = vpack.c.b16 %v375, %v375
  %v440 = vpack.c.b16 %v376, %v376
  %v441 = vpack.c.b16 %v377, %v377
  %v442 = vpack.c.b16 %v378, %v378
  %v443 = vpack.c.b16 %v379, %v379
  %v444 = vpack.c.b16 %v380, %v380
  %v445 = vpack.c.b16 %v381, %v381
  %v446 = vpack.c.b16 %v382, %v382
  %v447 = vpack.c.b16 %v383, %v383
  %v448 = vpack.c.b16 %v384, %v384
  %v449 = vpack.c.b16 %v385, %v385
  %v450 = vpack.c.b16 %v386, %v386
  %v451 = vpack.c.b16 %v387, %v387
  %v452 = vpack.c.b16 %v388, %v388
  %v453 = vpack.c.b16 %v389, %v389
  %v454 = vpack.c.b16 %v390, %v390
  %v455 = vpack.c.b16 %v391, %v391
  %v456 = vpack.c.b16 %v392, %v392
  %v457 = vpack.c.b16 %v393, %v393
  %v458 = vpack.c.b16 %v394, %v394
  %v459 = vpack.c.b16 %v395, %v395
  %v460 = vpack.c.b16 %v396, %v396
  %v461 = vpack.c.b16 %v397, %v397
  %v462 = vpack.c.b16 %v398, %v398
  %v463 = vpack.c.b16 %v399, %v399
  %v464 = vpack.c.b16 %v400, %v400
  %v465 = vpack.c.b16 %v401, %v401
  %v466 = vpack.c.b16 %v402, %v402
  %v467 = vpack.c.b16 %v403, %v403
  %v468 = vpack.c.b16 %v404, %v404
  %v469 = vpack.c.b16 %v405, %v405
  %v470 = vpack.c.b16 %v406, %v406
  %v471 = vpack.c.b16 %v407, %v407
  %v472 = vpack.c.b16 %v408, %v408
  %v473 = vpack.c.b16 %v409, %v409
  %v474 = vpack.c.b16 %v410, %v410
  %v475 = vpack.c.b16 %v411, %v411
  %540 = vst [vmem:[%s3] sm:$0xf] %v412
  %541 = vst [vmem:[%s3 + $0x4] sm:$0xf] %v413
  %542 = vst [vmem:[%s3 + $0x8] sm:$0xf] %v414
  %543 = vst [vmem:[%s3 + $0xc] sm:$0xf] %v415
  %544 = vst [vmem:[%s3 + $0x10] sm:$0xf] %v416
  %545 = vst [vmem:[%s3 + $0x14] sm:$0xf] %v417
  %546 = vst [vmem:[%s3 + $0x18] sm:$0xf] %v418
  %547 = vst [vmem:[%s3 + $0x1c] sm:$0xf] %v419
  %548 = vst [vmem:[%s3 + $0x20] sm:$0xf] %v420
  %549 = vst [vmem:[%s3 + $0x24] sm:$0xf] %v421
  %550 = vst [vmem:[%s3 + $0x28] sm:$0xf] %v422
  %551 = vst [vmem:[%s3 + $0x2c] sm:$0xf] %v423
  %552 = vst [vmem:[%s3 + $0x30] sm:$0xf] %v424
  %553 = vst [vmem:[%s3 + $0x34] sm:$0xf] %v425
  %554 = vst [vmem:[%s3 + $0x38] sm:$0xf] %v426
  %555 = vst [vmem:[%s3 + $0x3c] sm:$0xf] %v427
  %556 = vst [vmem:[%s3 + $0x40] sm:$0xf] %v428
  %557 = vst [vmem:[%s3 + $0x44] sm:$0xf] %v429
  %558 = vst [vmem:[%s3 + $0x48] sm:$0xf] %v430
  %559 = vst [vmem:[%s3 + $0x4c] sm:$0xf] %v431
  %560 = vst [vmem:[%s3 + $0x50] sm:$0xf] %v432
  %561 = vst [vmem:[%s3 + $0x54] sm:$0xf] %v433
  %562 = vst [vmem:[%s3 + $0x58] sm:$0xf] %v434
  %563 = vst [vmem:[%s3 + $0x5c] sm:$0xf] %v435
  %564 = vst [vmem:[%s3 + $0x60] sm:$0xf] %v436
  %565 = vst [vmem:[%s3 + $0x64] sm:$0xf] %v437
  %566 = vst [vmem:[%s3 + $0x68] sm:$0xf] %v438
  %567 = vst [vmem:[%s3 + $0x6c] sm:$0xf] %v439
  %568 = vst [vmem:[%s3 + $0x70] sm:$0xf] %v440
  %569 = vst [vmem:[%s3 + $0x74] sm:$0xf] %v441
  %570 = vst [vmem:[%s3 + $0x78] sm:$0xf] %v442
  %571 = vst [vmem:[%s3 + $0x7c] sm:$0xf] %v443
  %572 = vst [vmem:[%s3 + $0x80] sm:$0xf] %v444
  %573 = vst [vmem:[%s3 + $0x84] sm:$0xf] %v445
  %574 = vst [vmem:[%s3 + $0x88] sm:$0xf] %v446
  %575 = vst [vmem:[%s3 + $0x8c] sm:$0xf] %v447
  %576 = vst [vmem:[%s3 + $0x90] sm:$0xf] %v448
  %577 = vst [vmem:[%s3 + $0x94] sm:$0xf] %v449
  %578 = vst [vmem:[%s3 + $0x98] sm:$0xf] %v450
  %579 = vst [vmem:[%s3 + $0x9c] sm:$0xf] %v451
  %580 = vst [vmem:[%s3 + $0xa0] sm:$0xf] %v452
  %581 = vst [vmem:[%s3 + $0xa4] sm:$0xf] %v453
  %582 = vst [vmem:[%s3 + $0xa8] sm:$0xf] %v454
  %583 = vst [vmem:[%s3 + $0xac] sm:$0xf] %v455
  %584 = vst [vmem:[%s3 + $0xb0] sm:$0xf] %v456
  %585 = vst [vmem:[%s3 + $0xb4] sm:$0xf] %v457
  %586 = vst [vmem:[%s3 + $0xb8] sm:$0xf] %v458
  %587 = vst [vmem:[%s3 + $0xbc] sm:$0xf] %v459
  %588 = vst [vmem:[%s3 + $0xc0] sm:$0xf] %v460
  %589 = vst [vmem:[%s3 + $0xc4] sm:$0xf] %v461
  %590 = vst [vmem:[%s3 + $0xc8] sm:$0xf] %v462
  %591 = vst [vmem:[%s3 + $0xcc] sm:$0xf] %v463
  %592 = vst [vmem:[%s3 + $0xd0] sm:$0xf] %v464
  %593 = vst [vmem:[%s3 + $0xd4] sm:$0xf] %v465
  %594 = vst [vmem:[%s3 + $0xd8] sm:$0xf] %v466
  %595 = vst [vmem:[%s3 + $0xdc] sm:$0xf] %v467
  %596 = vst [vmem:[%s3 + $0xe0] sm:$0xf] %v468
  %597 = vst [vmem:[%s3 + $0xe4] sm:$0xf] %v469
  %598 = vst [vmem:[%s3 + $0xe8] sm:$0xf] %v470
  %599 = vst [vmem:[%s3 + $0xec] sm:$0xf] %v471
  %600 = vst [vmem:[%s3 + $0xf0] sm:$0xf] %v472
  %601 = vst [vmem:[%s3 + $0xf4] sm:$0xf] %v473
  %602 = vst [vmem:[%s3 + $0xf8] sm:$0xf] %v474
  %603 = vst [vmem:[%s3 + $0xfc] sm:$0xf] %v475
  // Predicated region
  $region14: #{generator_forward.16} parent=0 // pred_check
    _
  $region15: #{generator_forward.16} parent=0 // pred_check_branch
    %605 = sbr.rel (0) target = $region17
  $region16: #{generator_forward.16} parent=0 // pred_region
    _
  $region17: #{generator_forward.16} parent=0 // pred_fallthru
    _
  // Predicated region
  $region18: #{generator_forward.16} parent=0 // pred_check
    _
  $region19: #{generator_forward.16} parent=0 // pred_check_branch
    %607 = sbr.rel (0) target = $region21
  $region20: #{generator_forward.16} parent=0 // pred_region
    _
  $region21: #{generator_forward.16} parent=0 // pred_fallthru
    _

// kernel: generator_forward.15
$region0: #{generator_forward.15}
  #allocation0 [shape = 'u32[]', space=smem, size = 0x4, offset = 0x4, fixed_abs, tag = 'smem constant byte address 0x4 - core index']
  #allocation1 [shape = 'u32[144,128]{1,0:T(1,128)}', space=vmem, size = 0x12000, scoped, tag = 'internal scratch']
  %s0 = inlined_call_operand.vmem [shape: bf16[512,144], index: 0, kind: input, shape index: {}]
  %s1 = inlined_call_operand.vmem [shape: bf16[144,128], index: 1, kind: input, shape index: {}]
  %s2 = inlined_call_operand.vmem [shape: f32[1,128], index: 2, kind: input, shape index: {}]
  %s3 = inlined_call_operand.vmem [shape: f32[512,128], index: 3, kind: output, shape index: {0}]
  %s4 = inlined_call_operand.vmem [shape: f32[1,8,128], index: 4, kind: output, shape index: {1}]
  %5 = xla_tuple %s3, %s4
  %s6 = sld [smem:[#allocation0]]
  $region30: #{generator_forward.15} parent=0
    _
  %s8 = ssub.s32 1, %s6
  %s9 = scalar_select 0, %s8, %s6
  // Predicated region
  $region2: #{generator_forward.15} parent=0 // pred_check
    _
  $region3: #{generator_forward.15} parent=0 // pred_check_branch
    %11 = sbr.rel (0) target = $region5
  $region4: #{generator_forward.15} parent=0 // pred_region
    _
  $region5: #{generator_forward.15} parent=0 // pred_fallthru
    _
  // Predicated region
  $region6: #{generator_forward.15} parent=0 // pred_check
    _
  $region7: #{generator_forward.15} parent=0 // pred_check_branch
    %13 = sbr.rel (0) target = $region9
  $region8: #{generator_forward.15} parent=0 // pred_region
    _
  $region9: #{generator_forward.15} parent=0 // pred_fallthru
    _
  // Predicated region
  $region10: #{generator_forward.15} parent=0 // pred_check
    _
  $region11: #{generator_forward.15} parent=0 // pred_check_branch
    %15 = sbr.rel (0) target = $region13
  $region12: #{generator_forward.15} parent=0 // pred_region
    _
  $region13: #{generator_forward.15} parent=0 // pred_fallthru
    _
  %v17 = vld [vmem:[%s0] sm:$0xff]
  %v18 = vld [vmem:[%s0 + $0x8] sm:$0xff]
  %v19 = vld [vmem:[%s0 + $0x10] sm:$0xff]
  %v20 = vld [vmem:[%s0 + $0x18] sm:$0xff]
  %v21 = vld [vmem:[%s0 + $0x20] sm:$0xff]
  %v22 = vld [vmem:[%s0 + $0x28] sm:$0xff]
  %v23 = vld [vmem:[%s0 + $0x30] sm:$0xff]
  %v24 = vld [vmem:[%s0 + $0x38] sm:$0xff]
  %v25 = vld [vmem:[%s0 + $0x40] sm:$0xff]
  %v26 = vld [vmem:[%s0 + $0x48] sm:$0xff]
  %v27 = vld [vmem:[%s0 + $0x50] sm:$0xff]
  %v28 = vld [vmem:[%s0 + $0x58] sm:$0xff]
  %v29 = vld [vmem:[%s0 + $0x60] sm:$0xff]
  %v30 = vld [vmem:[%s0 + $0x68] sm:$0xff]
  %v31 = vld [vmem:[%s0 + $0x70] sm:$0xff]
  %v32 = vld [vmem:[%s0 + $0x78] sm:$0xff]
  %v33 = vld [vmem:[%s0 + $0x80] sm:$0xff]
  %v34 = vld [vmem:[%s0 + $0x88] sm:$0xff]
  %v35 = vld [vmem:[%s0 + $0x90] sm:$0xff]
  %v36 = vld [vmem:[%s0 + $0x98] sm:$0xff]
  %v37 = vld [vmem:[%s0 + $0xa0] sm:$0xff]
  %v38 = vld [vmem:[%s0 + $0xa8] sm:$0xff]
  %v39 = vld [vmem:[%s0 + $0xb0] sm:$0xff]
  %v40 = vld [vmem:[%s0 + $0xb8] sm:$0xff]
  %v41 = vld [vmem:[%s0 + $0xc0] sm:$0xff]
  %v42 = vld [vmem:[%s0 + $0xc8] sm:$0xff]
  %v43 = vld [vmem:[%s0 + $0xd0] sm:$0xff]
  %v44 = vld [vmem:[%s0 + $0xd8] sm:$0xff]
  %v45 = vld [vmem:[%s0 + $0xe0] sm:$0xff]
  %v46 = vld [vmem:[%s0 + $0xe8] sm:$0xff]
  %v47 = vld [vmem:[%s0 + $0xf0] sm:$0xff]
  %v48 = vld [vmem:[%s0 + $0xf8] sm:$0xff]
  %v49 = vld [vmem:[%s0 + $0x100] sm:$0xff]
  %v50 = vld [vmem:[%s0 + $0x108] sm:$0xff]
  %v51 = vld [vmem:[%s0 + $0x110] sm:$0xff]
  %v52 = vld [vmem:[%s0 + $0x118] sm:$0xff]
  %v53 = vld [vmem:[%s0 + $0x120] sm:$0xff]
  %v54 = vld [vmem:[%s0 + $0x128] sm:$0xff]
  %v55 = vld [vmem:[%s0 + $0x130] sm:$0xff]
  %v56 = vld [vmem:[%s0 + $0x138] sm:$0xff]
  %v57 = vld [vmem:[%s0 + $0x140] sm:$0xff]
  %v58 = vld [vmem:[%s0 + $0x148] sm:$0xff]
  %v59 = vld [vmem:[%s0 + $0x150] sm:$0xff]
  %v60 = vld [vmem:[%s0 + $0x158] sm:$0xff]
  %v61 = vld [vmem:[%s0 + $0x160] sm:$0xff]
  %v62 = vld [vmem:[%s0 + $0x168] sm:$0xff]
  %v63 = vld [vmem:[%s0 + $0x170] sm:$0xff]
  %v64 = vld [vmem:[%s0 + $0x178] sm:$0xff]
  %v65 = vld [vmem:[%s0 + $0x180] sm:$0xff]
  %v66 = vld [vmem:[%s0 + $0x188] sm:$0xff]
  %v67 = vld [vmem:[%s0 + $0x190] sm:$0xff]
  %v68 = vld [vmem:[%s0 + $0x198] sm:$0xff]
  %v69 = vld [vmem:[%s0 + $0x1a0] sm:$0xff]
  %v70 = vld [vmem:[%s0 + $0x1a8] sm:$0xff]
  %v71 = vld [vmem:[%s0 + $0x1b0] sm:$0xff]
  %v72 = vld [vmem:[%s0 + $0x1b8] sm:$0xff]
  %v73 = vld [vmem:[%s0 + $0x1c0] sm:$0xff]
  %v74 = vld [vmem:[%s0 + $0x1c8] sm:$0xff]
  %v75 = vld [vmem:[%s0 + $0x1d0] sm:$0xff]
  %v76 = vld [vmem:[%s0 + $0x1d8] sm:$0xff]
  %v77 = vld [vmem:[%s0 + $0x1e0] sm:$0xff]
  %v78 = vld [vmem:[%s0 + $0x1e8] sm:$0xff]
  %v79 = vld [vmem:[%s0 + $0x1f0] sm:$0xff]
  %v80 = vld [vmem:[%s0 + $0x1f8] sm:$0xff]
  %v81 = vld [vmem:[%s1] sm:$0xf]
  %v82 = vld [vmem:[%s1 + $0x4] sm:$0xf]
  %v83 = vld [vmem:[%s1 + $0x8] sm:$0xf]
  %v84 = vld [vmem:[%s1 + $0xc] sm:$0xf]
  %v85 = vld [vmem:[%s1 + $0x10] sm:$0xf]
  %v86 = vld [vmem:[%s1 + $0x14] sm:$0xf]
  %v87 = vld [vmem:[%s1 + $0x18] sm:$0xf]
  %v88 = vld [vmem:[%s1 + $0x1c] sm:$0xf]
  %v89 = vld [vmem:[%s1 + $0x20] sm:$0xf]
  %v90 = vld [vmem:[%s1 + $0x24] sm:$0xf]
  %v91 = vld [vmem:[%s1 + $0x28] sm:$0xf]
  %v92 = vld [vmem:[%s1 + $0x2c] sm:$0xf]
  %v93 = vld [vmem:[%s1 + $0x30] sm:$0xf]
  %v94 = vld [vmem:[%s1 + $0x34] sm:$0xf]
  %v95 = vld [vmem:[%s1 + $0x38] sm:$0xf]
  %v96 = vld [vmem:[%s1 + $0x3c] sm:$0xf]
  %v97 = vld [vmem:[%s1 + $0x40] sm:$0xf]
  %v98 = vld [vmem:[%s1 + $0x44] sm:$0xf]
  %v99 = vld [vmem:[%s2] sm:$0x1]
  %v101 = vlaneseq
  %v102 = vshrl.u32 %v101, 7
  %v103 = vsub.s32 0, %v102
  %v104 = vrot.slane %v99, %v103
  %v170 = vunpack.c.l.b16 %v17
  %v171 = vunpack.c.h.b16 %v17
  %v172 = vunpack.c.l.b16 %v18
  %v173 = vunpack.c.h.b16 %v18
  %v174 = vunpack.c.l.b16 %v19
  %v175 = vunpack.c.h.b16 %v19
  %v176 = vunpack.c.l.b16 %v20
  %v177 = vunpack.c.h.b16 %v20
  %v178 = vunpack.c.l.b16 %v21
  %v179 = vunpack.c.h.b16 %v21
  %v180 = vunpack.c.l.b16 %v22
  %v181 = vunpack.c.h.b16 %v22
  %v182 = vunpack.c.l.b16 %v23
  %v183 = vunpack.c.h.b16 %v23
  %v184 = vunpack.c.l.b16 %v24
  %v185 = vunpack.c.h.b16 %v24
  %v186 = vunpack.c.l.b16 %v25
  %v187 = vunpack.c.h.b16 %v25
  %v188 = vunpack.c.l.b16 %v26
  %v189 = vunpack.c.h.b16 %v26
  %v190 = vunpack.c.l.b16 %v27
  %v191 = vunpack.c.h.b16 %v27
  %v192 = vunpack.c.l.b16 %v28
  %v193 = vunpack.c.h.b16 %v28
  %v194 = vunpack.c.l.b16 %v29
  %v195 = vunpack.c.h.b16 %v29
  %v196 = vunpack.c.l.b16 %v30
  %v197 = vunpack.c.h.b16 %v30
  %v198 = vunpack.c.l.b16 %v31
  %v199 = vunpack.c.h.b16 %v31
  %v200 = vunpack.c.l.b16 %v32
  %v201 = vunpack.c.h.b16 %v32
  %v202 = vunpack.c.l.b16 %v33
  %v203 = vunpack.c.h.b16 %v33
  %v204 = vunpack.c.l.b16 %v34
  %v205 = vunpack.c.h.b16 %v34
  %v206 = vunpack.c.l.b16 %v35
  %v207 = vunpack.c.h.b16 %v35
  %v208 = vunpack.c.l.b16 %v36
  %v209 = vunpack.c.h.b16 %v36
  %v210 = vunpack.c.l.b16 %v37
  %v211 = vunpack.c.h.b16 %v37
  %v212 = vunpack.c.l.b16 %v38
  %v213 = vunpack.c.h.b16 %v38
  %v214 = vunpack.c.l.b16 %v39
  %v215 = vunpack.c.h.b16 %v39
  %v216 = vunpack.c.l.b16 %v40
  %v217 = vunpack.c.h.b16 %v40
  %v218 = vunpack.c.l.b16 %v41
  %v219 = vunpack.c.h.b16 %v41
  %v220 = vunpack.c.l.b16 %v42
  %v221 = vunpack.c.h.b16 %v42
  %v222 = vunpack.c.l.b16 %v43
  %v223 = vunpack.c.h.b16 %v43
  %v224 = vunpack.c.l.b16 %v44
  %v225 = vunpack.c.h.b16 %v44
  %v226 = vunpack.c.l.b16 %v45
  %v227 = vunpack.c.h.b16 %v45
  %v228 = vunpack.c.l.b16 %v46
  %v229 = vunpack.c.h.b16 %v46
  %v230 = vunpack.c.l.b16 %v47
  %v231 = vunpack.c.h.b16 %v47
  %v232 = vunpack.c.l.b16 %v48
  %v233 = vunpack.c.h.b16 %v48
  %v234 = vunpack.c.l.b16 %v49
  %v235 = vunpack.c.h.b16 %v49
  %v236 = vunpack.c.l.b16 %v50
  %v237 = vunpack.c.h.b16 %v50
  %v238 = vunpack.c.l.b16 %v51
  %v239 = vunpack.c.h.b16 %v51
  %v240 = vunpack.c.l.b16 %v52
  %v241 = vunpack.c.h.b16 %v52
  %v242 = vunpack.c.l.b16 %v53
  %v243 = vunpack.c.h.b16 %v53
  %v244 = vunpack.c.l.b16 %v54
  %v245 = vunpack.c.h.b16 %v54
  %v246 = vunpack.c.l.b16 %v55
  %v247 = vunpack.c.h.b16 %v55
  %v248 = vunpack.c.l.b16 %v56
  %v249 = vunpack.c.h.b16 %v56
  %v250 = vunpack.c.l.b16 %v57
  %v251 = vunpack.c.h.b16 %v57
  %v252 = vunpack.c.l.b16 %v58
  %v253 = vunpack.c.h.b16 %v58
  %v254 = vunpack.c.l.b16 %v59
  %v255 = vunpack.c.h.b16 %v59
  %v256 = vunpack.c.l.b16 %v60
  %v257 = vunpack.c.h.b16 %v60
  %v258 = vunpack.c.l.b16 %v61
  %v259 = vunpack.c.h.b16 %v61
  %v260 = vunpack.c.l.b16 %v62
  %v261 = vunpack.c.h.b16 %v62
  %v262 = vunpack.c.l.b16 %v63
  %v263 = vunpack.c.h.b16 %v63
  %v264 = vunpack.c.l.b16 %v64
  %v265 = vunpack.c.h.b16 %v64
  %v266 = vunpack.c.l.b16 %v65
  %v267 = vunpack.c.h.b16 %v65
  %v268 = vunpack.c.l.b16 %v66
  %v269 = vunpack.c.h.b16 %v66
  %v270 = vunpack.c.l.b16 %v67
  %v271 = vunpack.c.h.b16 %v67
  %v272 = vunpack.c.l.b16 %v68
  %v273 = vunpack.c.h.b16 %v68
  %v274 = vunpack.c.l.b16 %v69
  %v275 = vunpack.c.h.b16 %v69
  %v276 = vunpack.c.l.b16 %v70
  %v277 = vunpack.c.h.b16 %v70
  %v278 = vunpack.c.l.b16 %v71
  %v279 = vunpack.c.h.b16 %v71
  %v280 = vunpack.c.l.b16 %v72
  %v281 = vunpack.c.h.b16 %v72
  %v282 = vunpack.c.l.b16 %v73
  %v283 = vunpack.c.h.b16 %v73
  %v284 = vunpack.c.l.b16 %v74
  %v285 = vunpack.c.h.b16 %v74
  %v286 = vunpack.c.l.b16 %v75
  %v287 = vunpack.c.h.b16 %v75
  %v288 = vunpack.c.l.b16 %v76
  %v289 = vunpack.c.h.b16 %v76
  %v290 = vunpack.c.l.b16 %v77
  %v291 = vunpack.c.h.b16 %v77
  %v292 = vunpack.c.l.b16 %v78
  %v293 = vunpack.c.h.b16 %v78
  %v294 = vunpack.c.l.b16 %v79
  %v295 = vunpack.c.h.b16 %v79
  %v296 = vunpack.c.l.b16 %v80
  %v297 = vunpack.c.h.b16 %v80
  %v298 = vpack.c.b16 %v172, %v170
  %v299 = vpack.c.b16 %v173, %v171
  %v300 = vpack.c.b16 %v176, %v174
  %v301 = vpack.c.b16 %v177, %v175
  %v302 = vpack.c.b16 %v180, %v178
  %v303 = vpack.c.b16 %v181, %v179
  %v304 = vpack.c.b16 %v184, %v182
  %v305 = vpack.c.b16 %v185, %v183
  %v306 = vpack.c.b16 %v188, %v186
  %v307 = vpack.c.b16 %v189, %v187
  %v308 = vpack.c.b16 %v192, %v190
  %v309 = vpack.c.b16 %v193, %v191
  %v310 = vpack.c.b16 %v196, %v194
  %v311 = vpack.c.b16 %v197, %v195
  %v312 = vpack.c.b16 %v200, %v198
  %v313 = vpack.c.b16 %v201, %v199
  %v314 = vpack.c.b16 %v204, %v202
  %v315 = vpack.c.b16 %v205, %v203
  %v316 = vpack.c.b16 %v208, %v206
  %v317 = vpack.c.b16 %v209, %v207
  %v318 = vpack.c.b16 %v212, %v210
  %v319 = vpack.c.b16 %v213, %v211
  %v320 = vpack.c.b16 %v216, %v214
  %v321 = vpack.c.b16 %v217, %v215
  %v322 = vpack.c.b16 %v220, %v218
  %v323 = vpack.c.b16 %v221, %v219
  %v324 = vpack.c.b16 %v224, %v222
  %v325 = vpack.c.b16 %v225, %v223
  %v326 = vpack.c.b16 %v228, %v226
  %v327 = vpack.c.b16 %v229, %v227
  %v328 = vpack.c.b16 %v232, %v230
  %v329 = vpack.c.b16 %v233, %v231
  %v330 = vpack.c.b16 %v236, %v234
  %v331 = vpack.c.b16 %v237, %v235
  %v332 = vpack.c.b16 %v240, %v238
  %v333 = vpack.c.b16 %v241, %v239
  %v334 = vpack.c.b16 %v244, %v242
  %v335 = vpack.c.b16 %v245, %v243
  %v336 = vpack.c.b16 %v248, %v246
  %v337 = vpack.c.b16 %v249, %v247
  %v338 = vpack.c.b16 %v252, %v250
  %v339 = vpack.c.b16 %v253, %v251
  %v340 = vpack.c.b16 %v256, %v254
  %v341 = vpack.c.b16 %v257, %v255
  %v342 = vpack.c.b16 %v260, %v258
  %v343 = vpack.c.b16 %v261, %v259
  %v344 = vpack.c.b16 %v264, %v262
  %v345 = vpack.c.b16 %v265, %v263
  %v346 = vpack.c.b16 %v268, %v266
  %v347 = vpack.c.b16 %v269, %v267
  %v348 = vpack.c.b16 %v272, %v270
  %v349 = vpack.c.b16 %v273, %v271
  %v350 = vpack.c.b16 %v276, %v274
  %v351 = vpack.c.b16 %v277, %v275
  %v352 = vpack.c.b16 %v280, %v278
  %v353 = vpack.c.b16 %v281, %v279
  %v354 = vpack.c.b16 %v284, %v282
  %v355 = vpack.c.b16 %v285, %v283
  %v356 = vpack.c.b16 %v288, %v286
  %v357 = vpack.c.b16 %v289, %v287
  %v358 = vpack.c.b16 %v292, %v290
  %v359 = vpack.c.b16 %v293, %v291
  %v360 = vpack.c.b16 %v296, %v294
  %v361 = vpack.c.b16 %v297, %v295
  %v412 = vunpack.c.l.b16 %v81
  %v413 = vunpack.c.l.b16 %v82
  %v414 = vunpack.c.l.b16 %v83
  %v415 = vunpack.c.l.b16 %v84
  %v416 = vunpack.c.l.b16 %v85
  %v417 = vunpack.c.l.b16 %v86
  %v418 = vunpack.c.l.b16 %v87
  %v419 = vunpack.c.l.b16 %v88
  %v420 = vunpack.c.l.b16 %v89
  %v421 = vunpack.c.l.b16 %v90
  %v422 = vunpack.c.l.b16 %v91
  %v423 = vunpack.c.l.b16 %v92
  %v424 = vunpack.c.l.b16 %v93
  %v425 = vunpack.c.l.b16 %v94
  %v426 = vunpack.c.l.b16 %v95
  %v427 = vunpack.c.l.b16 %v96
  %v428 = vunpack.c.l.b16 %v97
  %v429 = vunpack.c.l.b16 %v98
  %v430 = vpack.c.b16 %v413, %v412
  %v431 = vpack.c.b16 %v415, %v414
  %v432 = vpack.c.b16 %v417, %v416
  %v433 = vpack.c.b16 %v419, %v418
  %v434 = vpack.c.b16 %v421, %v420
  %v435 = vpack.c.b16 %v423, %v422
  %v436 = vpack.c.b16 %v425, %v424
  %v437 = vpack.c.b16 %v427, %v426
  %v438 = vpack.c.b16 %v429, %v428
  %vm448 = vcmask 130048
  %v450 = vsel %vm448, %v299, 0
  %v453 = vsel %vm448, %v301, 0
  %v456 = vsel %vm448, %v303, 0
  %v459 = vsel %vm448, %v305, 0
  %v462 = vsel %vm448, %v307, 0
  %v465 = vsel %vm448, %v309, 0
  %v468 = vsel %vm448, %v311, 0
  %v471 = vsel %vm448, %v313, 0
  %v474 = vsel %vm448, %v315, 0
  %v477 = vsel %vm448, %v317, 0
  %v480 = vsel %vm448, %v319, 0
  %v483 = vsel %vm448, %v321, 0
  %v486 = vsel %vm448, %v323, 0
  %v489 = vsel %vm448, %v325, 0
  %v492 = vsel %vm448, %v327, 0
  %v495 = vsel %vm448, %v329, 0
  %v498 = vsel %vm448, %v331, 0
  %v501 = vsel %vm448, %v333, 0
  %v504 = vsel %vm448, %v335, 0
  %v507 = vsel %vm448, %v337, 0
  %v510 = vsel %vm448, %v339, 0
  %v513 = vsel %vm448, %v341, 0
  %v516 = vsel %vm448, %v343, 0
  %v519 = vsel %vm448, %v345, 0
  %v522 = vsel %vm448, %v347, 0
  %v525 = vsel %vm448, %v349, 0
  %v528 = vsel %vm448, %v351, 0
  %v531 = vsel %vm448, %v353, 0
  %v534 = vsel %vm448, %v355, 0
  %v537 = vsel %vm448, %v357, 0
  %v540 = vsel %vm448, %v359, 0
  %v543 = vsel %vm448, %v361, 0
  %545 = vmatprep.subr.bf16.mxu0 0
  %546 = vmatpush1.bf16.msra.mxu0 %v430
  %547 = vmatprep.subr.bf16.mxu0 0
  %548 = vmatpush1.bf16.msra.mxu0 %v431
  %549 = vmatprep.subr.bf16.mxu0 0
  %550 = vmatpush1.bf16.msra.mxu0 %v432
  %551 = vmatprep.subr.bf16.mxu0 0
  %552 = vmatpush1.bf16.msra.mxu0 %v433
  %553 = vmatprep.subr.bf16.mxu0 0
  %554 = vmatpush1.bf16.msra.mxu0 %v434
  %555 = vmatprep.subr.bf16.mxu0 0
  %556 = vmatpush1.bf16.msra.mxu0 %v435
  %557 = vmatprep.subr.bf16.mxu0 0
  %558 = vmatpush1.bf16.msra.mxu0 %v436
  %559 = vmatprep.subr.bf16.mxu0 0
  %560 = vmatpush1.bf16.msra.mxu0 %v437
  %561 = vmatprep.subr.bf16.mxu0 0
  %562 = vmatpush1.bf16.msra.mxu0 %v438
  %563 = vmatprep.subr.bf16.mxu0 0
  %564 = vmatpush1.bf16.msra.mxu0 0
  %565 = vmatprep.subr.bf16.mxu0 0
  %566 = vmatpush1.bf16.msra.mxu0 0
  %567 = vmatprep.subr.bf16.mxu0 0
  %568 = vmatpush1.bf16.msra.mxu0 0
  %569 = vmatprep.subr.bf16.mxu0 0
  %570 = vmatpush1.bf16.msra.mxu0 0
  %571 = vmatprep.subr.bf16.mxu0 0
  %572 = vmatpush1.bf16.msra.mxu0 0
  %573 = vmatprep.subr.bf16.mxu0 0
  %574 = vmatpush1.bf16.msra.mxu0 0
  %575 = vmatprep.subr.bf16.mxu0 0
  %576 = vmatpush1.bf16.msra.mxu0 0
  %577 = vmatprep.mubr.bf16.mxu0 %v450
  %578 = vmatmul.mubr.bf16.gmra.mrb[0].mxu0 %v298
  %v579 = vpop.f32.mrb[0].mxu0
  %v580 = vadd.f32 %v104, %v579
  %v581 = vpop.f32.mrb[0].mxu0
  %v582 = vpop.f32.mrb[0].mxu0
  %v583 = vadd.f32 %v104, %v582
  %v584 = vpop.f32.mrb[0].mxu0
  %585 = vmatprep.mubr.bf16.mxu0 %v453
  %586 = vmatmul.mubr.bf16.gmra.mrb[0].mxu0 %v300
  %v587 = vpop.f32.mrb[0].mxu0
  %v588 = vadd.f32 %v104, %v587
  %v589 = vpop.f32.mrb[0].mxu0
  %v590 = vpop.f32.mrb[0].mxu0
  %v591 = vadd.f32 %v104, %v590
  %v592 = vpop.f32.mrb[0].mxu0
  %593 = vmatprep.mubr.bf16.mxu0 %v456
  %594 = vmatmul.mubr.bf16.gmra.mrb[0].mxu0 %v302
  %v595 = vpop.f32.mrb[0].mxu0
  %v596 = vadd.f32 %v104, %v595
  %v597 = vpop.f32.mrb[0].mxu0
  %v598 = vpop.f32.mrb[0].mxu0
  %v599 = vadd.f32 %v104, %v598
  %v600 = vpop.f32.mrb[0].mxu0
  %601 = vmatprep.mubr.bf16.mxu0 %v459
  %602 = vmatmul.mubr.bf16.gmra.mrb[0].mxu0 %v304
  %v603 = vpop.f32.mrb[0].mxu0
  %v604 = vadd.f32 %v104, %v603
  %v605 = vpop.f32.mrb[0].mxu0
  %v606 = vpop.f32.mrb[0].mxu0
  %v607 = vadd.f32 %v104, %v606
  %v608 = vpop.f32.mrb[0].mxu0
  %609 = vmatprep.mubr.bf16.mxu0 %v462
  %610 = vmatmul.mubr.bf16.gmra.mrb[0].mxu0 %v306
  %v611 = vpop.f32.mrb[0].mxu0
  %v612 = vadd.f32 %v104, %v611
  %v613 = vpop.f32.mrb[0].mxu0
  %v614 = vpop.f32.mrb[0].mxu0
  %v615 = vadd.f32 %v104, %v614
  %v616 = vpop.f32.mrb[0].mxu0
  %617 = vmatprep.mubr.bf16.mxu0 %v465
  %618 = vmatmul.mubr.bf16.gmra.mrb[0].mxu0 %v308
  %v619 = vpop.f32.mrb[0].mxu0
  %v620 = vadd.f32 %v104, %v619
  %v621 = vpop.f32.mrb[0].mxu0
  %v622 = vpop.f32.mrb[0].mxu0
  %v623 = vadd.f32 %v104, %v622
  %v624 = vpop.f32.mrb[0].mxu0
  %625 = vmatprep.mubr.bf16.mxu0 %v468
  %626 = vmatmul.mubr.bf16.gmra.mrb[0].mxu0 %v310
  %v627 = vpop.f32.mrb[0].mxu0
  %v628 = vadd.f32 %v104, %v627
  %v629 = vpop.f32.mrb[0].mxu0
  %v630 = vpop.f32.mrb[0].mxu0
  %v631 = vadd.f32 %v104, %v630
  %v632 = vpop.f32.mrb[0].mxu0
  %633 = vmatprep.mubr.bf16.mxu0 %v471
  %634 = vmatmul.mubr.bf16.gmra.mrb[0].mxu0 %v312
  %v635 = vpop.f32.mrb[0].mxu0
  %v636 = vadd.f32 %v104, %v635
  %v637 = vpop.f32.mrb[0].mxu0
  %v638 = vpop.f32.mrb[0].mxu0
  %v639 = vadd.f32 %v104, %v638
  %v640 = vpop.f32.mrb[0].mxu0
  %641 = vmatprep.mubr.bf16.mxu0 %v474
  %642 = vmatmul.mubr.bf16.gmra.mrb[0].mxu0 %v314
  %v643 = vpop.f32.mrb[0].mxu0
  %v644 = vadd.f32 %v104, %v643
  %v645 = vpop.f32.mrb[0].mxu0
  %v646 = vpop.f32.mrb[0].mxu0
  %v647 = vadd.f32 %v104, %v646
  %v648 = vpop.f32.mrb[0].mxu0
  %649 = vmatprep.mubr.bf16.mxu0 %v477
  %650 = vmatmul.mubr.bf16.gmra.mrb[0].mxu0 %v316
  %v651 = vpop.f32.mrb[0].mxu0
  %v652 = vadd.f32 %v104, %v651
  %v653 = vpop.f32.mrb[0].mxu0
  %v654 = vpop.f32.mrb[0].mxu0
  %v655 = vadd.f32 %v104, %v654
  %v656 = vpop.f32.mrb[0].mxu0
  %657 = vmatprep.mubr.bf16.mxu0 %v480
  %658 = vmatmul.mubr.bf16.gmra.mrb[0].mxu0 %v318
  %v659 = vpop.f32.mrb[0].mxu0
  %v660 = vadd.f32 %v104, %v659
  %v661 = vpop.f32.mrb[0].mxu0
  %v662 = vpop.f32.mrb[0].mxu0
  %v663 = vadd.f32 %v104, %v662
  %v664 = vpop.f32.mrb[0].mxu0
  %665 = vmatprep.mubr.bf16.mxu0 %v483
  %666 = vmatmul.mubr.bf16.gmra.mrb[0].mxu0 %v320
  %v667 = vpop.f32.mrb[0].mxu0
  %v668 = vadd.f32 %v104, %v667
  %v669 = vpop.f32.mrb[0].mxu0
  %v670 = vpop.f32.mrb[0].mxu0
  %v671 = vadd.f32 %v104, %v670
  %v672 = vpop.f32.mrb[0].mxu0
  %673 = vmatprep.mubr.bf16.mxu0 %v486
  %674 = vmatmul.mubr.bf16.gmra.mrb[0].mxu0 %v322
  %v675 = vpop.f32.mrb[0].mxu0
  %v676 = vadd.f32 %v104, %v675
  %v677 = vpop.f32.mrb[0].mxu0
  %v678 = vpop.f32.mrb[0].mxu0
  %v679 = vadd.f32 %v104, %v678
  %v680 = vpop.f32.mrb[0].mxu0
  %681 = vmatprep.mubr.bf16.mxu0 %v489
  %682 = vmatmul.mubr.bf16.gmra.mrb[0].mxu0 %v324
  %v683 = vpop.f32.mrb[0].mxu0
  %v684 = vadd.f32 %v104, %v683
  %v685 = vpop.f32.mrb[0].mxu0
  %v686 = vpop.f32.mrb[0].mxu0
  %v687 = vadd.f32 %v104, %v686
  %v688 = vpop.f32.mrb[0].mxu0
  %689 = vmatprep.mubr.bf16.mxu0 %v492
  %690 = vmatmul.mubr.bf16.gmra.mrb[0].mxu0 %v326
  %v691 = vpop.f32.mrb[0].mxu0
  %v692 = vadd.f32 %v104, %v691
  %v693 = vpop.f32.mrb[0].mxu0
  %v694 = vpop.f32.mrb[0].mxu0
  %v695 = vadd.f32 %v104, %v694
  %v696 = vpop.f32.mrb[0].mxu0
  %697 = vmatprep.mubr.bf16.mxu0 %v495
  %698 = vmatmul.mubr.bf16.gmra.mrb[0].mxu0 %v328
  %v699 = vpop.f32.mrb[0].mxu0
  %v700 = vadd.f32 %v104, %v699
  %v701 = vpop.f32.mrb[0].mxu0
  %v702 = vpop.f32.mrb[0].mxu0
  %v703 = vadd.f32 %v104, %v702
  %v704 = vpop.f32.mrb[0].mxu0
  %705 = vmatprep.mubr.bf16.mxu0 %v498
  %706 = vmatmul.mubr.bf16.gmra.mrb[0].mxu0 %v330
  %v707 = vpop.f32.mrb[0].mxu0
  %v708 = vadd.f32 %v104, %v707
  %v709 = vpop.f32.mrb[0].mxu0
  %v710 = vpop.f32.mrb[0].mxu0
  %v711 = vadd.f32 %v104, %v710
  %v712 = vpop.f32.mrb[0].mxu0
  %713 = vmatprep.mubr.bf16.mxu0 %v501
  %714 = vmatmul.mubr.bf16.gmra.mrb[0].mxu0 %v332
  %v715 = vpop.f32.mrb[0].mxu0
  %v716 = vadd.f32 %v104, %v715
  %v717 = vpop.f32.mrb[0].mxu0
  %v718 = vpop.f32.mrb[0].mxu0
  %v719 = vadd.f32 %v104, %v718
  %v720 = vpop.f32.mrb[0].mxu0
  %721 = vmatprep.mubr.bf16.mxu0 %v504
  %722 = vmatmul.mubr.bf16.gmra.mrb[0].mxu0 %v334
  %v723 = vpop.f32.mrb[0].mxu0
  %v724 = vadd.f32 %v104, %v723
  %v725 = vpop.f32.mrb[0].mxu0
  %v726 = vpop.f32.mrb[0].mxu0
  %v727 = vadd.f32 %v104, %v726
  %v728 = vpop.f32.mrb[0].mxu0
  %729 = vmatprep.mubr.bf16.mxu0 %v507
  %730 = vmatmul.mubr.bf16.gmra.mrb[0].mxu0 %v336
  %v731 = vpop.f32.mrb[0].mxu0
  %v732 = vadd.f32 %v104, %v731
  %v733 = vpop.f32.mrb[0].mxu0
  %v734 = vpop.f32.mrb[0].mxu0
  %v735 = vadd.f32 %v104, %v734
  %v736 = vpop.f32.mrb[0].mxu0
  %737 = vmatprep.mubr.bf16.mxu0 %v510
  %738 = vmatmul.mubr.bf16.gmra.mrb[0].mxu0 %v338
  %v739 = vpop.f32.mrb[0].mxu0
  %v740 = vadd.f32 %v104, %v739
  %v741 = vpop.f32.mrb[0].mxu0
  %v742 = vpop.f32.mrb[0].mxu0
  %v743 = vadd.f32 %v104, %v742
  %v744 = vpop.f32.mrb[0].mxu0
  %745 = vmatprep.mubr.bf16.mxu0 %v513
  %746 = vmatmul.mubr.bf16.gmra.mrb[0].mxu0 %v340
  %v747 = vpop.f32.mrb[0].mxu0
  %v748 = vadd.f32 %v104, %v747
  %v749 = vpop.f32.mrb[0].mxu0
  %v750 = vpop.f32.mrb[0].mxu0
  %v751 = vadd.f32 %v104, %v750
  %v752 = vpop.f32.mrb[0].mxu0
  %753 = vmatprep.mubr.bf16.mxu0 %v516
  %754 = vmatmul.mubr.bf16.gmra.mrb[0].mxu0 %v342
  %v755 = vpop.f32.mrb[0].mxu0
  %v756 = vadd.f32 %v104, %v755
  %v757 = vpop.f32.mrb[0].mxu0
  %v758 = vpop.f32.mrb[0].mxu0
  %v759 = vadd.f32 %v104, %v758
  %v760 = vpop.f32.mrb[0].mxu0
  %761 = vmatprep.mubr.bf16.mxu0 %v519
  %762 = vmatmul.mubr.bf16.gmra.mrb[0].mxu0 %v344
  %v763 = vpop.f32.mrb[0].mxu0
  %v764 = vadd.f32 %v104, %v763
  %v765 = vpop.f32.mrb[0].mxu0
  %v766 = vpop.f32.mrb[0].mxu0
  %v767 = vadd.f32 %v104, %v766
  %v768 = vpop.f32.mrb[0].mxu0
  %769 = vmatprep.mubr.bf16.mxu0 %v522
  %770 = vmatmul.mubr.bf16.gmra.mrb[0].mxu0 %v346
  %v771 = vpop.f32.mrb[0].mxu0
  %v772 = vadd.f32 %v104, %v771
  %v773 = vpop.f32.mrb[0].mxu0
  %v774 = vpop.f32.mrb[0].mxu0
  %v775 = vadd.f32 %v104, %v774
  %v776 = vpop.f32.mrb[0].mxu0
  %777 = vmatprep.mubr.bf16.mxu0 %v525
  %778 = vmatmul.mubr.bf16.gmra.mrb[0].mxu0 %v348
  %v779 = vpop.f32.mrb[0].mxu0
  %v780 = vadd.f32 %v104, %v779
  %v781 = vpop.f32.mrb[0].mxu0
  %v782 = vpop.f32.mrb[0].mxu0
  %v783 = vadd.f32 %v104, %v782
  %v784 = vpop.f32.mrb[0].mxu0
  %785 = vmatprep.mubr.bf16.mxu0 %v528
  %786 = vmatmul.mubr.bf16.gmra.mrb[0].mxu0 %v350
  %v787 = vpop.f32.mrb[0].mxu0
  %v788 = vadd.f32 %v104, %v787
  %v789 = vpop.f32.mrb[0].mxu0
  %v790 = vpop.f32.mrb[0].mxu0
  %v791 = vadd.f32 %v104, %v790
  %v792 = vpop.f32.mrb[0].mxu0
  %793 = vmatprep.mubr.bf16.mxu0 %v531
  %794 = vmatmul.mubr.bf16.gmra.mrb[0].mxu0 %v352
  %v795 = vpop.f32.mrb[0].mxu0
  %v796 = vadd.f32 %v104, %v795
  %v797 = vpop.f32.mrb[0].mxu0
  %v798 = vpop.f32.mrb[0].mxu0
  %v799 = vadd.f32 %v104, %v798
  %v800 = vpop.f32.mrb[0].mxu0
  %801 = vmatprep.mubr.bf16.mxu0 %v534
  %802 = vmatmul.mubr.bf16.gmra.mrb[0].mxu0 %v354
  %v803 = vpop.f32.mrb[0].mxu0
  %v804 = vadd.f32 %v104, %v803
  %v805 = vpop.f32.mrb[0].mxu0
  %v806 = vpop.f32.mrb[0].mxu0
  %v807 = vadd.f32 %v104, %v806
  %v808 = vpop.f32.mrb[0].mxu0
  %809 = vmatprep.mubr.bf16.mxu0 %v537
  %810 = vmatmul.mubr.bf16.gmra.mrb[0].mxu0 %v356
  %v811 = vpop.f32.mrb[0].mxu0
  %v812 = vadd.f32 %v104, %v811
  %v813 = vpop.f32.mrb[0].mxu0
  %v814 = vpop.f32.mrb[0].mxu0
  %v815 = vadd.f32 %v104, %v814
  %v816 = vpop.f32.mrb[0].mxu0
  %817 = vmatprep.mubr.bf16.mxu0 %v540
  %818 = vmatmul.mubr.bf16.gmra.mrb[0].mxu0 %v358
  %v819 = vpop.f32.mrb[0].mxu0
  %v820 = vadd.f32 %v104, %v819
  %v821 = vpop.f32.mrb[0].mxu0
  %v822 = vpop.f32.mrb[0].mxu0
  %v823 = vadd.f32 %v104, %v822
  %v824 = vpop.f32.mrb[0].mxu0
  %825 = vmatprep.mubr.bf16.mxu0 %v543
  %826 = vmatmul.mubr.bf16.gmra.mrb[0].mxu0 %v360
  %v827 = vpop.f32.mrb[0].mxu0
  %v828 = vadd.f32 %v104, %v827
  %v829 = vpop.f32.mrb[0].mxu0
  %v830 = vpop.f32.mrb[0].mxu0
  %v831 = vadd.f32 %v104, %v830
  %v832 = vpop.f32.mrb[0].mxu0
  %833 = vdwg.mxu0
  %834 = vst [vmem:[%s3] sm:$0xff] %v580
  %835 = vst [vmem:[%s3 + $0x8] sm:$0xff] %v583
  %836 = vst [vmem:[%s3 + $0x10] sm:$0xff] %v588
  %837 = vst [vmem:[%s3 + $0x18] sm:$0xff] %v591
  %838 = vst [vmem:[%s3 + $0x20] sm:$0xff] %v596
  %839 = vst [vmem:[%s3 + $0x28] sm:$0xff] %v599
  %840 = vst [vmem:[%s3 + $0x30] sm:$0xff] %v604
  %841 = vst [vmem:[%s3 + $0x38] sm:$0xff] %v607
  %842 = vst [vmem:[%s3 + $0x40] sm:$0xff] %v612
  %843 = vst [vmem:[%s3 + $0x48] sm:$0xff] %v615
  %844 = vst [vmem:[%s3 + $0x50] sm:$0xff] %v620
  %845 = vst [vmem:[%s3 + $0x58] sm:$0xff] %v623
  %846 = vst [vmem:[%s3 + $0x60] sm:$0xff] %v628
  %847 = vst [vmem:[%s3 + $0x68] sm:$0xff] %v631
  %848 = vst [vmem:[%s3 + $0x70] sm:$0xff] %v636
  %849 = vst [vmem:[%s3 + $0x78] sm:$0xff] %v639
  %850 = vst [vmem:[%s3 + $0x80] sm:$0xff] %v644
  %851 = vst [vmem:[%s3 + $0x88] sm:$0xff] %v647
  %852 = vst [vmem:[%s3 + $0x90] sm:$0xff] %v652
  %853 = vst [vmem:[%s3 + $0x98] sm:$0xff] %v655
  %854 = vst [vmem:[%s3 + $0xa0] sm:$0xff] %v660
  %855 = vst [vmem:[%s3 + $0xa8] sm:$0xff] %v663
  %856 = vst [vmem:[%s3 + $0xb0] sm:$0xff] %v668
  %857 = vst [vmem:[%s3 + $0xb8] sm:$0xff] %v671
  %858 = vst [vmem:[%s3 + $0xc0] sm:$0xff] %v676
  %859 = vst [vmem:[%s3 + $0xc8] sm:$0xff] %v679
  %860 = vst [vmem:[%s3 + $0xd0] sm:$0xff] %v684
  %861 = vst [vmem:[%s3 + $0xd8] sm:$0xff] %v687
  %862 = vst [vmem:[%s3 + $0xe0] sm:$0xff] %v692
  %863 = vst [vmem:[%s3 + $0xe8] sm:$0xff] %v695
  %864 = vst [vmem:[%s3 + $0xf0] sm:$0xff] %v700
  %865 = vst [vmem:[%s3 + $0xf8] sm:$0xff] %v703
  %866 = vst [vmem:[%s3 + $0x100] sm:$0xff] %v708
  %867 = vst [vmem:[%s3 + $0x108] sm:$0xff] %v711
  %868 = vst [vmem:[%s3 + $0x110] sm:$0xff] %v716
  %869 = vst [vmem:[%s3 + $0x118] sm:$0xff] %v719
  %870 = vst [vmem:[%s3 + $0x120] sm:$0xff] %v724
  %871 = vst [vmem:[%s3 + $0x128] sm:$0xff] %v727
  %872 = vst [vmem:[%s3 + $0x130] sm:$0xff] %v732
  %873 = vst [vmem:[%s3 + $0x138] sm:$0xff] %v735
  %874 = vst [vmem:[%s3 + $0x140] sm:$0xff] %v740
  %875 = vst [vmem:[%s3 + $0x148] sm:$0xff] %v743
  %876 = vst [vmem:[%s3 + $0x150] sm:$0xff] %v748
  %877 = vst [vmem:[%s3 + $0x158] sm:$0xff] %v751
  %878 = vst [vmem:[%s3 + $0x160] sm:$0xff] %v756
  %879 = vst [vmem:[%s3 + $0x168] sm:$0xff] %v759
  %880 = vst [vmem:[%s3 + $0x170] sm:$0xff] %v764
  %881 = vst [vmem:[%s3 + $0x178] sm:$0xff] %v767
  %882 = vst [vmem:[%s3 + $0x180] sm:$0xff] %v772
  %883 = vst [vmem:[%s3 + $0x188] sm:$0xff] %v775
  %884 = vst [vmem:[%s3 + $0x190] sm:$0xff] %v780
  %885 = vst [vmem:[%s3 + $0x198] sm:$0xff] %v783
  %886 = vst [vmem:[%s3 + $0x1a0] sm:$0xff] %v788
  %887 = vst [vmem:[%s3 + $0x1a8] sm:$0xff] %v791
  %888 = vst [vmem:[%s3 + $0x1b0] sm:$0xff] %v796
  %889 = vst [vmem:[%s3 + $0x1b8] sm:$0xff] %v799
  %890 = vst [vmem:[%s3 + $0x1c0] sm:$0xff] %v804
  %891 = vst [vmem:[%s3 + $0x1c8] sm:$0xff] %v807
  %892 = vst [vmem:[%s3 + $0x1d0] sm:$0xff] %v812
  %893 = vst [vmem:[%s3 + $0x1d8] sm:$0xff] %v815
  %894 = vst [vmem:[%s3 + $0x1e0] sm:$0xff] %v820
  %895 = vst [vmem:[%s3 + $0x1e8] sm:$0xff] %v823
  %896 = vst [vmem:[%s3 + $0x1f0] sm:$0xff] %v828
  %897 = vst [vmem:[%s3 + $0x1f8] sm:$0xff] %v831
  %v898 = vmul.f32 %v580, %v580
  %v899 = vmul.f32 %v583, %v583
  %v900 = vmul.f32 %v588, %v588
  %v901 = vmul.f32 %v591, %v591
  %v902 = vmul.f32 %v596, %v596
  %v903 = vmul.f32 %v599, %v599
  %v904 = vmul.f32 %v604, %v604
  %v905 = vmul.f32 %v607, %v607
  %v906 = vmul.f32 %v612, %v612
  %v907 = vmul.f32 %v615, %v615
  %v908 = vmul.f32 %v620, %v620
  %v909 = vmul.f32 %v623, %v623
  %v910 = vmul.f32 %v628, %v628
  %v911 = vmul.f32 %v631, %v631
  %v912 = vmul.f32 %v636, %v636
  %v913 = vmul.f32 %v639, %v639
  %v914 = vmul.f32 %v644, %v644
  %v915 = vmul.f32 %v647, %v647
  %v916 = vmul.f32 %v652, %v652
  %v917 = vmul.f32 %v655, %v655
  %v918 = vmul.f32 %v660, %v660
  %v919 = vmul.f32 %v663, %v663
  %v920 = vmul.f32 %v668, %v668
  %v921 = vmul.f32 %v671, %v671
  %v922 = vmul.f32 %v676, %v676
  %v923 = vmul.f32 %v679, %v679
  %v924 = vmul.f32 %v684, %v684
  %v925 = vmul.f32 %v687, %v687
  %v926 = vmul.f32 %v692, %v692
  %v927 = vmul.f32 %v695, %v695
  %v928 = vmul.f32 %v700, %v700
  %v929 = vmul.f32 %v703, %v703
  %v930 = vmul.f32 %v708, %v708
  %v931 = vmul.f32 %v711, %v711
  %v932 = vmul.f32 %v716, %v716
  %v933 = vmul.f32 %v719, %v719
  %v934 = vmul.f32 %v724, %v724
  %v935 = vmul.f32 %v727, %v727
  %v936 = vmul.f32 %v732, %v732
  %v937 = vmul.f32 %v735, %v735
  %v938 = vmul.f32 %v740, %v740
  %v939 = vmul.f32 %v743, %v743
  %v940 = vmul.f32 %v748, %v748
  %v941 = vmul.f32 %v751, %v751
  %v942 = vmul.f32 %v756, %v756
  %v943 = vmul.f32 %v759, %v759
  %v944 = vmul.f32 %v764, %v764
  %v945 = vmul.f32 %v767, %v767
  %v946 = vmul.f32 %v772, %v772
  %v947 = vmul.f32 %v775, %v775
  %v948 = vmul.f32 %v780, %v780
  %v949 = vmul.f32 %v783, %v783
  %v950 = vmul.f32 %v788, %v788
  %v951 = vmul.f32 %v791, %v791
  %v952 = vmul.f32 %v796, %v796
  %v953 = vmul.f32 %v799, %v799
  %v954 = vmul.f32 %v804, %v804
  %v955 = vmul.f32 %v807, %v807
  %v956 = vmul.f32 %v812, %v812
  %v957 = vmul.f32 %v815, %v815
  %v958 = vmul.f32 %v820, %v820
  %v959 = vmul.f32 %v823, %v823
  %v960 = vmul.f32 %v828, %v828
  %v961 = vmul.f32 %v831, %v831
  %v962 = vadd.f32 %v580, %v583
  %v963 = vadd.f32 %v962, %v588
  %v964 = vadd.f32 %v963, %v591
  %v965 = vadd.f32 %v964, %v596
  %v966 = vadd.f32 %v965, %v599
  %v967 = vadd.f32 %v966, %v604
  %v968 = vadd.f32 %v967, %v607
  %v969 = vadd.f32 %v968, %v612
  %v970 = vadd.f32 %v969, %v615
  %v971 = vadd.f32 %v970, %v620
  %v972 = vadd.f32 %v971, %v623
  %v973 = vadd.f32 %v972, %v628
  %v974 = vadd.f32 %v973, %v631
  %v975 = vadd.f32 %v974, %v636
  %v976 = vadd.f32 %v975, %v639
  %v977 = vadd.f32 %v976, %v644
  %v978 = vadd.f32 %v977, %v647
  %v979 = vadd.f32 %v978, %v652
  %v980 = vadd.f32 %v979, %v655
  %v981 = vadd.f32 %v980, %v660
  %v982 = vadd.f32 %v981, %v663
  %v983 = vadd.f32 %v982, %v668
  %v984 = vadd.f32 %v983, %v671
  %v985 = vadd.f32 %v984, %v676
  %v986 = vadd.f32 %v985, %v679
  %v987 = vadd.f32 %v986, %v684
  %v988 = vadd.f32 %v987, %v687
  %v989 = vadd.f32 %v988, %v692
  %v990 = vadd.f32 %v989, %v695
  %v991 = vadd.f32 %v990, %v700
  %v992 = vadd.f32 %v991, %v703
  %v993 = vadd.f32 %v992, %v708
  %v994 = vadd.f32 %v993, %v711
  %v995 = vadd.f32 %v994, %v716
  %v996 = vadd.f32 %v995, %v719
  %v997 = vadd.f32 %v996, %v724
  %v998 = vadd.f32 %v997, %v727
  %v999 = vadd.f32 %v998, %v732
  %v1000 = vadd.f32 %v999, %v735
  %v1001 = vadd.f32 %v1000, %v740
  %v1002 = vadd.f32 %v1001, %v743
  %v1003 = vadd.f32 %v1002, %v748
  %v1004 = vadd.f32 %v1003, %v751
  %v1005 = vadd.f32 %v1004, %v756
  %v1006 = vadd.f32 %v1005, %v759
  %v1007 = vadd.f32 %v1006, %v764
  %v1008 = vadd.f32 %v1007, %v767
  %v1009 = vadd.f32 %v1008, %v772
  %v1010 = vadd.f32 %v1009, %v775
  %v1011 = vadd.f32 %v1010, %v780
  %v1012 = vadd.f32 %v1011, %v783
  %v1013 = vadd.f32 %v1012, %v788
  %v1014 = vadd.f32 %v1013, %v791
  %v1015 = vadd.f32 %v1014, %v796
  %v1016 = vadd.f32 %v1015, %v799
  %v1017 = vadd.f32 %v1016, %v804
  %v1018 = vadd.f32 %v1017, %v807
  %v1019 = vadd.f32 %v1018, %v812
  %v1020 = vadd.f32 %v1019, %v815
  %v1021 = vadd.f32 %v1020, %v820
  %v1022 = vadd.f32 %v1021, %v823
  %v1023 = vadd.f32 %v1022, %v828
  %v1024 = vadd.f32 %v1023, %v831
  %v1025 = vrot.slane %v1024, 4
  %v1026 = vadd.f32 %v1024, %v1025
  %v1027 = vrot.slane %v1026, 2
  %v1028 = vadd.f32 %v1026, %v1027
  %v1029 = vrot.slane %v1028, 1
  %v1030 = vadd.f32 %v1028, %v1029
  %v1031 = vadd.f32 %v898, %v899
  %v1032 = vadd.f32 %v1031, %v900
  %v1033 = vadd.f32 %v1032, %v901
  %v1034 = vadd.f32 %v1033, %v902
  %v1035 = vadd.f32 %v1034, %v903
  %v1036 = vadd.f32 %v1035, %v904
  %v1037 = vadd.f32 %v1036, %v905
  %v1038 = vadd.f32 %v1037, %v906
  %v1039 = vadd.f32 %v1038, %v907
  %v1040 = vadd.f32 %v1039, %v908
  %v1041 = vadd.f32 %v1040, %v909
  %v1042 = vadd.f32 %v1041, %v910
  %v1043 = vadd.f32 %v1042, %v911
  %v1044 = vadd.f32 %v1043, %v912
  %v1045 = vadd.f32 %v1044, %v913
  %v1046 = vadd.f32 %v1045, %v914
  %v1047 = vadd.f32 %v1046, %v915
  %v1048 = vadd.f32 %v1047, %v916
  %v1049 = vadd.f32 %v1048, %v917
  %v1050 = vadd.f32 %v1049, %v918
  %v1051 = vadd.f32 %v1050, %v919
  %v1052 = vadd.f32 %v1051, %v920
  %v1053 = vadd.f32 %v1052, %v921
  %v1054 = vadd.f32 %v1053, %v922
  %v1055 = vadd.f32 %v1054, %v923
  %v1056 = vadd.f32 %v1055, %v924
  %v1057 = vadd.f32 %v1056, %v925
  %v1058 = vadd.f32 %v1057, %v926
  %v1059 = vadd.f32 %v1058, %v927
  %v1060 = vadd.f32 %v1059, %v928
  %v1061 = vadd.f32 %v1060, %v929
  %v1062 = vadd.f32 %v1061, %v930
  %v1063 = vadd.f32 %v1062, %v931
  %v1064 = vadd.f32 %v1063, %v932
  %v1065 = vadd.f32 %v1064, %v933
  %v1066 = vadd.f32 %v1065, %v934
  %v1067 = vadd.f32 %v1066, %v935
  %v1068 = vadd.f32 %v1067, %v936
  %v1069 = vadd.f32 %v1068, %v937
  %v1070 = vadd.f32 %v1069, %v938
  %v1071 = vadd.f32 %v1070, %v939
  %v1072 = vadd.f32 %v1071, %v940
  %v1073 = vadd.f32 %v1072, %v941
  %v1074 = vadd.f32 %v1073, %v942
  %v1075 = vadd.f32 %v1074, %v943
  %v1076 = vadd.f32 %v1075, %v944
  %v1077 = vadd.f32 %v1076, %v945
  %v1078 = vadd.f32 %v1077, %v946
  %v1079 = vadd.f32 %v1078, %v947
  %v1080 = vadd.f32 %v1079, %v948
  %v1081 = vadd.f32 %v1080, %v949
  %v1082 = vadd.f32 %v1081, %v950
  %v1083 = vadd.f32 %v1082, %v951
  %v1084 = vadd.f32 %v1083, %v952
  %v1085 = vadd.f32 %v1084, %v953
  %v1086 = vadd.f32 %v1085, %v954
  %v1087 = vadd.f32 %v1086, %v955
  %v1088 = vadd.f32 %v1087, %v956
  %v1089 = vadd.f32 %v1088, %v957
  %v1090 = vadd.f32 %v1089, %v958
  %v1091 = vadd.f32 %v1090, %v959
  %v1092 = vadd.f32 %v1091, %v960
  %v1093 = vadd.f32 %v1092, %v961
  %v1094 = vrot.slane %v1093, 4
  %v1095 = vadd.f32 %v1093, %v1094
  %v1096 = vrot.slane %v1095, 2
  %v1097 = vadd.f32 %v1095, %v1096
  %v1098 = vrot.slane %v1097, 1
  %v1099 = vadd.f32 %v1097, %v1098
  %v1100 = vlaneseq
  %v1101 = vshrl.u32 %v1100, 7
  %vm1102 = vcmp.eq.s32.totalorder %v1101, 0
  %vm1103 = vcmp.eq.s32.totalorder %v1101, 1
  %v1104 = vsel %vm1103, 1, 0
  %vm1105 = vcmp.eq.s32.totalorder %v1104, 1
  %v1106 = vsel %vm1105, %v1099, 0.0
  %v1107 = vsel %vm1102, 1, 0
  %vm1108 = vcmp.eq.s32.totalorder %v1107, 1
  %v1109 = vsel %vm1108, %v1030, %v1106
  %1110 = vst [vmem:[%s4] sm:$0xff] %v1109
  // Predicated region
  $region14: #{generator_forward.15} parent=0 // pred_check
    _
  $region15: #{generator_forward.15} parent=0 // pred_check_branch
    %1112 = sbr.rel (0) target = $region17
  $region16: #{generator_forward.15} parent=0 // pred_region
    _
  $region17: #{generator_forward.15} parent=0 // pred_fallthru
    _
  // Predicated region
  $region18: #{generator_forward.15} parent=0 // pred_check
    _
  $region19: #{generator_forward.15} parent=0 // pred_check_branch
    %1114 = sbr.rel (0) target = $region21
  $region20: #{generator_forward.15} parent=0 // pred_region
    _
  $region21: #{generator_forward.15} parent=0 // pred_fallthru
    _
  // Predicated region
  $region22: #{generator_forward.15} parent=0 // pred_check
    _
  $region23: #{generator_forward.15} parent=0 // pred_check_branch
    %1116 = sbr.rel (0) target = $region25
  $region24: #{generator_forward.15} parent=0 // pred_region
    _
  $region25: #{generator_forward.15} parent=0 // pred_fallthru
    _
  // Predicated region
  $region26: #{generator_forward.15} parent=0 // pred_check
    _
  $region27: #{generator_forward.15} parent=0 // pred_check_branch
    %1118 = sbr.rel (0) target = $region29
  $region28: #{generator_forward.15} parent=0 // pred_region
    _
  $region29: #{generator_forward.15} parent=0 // pred_fallthru
    _

// kernel: tile.128
$region0: #{tile.128}
  #allocation0 [shape = 's32[1]{0}', space=sflag, size = 0x4, scoped, tag = 'scoped memory for tile.128']
  %s0 = inlined_call_operand.vmem [shape: f32[3], index: 0, kind: input, shape index: {}]
  %s1 = inlined_call_operand.vmem [shape: f32[4,3], index: 1, kind: output, shape index: {}]
  // Predicated region
  $region2: #{tile.128} parent=0 // pred_check
    _
  $region3: #{tile.128} parent=0 // pred_check_branch
    %3 = sbr.rel (0) target = $region5
  $region4: #{tile.128} parent=0 // pred_region
    _
  $region5: #{tile.128} parent=0 // pred_fallthru
    _
  %v4 = vld [vmem:[%s0] ss:$0 sm:$0xff]
  %5 = vst [vmem:[%s1] sm:$0xf] %v4

// kernel: tile.129
$region0: #{tile.129}
  %s0 = inlined_call_operand.vmem [shape: f32[4,3], index: 0, kind: input, shape index: {}]
  %s1 = inlined_call_operand.vmem [shape: f32[12], index: 1, kind: output, shape index: {}]
  $region1: #{tile.129} parent=0
    #allocation0 [shape = 'u8[4096]{0}', space=vmem, size = 0x1000, scoped, tag = 'scoped mem for output reshape']
    #allocation1 [shape = 'u8[4096]{0}', space=vmem, size = 0x1000, scoped, tag = 'scoped mem for input reshape']
    %s3 = sshllo.u32 0, 4
    %v4 = vld [vmem:[%s0] sm:%s3]
    %5 = vst [vmem:[#allocation1] sm:%s3] %v4
    %v6 = vld [vmem:[#allocation1] sm:$0x1]
    %vm7 = vcmask 23552
    %8 = vst.msk [vmem:[#allocation0] sm:$0x1] %vm7, %v6
    %s9 = scalar_lea.vmem [#allocation1], 3
    %v10 = vld [vmem:[%s9] sm:$0x1]
    %11 = vrot.lane.b32.xlu0 %v10, 9
    %v12 = vpop.permute.xlu0 %11
    %vm13 = vcmask 97352
    %14 = vst.msk [vmem:[#allocation0] sm:$0x1] %vm13, %v12
    %s15 = scalar_lea.vmem [#allocation1], 2
    %v16 = vld [vmem:[%s15] sm:$0x1]
    %17 = vrot.lane.b32.xlu0 %v16, 6
    %v18 = vpop.permute.xlu0 %17
    %vm19 = vcmask 72752
    %20 = vst.msk [vmem:[#allocation0] sm:$0x1] %vm19, %v18
    %s21 = scalar_lea.vmem [#allocation1], 1
    %v22 = vld [vmem:[%s21] sm:$0x1]
    %23 = vrot.lane.b32.xlu0 %v22, 3
    %v24 = vpop.permute.xlu0 %23
    %vm25 = vcmask 48152
    %26 = vst.msk [vmem:[#allocation0] sm:$0x1] %vm25, %v24
    %s28 = sshllo.u32 0, 1
    %v30 = vld [vmem:[#allocation0] sm:%s28]
    %s31 = sshllo.u32 0, 1
    %32 = vst [vmem:[%s1] sm:%s31] %v30

// kernel: generator_forward.17
$region0: #{generator_forward.17}
  #allocation0 [shape = 'u32[]', space=smem, size = 0x4, offset = 0x4, fixed_abs, tag = 'smem constant byte address 0x4 - core index']
  #allocation1 [shape = 'u32[144,128]{1,0:T(1,128)}', space=vmem, size = 0x12000, scoped, tag = 'internal scratch']
  %s0 = inlined_call_operand.vmem [shape: bf16[2048,72], index: 0, kind: input, shape index: {}]
  %s1 = inlined_call_operand.vmem [shape: bf16[72,128], index: 1, kind: input, shape index: {}]
  %s2 = inlined_call_operand.vmem [shape: f32[1,128], index: 2, kind: input, shape index: {}]
  %s3 = inlined_call_operand.vmem [shape: f32[2048,128], index: 3, kind: output, shape index: {}]
  %s4 = sld [smem:[#allocation0]]
  $region45: #{generator_forward.17} parent=0
    _
  %s6 = ssub.s32 1, %s4
  %s7 = scalar_select 0, %s6, %s4
  loop: start=0, step=1, limit=6
  $region2: #{generator_forward.17} parent=0 // loop_pre_header
    _
  $region3: #{generator_forward.17} parent=0 // loop_header
    %s9 = sphi 0, %s13
    %p10 = scmp.ge.s32.totalorder %s9, 6
    %s19 = sphi 0, %s21
    %s22 = sphi 0, %s19
    %s23 = sphi 0, %s22
    %s39 = sphi 0, %s23
    %s43 = sphi 0, %s43
    %s45 = sphi 0, %s43
    %s46 = sphi 0, %s45
    %s60 = sphi 0, %s46
    %s64 = sphi 0, %s64
    %s66 = sphi 0, %s64
    %s67 = sphi 0, %s66
    %s81 = sphi 0, %s67
    %s87 = sphi 0, %s89
    %s90 = sphi 0, %s87
    %s91 = sphi 0, %s90
    %s107 = sphi 0, %s91
  $region4: #{generator_forward.17} parent=0 // loop_header_branch
    %12 = sbr.rel (%p10) target = $region8
  $region5: #{generator_forward.17} parent=0 // loop_body
    %s14 = ssub.s32 %s9, 1
    %s15 = ssub.s32 %s9, 2
    %s16 = sadd.s32 %s9, 1
    %s17 = ssub.s32 %s9, %s16
    %p18 = scmp.eq.s32.totalorder %s17, 0
    %s20 = sadd.s32 %s19, 1
    %s21 = scalar_select %p18, %s19, %s20
    %p24 = pneg %p18
    %p25 = scmp.eq.s32.totalorder %s9, 3
    %p26 = por %p24, %p25
    %p27 = scmp.ne.s32.totalorder %s19, %s22
    %p28 = scmp.eq.s32.totalorder %s9, 0
    %p29 = por %p27, %p28
    %p30 = scmp.ne.s32.totalorder %s19, %s22
    %p31 = scmp.eq.s32.totalorder %s14, 3
    %p32 = por %p30, %p31
    %p33 = scmp.ne.s32.totalorder %s22, %s23
    %p34 = scmp.eq.s32.totalorder %s14, 0
    %p35 = por %p33, %p34
    %p36 = scmp.ne.s32.totalorder %s22, %s23
    %p37 = scmp.eq.s32.totalorder %s15, 3
    %p38 = por %p36, %p37
    %p40 = scmp.ne.s32.totalorder %s23, %s39
    %p41 = scmp.eq.s32.totalorder %s15, 0
    %p42 = por %p40, %p41
    %s44 = sadd.s32 %s43, 1
    %p47 = scmp.eq.s32.totalorder %s9, 3
    %p48 = scmp.ne.s32.totalorder %s43, %s45
    %p49 = scmp.eq.s32.totalorder %s9, 0
    %p50 = por %p48, %p49
    %p51 = scmp.ne.s32.totalorder %s43, %s45
    %p52 = scmp.eq.s32.totalorder %s14, 3
    %p53 = por %p51, %p52
    %p54 = scmp.ne.s32.totalorder %s45, %s46
    %p55 = scmp.eq.s32.totalorder %s14, 0
    %p56 = por %p54, %p55
    %p57 = scmp.ne.s32.totalorder %s45, %s46
    %p58 = scmp.eq.s32.totalorder %s15, 3
    %p59 = por %p57, %p58
    %p61 = scmp.ne.s32.totalorder %s46, %s60
    %p62 = scmp.eq.s32.totalorder %s15, 0
    %p63 = por %p61, %p62
    %s65 = sadd.s32 %s64, 1
    %p68 = scmp.eq.s32.totalorder %s9, 3
    %p69 = scmp.ne.s32.totalorder %s64, %s66
    %p70 = scmp.eq.s32.totalorder %s9, 0
    %p71 = por %p69, %p70
    %p72 = scmp.ne.s32.totalorder %s64, %s66
    %p73 = scmp.eq.s32.totalorder %s14, 3
    %p74 = por %p72, %p73
    %p75 = scmp.ne.s32.totalorder %s66, %s67
    %p76 = scmp.eq.s32.totalorder %s14, 0
    %p77 = por %p75, %p76
    %p78 = scmp.ne.s32.totalorder %s66, %s67
    %p79 = scmp.eq.s32.totalorder %s15, 3
    %p80 = por %p78, %p79
    %p82 = scmp.ne.s32.totalorder %s67, %s81
    %p83 = scmp.eq.s32.totalorder %s15, 0
    %p84 = por %p82, %p83
    %s85 = ssub.s32 %s9, %s16
    %p86 = scmp.eq.s32.totalorder %s85, 0
    %s88 = sadd.s32 %s87, 1
    %s89 = scalar_select %p86, %s87, %s88
    %p92 = pneg %p86
    %p93 = scmp.eq.s32.totalorder %s9, 3
    %p94 = por %p92, %p93
    %p95 = scmp.ne.s32.totalorder %s87, %s90
    %p96 = scmp.eq.s32.totalorder %s9, 0
    %p97 = por %p95, %p96
    %p98 = scmp.ne.s32.totalorder %s87, %s90
    %p99 = scmp.eq.s32.totalorder %s14, 3
    %p100 = por %p98, %p99
    %p101 = scmp.ne.s32.totalorder %s90, %s91
    %p102 = scmp.eq.s32.totalorder %s14, 0
    %p103 = por %p101, %p102
    %p104 = scmp.ne.s32.totalorder %s90, %s91
    %p105 = scmp.eq.s32.totalorder %s15, 3
    %p106 = por %p104, %p105
    %p108 = scmp.ne.s32.totalorder %s91, %s107
    %p109 = scmp.eq.s32.totalorder %s15, 0
    %p110 = por %p108, %p109
    %p111 = scmp.le.s32.totalorder 1, %s9
    %p112 = scmp.lt.s32.totalorder %s9, 5
    %p113 = pnand %p111, %p112
    %p114 = pneg %p113
    // Predicated region
    $region9: #{generator_forward.17} parent=5 // pred_check
      _
    $region10: #{generator_forward.17} parent=5 // pred_check_branch
      %116 = sbr.rel (%p113) target = $region12
    $region11: #{generator_forward.17} parent=5 // pred_region
      %s117 = ssub.s32 %s9, 1
      // Predicated region
      $region13: #{generator_forward.17} parent=11 // pred_check
        %p118 = pneg %p56
      $region14: #{generator_forward.17} parent=11 // pred_check_branch
        %120 = sbr.rel (%p118) target = $region16
      $region15: #{generator_forward.17} parent=11 // pred_region
        _
      $region16: #{generator_forward.17} parent=11 // pred_fallthru
        _
      // Predicated region
      $region17: #{generator_forward.17} parent=11 // pred_check
        %p121 = pneg %p77
      $region18: #{generator_forward.17} parent=11 // pred_check_branch
        %123 = sbr.rel (%p121) target = $region20
      $region19: #{generator_forward.17} parent=11 // pred_region
        _
      $region20: #{generator_forward.17} parent=11 // pred_fallthru
        _
    $region12: #{generator_forward.17} parent=5 // pred_fallthru
      _
    %p124 = scmp.lt.s32.totalorder %s9, 4
    // Predicated region
    $region21: #{generator_forward.17} parent=5 // pred_check
      %p125 = pneg %p124
    $region22: #{generator_forward.17} parent=5 // pred_check_branch
      %127 = sbr.rel (%p125) target = $region24
    $region23: #{generator_forward.17} parent=5 // pred_region
      // Predicated region
      $region25: #{generator_forward.17} parent=23 // pred_check
        %p128 = pneg %p29
      $region26: #{generator_forward.17} parent=23 // pred_check_branch
        %130 = sbr.rel (%p128) target = $region28
      $region27: #{generator_forward.17} parent=23 // pred_region
        %s131 = smul.u32 64, %s9
        %p132 = scmp.lt.s32.totalorder %s131, 255
        %s133 = scalar_select %p132, %s131, 255
        %s134 = smul.addr %s133, 4
        %s135 = scalar_lea.vmem %s0, %s134
        %s136 = smul.u32 64, %s9
      $region28: #{generator_forward.17} parent=23 // pred_fallthru
        _
    $region24: #{generator_forward.17} parent=5 // pred_fallthru
      _
    %p137 = scmp.le.s32.totalorder 1, %s9
    %p138 = scmp.lt.s32.totalorder %s9, 5
    %p139 = pnand %p137, %p138
    %p140 = pneg %p139
    // Predicated region
    $region29: #{generator_forward.17} parent=5 // pred_check
      _
    $region30: #{generator_forward.17} parent=5 // pred_check_branch
      %142 = sbr.rel (%p139) target = $region32
    $region31: #{generator_forward.17} parent=5 // pred_region
      %s143 = ssub.s32 %s9, 1
      %s144 = smul.u32 64, %s14
      %p145 = scmp.lt.s32.totalorder %s144, 255
      %s146 = scalar_select %p145, %s144, 255
      %s147 = smul.addr %s146, 4
      %s148 = scalar_lea.vmem %s0, %s147
      %p149 = pneg %p35
      %p150 = pneg %p32
      %p151 = pneg %p56
      %p152 = pneg %p53
      %p153 = pneg %p77
      %p154 = pneg %p74
      %p155 = pneg %p103
      %p156 = pneg %p100
      %s157 = smul.u32 64, %s14
      %p158 = scmp.lt.s32.totalorder %s157, 255
      %s159 = scalar_select %p158, %s157, 255
      %s160 = smul.addr %s159, 8
      %s161 = scalar_lea.vmem %s3, %s160
      %s162 = smul.u32 64, %s14
      %p163 = scmp.lt.s32.totalorder %s162, 255
      %s164 = scalar_select %p163, %s162, 255
      %s165 = smul.addr %s164, 4
      %s166 = scalar_lea.vmem %s0, %s165
      %s167 = smul.u32 64, %s14
      %s168 = smul.u32 64, %s14
      %p169 = scmp.lt.s32.totalorder %s168, 255
      %s170 = scalar_select %p169, %s168, 255
      %s171 = smul.addr %s170, 8
      %s172 = scalar_lea.vmem %s3, %s171
      %s173 = smul.u32 64, %s14
      %v175 = vld [vmem:[%s166] sm:$0xf]
      %v176 = vld [vmem:[%s166 + $0x4] sm:$0xf]
      %v177 = vld [vmem:[%s166 + $0x8] sm:$0xf]
      %v178 = vld [vmem:[%s166 + $0xc] sm:$0xf]
      %v179 = vld [vmem:[%s166 + $0x10] sm:$0xf]
      %v180 = vld [vmem:[%s166 + $0x14] sm:$0xf]
      %v181 = vld [vmem:[%s166 + $0x18] sm:$0xf]
      %v182 = vld [vmem:[%s166 + $0x1c] sm:$0xf]
      %v183 = vld [vmem:[%s166 + $0x20] sm:$0xf]
      %v184 = vld [vmem:[%s166 + $0x24] sm:$0xf]
      %v185 = vld [vmem:[%s166 + $0x28] sm:$0xf]
      %v186 = vld [vmem:[%s166 + $0x2c] sm:$0xf]
      %v187 = vld [vmem:[%s166 + $0x30] sm:$0xf]
      %v188 = vld [vmem:[%s166 + $0x34] sm:$0xf]
      %v189 = vld [vmem:[%s166 + $0x38] sm:$0xf]
      %v190 = vld [vmem:[%s166 + $0x3c] sm:$0xf]
      %v191 = vld [vmem:[%s166 + $0x40] sm:$0xf]
      %v192 = vld [vmem:[%s166 + $0x44] sm:$0xf]
      %v193 = vld [vmem:[%s166 + $0x48] sm:$0xf]
      %v194 = vld [vmem:[%s166 + $0x4c] sm:$0xf]
      %v195 = vld [vmem:[%s166 + $0x50] sm:$0xf]
      %v196 = vld [vmem:[%s166 + $0x54] sm:$0xf]
      %v197 = vld [vmem:[%s166 + $0x58] sm:$0xf]
      %v198 = vld [vmem:[%s166 + $0x5c] sm:$0xf]
      %v199 = vld [vmem:[%s166 + $0x60] sm:$0xf]
      %v200 = vld [vmem:[%s166 + $0x64] sm:$0xf]
      %v201 = vld [vmem:[%s166 + $0x68] sm:$0xf]
      %v202 = vld [vmem:[%s166 + $0x6c] sm:$0xf]
      %v203 = vld [vmem:[%s166 + $0x70] sm:$0xf]
      %v204 = vld [vmem:[%s166 + $0x74] sm:$0xf]
      %v205 = vld [vmem:[%s166 + $0x78] sm:$0xf]
      %v206 = vld [vmem:[%s166 + $0x7c] sm:$0xf]
      %v207 = vld [vmem:[%s166 + $0x80] sm:$0xf]
      %v208 = vld [vmem:[%s166 + $0x84] sm:$0xf]
      %v209 = vld [vmem:[%s166 + $0x88] sm:$0xf]
      %v210 = vld [vmem:[%s166 + $0x8c] sm:$0xf]
      %v211 = vld [vmem:[%s166 + $0x90] sm:$0xf]
      %v212 = vld [vmem:[%s166 + $0x94] sm:$0xf]
      %v213 = vld [vmem:[%s166 + $0x98] sm:$0xf]
      %v214 = vld [vmem:[%s166 + $0x9c] sm:$0xf]
      %v215 = vld [vmem:[%s166 + $0xa0] sm:$0xf]
      %v216 = vld [vmem:[%s166 + $0xa4] sm:$0xf]
      %v217 = vld [vmem:[%s166 + $0xa8] sm:$0xf]
      %v218 = vld [vmem:[%s166 + $0xac] sm:$0xf]
      %v219 = vld [vmem:[%s166 + $0xb0] sm:$0xf]
      %v220 = vld [vmem:[%s166 + $0xb4] sm:$0xf]
      %v221 = vld [vmem:[%s166 + $0xb8] sm:$0xf]
      %v222 = vld [vmem:[%s166 + $0xbc] sm:$0xf]
      %v223 = vld [vmem:[%s166 + $0xc0] sm:$0xf]
      %v224 = vld [vmem:[%s166 + $0xc4] sm:$0xf]
      %v225 = vld [vmem:[%s166 + $0xc8] sm:$0xf]
      %v226 = vld [vmem:[%s166 + $0xcc] sm:$0xf]
      %v227 = vld [vmem:[%s166 + $0xd0] sm:$0xf]
      %v228 = vld [vmem:[%s166 + $0xd4] sm:$0xf]
      %v229 = vld [vmem:[%s166 + $0xd8] sm:$0xf]
      %v230 = vld [vmem:[%s166 + $0xdc] sm:$0xf]
      %v231 = vld [vmem:[%s166 + $0xe0] sm:$0xf]
      %v232 = vld [vmem:[%s166 + $0xe4] sm:$0xf]
      %v233 = vld [vmem:[%s166 + $0xe8] sm:$0xf]
      %v234 = vld [vmem:[%s166 + $0xec] sm:$0xf]
      %v235 = vld [vmem:[%s166 + $0xf0] sm:$0xf]
      %v236 = vld [vmem:[%s166 + $0xf4] sm:$0xf]
      %v237 = vld [vmem:[%s166 + $0xf8] sm:$0xf]
      %v238 = vld [vmem:[%s166 + $0xfc] sm:$0xf]
      %v239 = vld [vmem:[%s1] sm:$0xf]
      %v240 = vld [vmem:[%s1 + $0x4] sm:$0xf]
      %v241 = vld [vmem:[%s1 + $0x8] sm:$0xf]
      %v242 = vld [vmem:[%s1 + $0xc] sm:$0xf]
      %v243 = vld [vmem:[%s1 + $0x10] sm:$0xf]
      %v244 = vld [vmem:[%s1 + $0x14] sm:$0xf]
      %v245 = vld [vmem:[%s1 + $0x18] sm:$0xf]
      %v246 = vld [vmem:[%s1 + $0x1c] sm:$0xf]
      %v247 = vld [vmem:[%s1 + $0x20] sm:$0xf]
      %v248 = vld [vmem:[%s2] sm:$0x1]
      %v250 = vlaneseq
      %v251 = vshrl.u32 %v250, 7
      %v252 = vsub.s32 0, %v251
      %v253 = vrot.slane %v248, %v252
      %v319 = vunpack.c.l.b16 %v175
      %v320 = vunpack.c.l.b16 %v176
      %v321 = vunpack.c.l.b16 %v177
      %v322 = vunpack.c.l.b16 %v178
      %v323 = vunpack.c.l.b16 %v179
      %v324 = vunpack.c.l.b16 %v180
      %v325 = vunpack.c.l.b16 %v181
      %v326 = vunpack.c.l.b16 %v182
      %v327 = vunpack.c.l.b16 %v183
      %v328 = vunpack.c.l.b16 %v184
      %v329 = vunpack.c.l.b16 %v185
      %v330 = vunpack.c.l.b16 %v186
      %v331 = vunpack.c.l.b16 %v187
      %v332 = vunpack.c.l.b16 %v188
      %v333 = vunpack.c.l.b16 %v189
      %v334 = vunpack.c.l.b16 %v190
      %v335 = vunpack.c.l.b16 %v191
      %v336 = vunpack.c.l.b16 %v192
      %v337 = vunpack.c.l.b16 %v193
      %v338 = vunpack.c.l.b16 %v194
      %v339 = vunpack.c.l.b16 %v195
      %v340 = vunpack.c.l.b16 %v196
      %v341 = vunpack.c.l.b16 %v197
      %v342 = vunpack.c.l.b16 %v198
      %v343 = vunpack.c.l.b16 %v199
      %v344 = vunpack.c.l.b16 %v200
      %v345 = vunpack.c.l.b16 %v201
      %v346 = vunpack.c.l.b16 %v202
      %v347 = vunpack.c.l.b16 %v203
      %v348 = vunpack.c.l.b16 %v204
      %v349 = vunpack.c.l.b16 %v205
      %v350 = vunpack.c.l.b16 %v206
      %v351 = vunpack.c.l.b16 %v207
      %v352 = vunpack.c.l.b16 %v208
      %v353 = vunpack.c.l.b16 %v209
      %v354 = vunpack.c.l.b16 %v210
      %v355 = vunpack.c.l.b16 %v211
      %v356 = vunpack.c.l.b16 %v212
      %v357 = vunpack.c.l.b16 %v213
      %v358 = vunpack.c.l.b16 %v214
      %v359 = vunpack.c.l.b16 %v215
      %v360 = vunpack.c.l.b16 %v216
      %v361 = vunpack.c.l.b16 %v217
      %v362 = vunpack.c.l.b16 %v218
      %v363 = vunpack.c.l.b16 %v219
      %v364 = vunpack.c.l.b16 %v220
      %v365 = vunpack.c.l.b16 %v221
      %v366 = vunpack.c.l.b16 %v222
      %v367 = vunpack.c.l.b16 %v223
      %v368 = vunpack.c.l.b16 %v224
      %v369 = vunpack.c.l.b16 %v225
      %v370 = vunpack.c.l.b16 %v226
      %v371 = vunpack.c.l.b16 %v227
      %v372 = vunpack.c.l.b16 %v228
      %v373 = vunpack.c.l.b16 %v229
      %v374 = vunpack.c.l.b16 %v230
      %v375 = vunpack.c.l.b16 %v231
      %v376 = vunpack.c.l.b16 %v232
      %v377 = vunpack.c.l.b16 %v233
      %v378 = vunpack.c.l.b16 %v234
      %v379 = vunpack.c.l.b16 %v235
      %v380 = vunpack.c.l.b16 %v236
      %v381 = vunpack.c.l.b16 %v237
      %v382 = vunpack.c.l.b16 %v238
      %v383 = vpack.c.b16 %v320, %v319
      %v384 = vpack.c.b16 %v322, %v321
      %v385 = vpack.c.b16 %v324, %v323
      %v386 = vpack.c.b16 %v326, %v325
      %v387 = vpack.c.b16 %v328, %v327
      %v388 = vpack.c.b16 %v330, %v329
      %v389 = vpack.c.b16 %v332, %v331
      %v390 = vpack.c.b16 %v334, %v333
      %v391 = vpack.c.b16 %v336, %v335
      %v392 = vpack.c.b16 %v338, %v337
      %v393 = vpack.c.b16 %v340, %v339
      %v394 = vpack.c.b16 %v342, %v341
      %v395 = vpack.c.b16 %v344, %v343
      %v396 = vpack.c.b16 %v346, %v345
      %v397 = vpack.c.b16 %v348, %v347
      %v398 = vpack.c.b16 %v350, %v349
      %v399 = vpack.c.b16 %v352, %v351
      %v400 = vpack.c.b16 %v354, %v353
      %v401 = vpack.c.b16 %v356, %v355
      %v402 = vpack.c.b16 %v358, %v357
      %v403 = vpack.c.b16 %v360, %v359
      %v404 = vpack.c.b16 %v362, %v361
      %v405 = vpack.c.b16 %v364, %v363
      %v406 = vpack.c.b16 %v366, %v365
      %v407 = vpack.c.b16 %v368, %v367
      %v408 = vpack.c.b16 %v370, %v369
      %v409 = vpack.c.b16 %v372, %v371
      %v410 = vpack.c.b16 %v374, %v373
      %v411 = vpack.c.b16 %v376, %v375
      %v412 = vpack.c.b16 %v378, %v377
      %v413 = vpack.c.b16 %v380, %v379
      %v414 = vpack.c.b16 %v382, %v381
      %v424 = vunpack.c.l.b16 %v239
      %v425 = vunpack.c.l.b16 %v240
      %v426 = vunpack.c.l.b16 %v241
      %v427 = vunpack.c.l.b16 %v242
      %v428 = vunpack.c.l.b16 %v243
      %v429 = vunpack.c.l.b16 %v244
      %v430 = vunpack.c.l.b16 %v245
      %v431 = vunpack.c.l.b16 %v246
      %v432 = vunpack.c.l.b16 %v247
      %v433 = vpack.c.b16 %v425, %v424
      %v434 = vpack.c.b16 %v427, %v426
      %v435 = vpack.c.b16 %v429, %v428
      %v436 = vpack.c.b16 %v431, %v430
      %v437 = vpack.c.b16 %v432, %v432
      %vm442 = vcmask 588800
      %v444 = vsel %vm442, %v383, 0
      %v447 = vsel %vm442, %v384, 0
      %v450 = vsel %vm442, %v385, 0
      %v453 = vsel %vm442, %v386, 0
      %v456 = vsel %vm442, %v387, 0
      %v459 = vsel %vm442, %v388, 0
      %v462 = vsel %vm442, %v389, 0
      %v465 = vsel %vm442, %v390, 0
      %v468 = vsel %vm442, %v391, 0
      %v471 = vsel %vm442, %v392, 0
      %v474 = vsel %vm442, %v393, 0
      %v477 = vsel %vm442, %v394, 0
      %v480 = vsel %vm442, %v395, 0
      %v483 = vsel %vm442, %v396, 0
      %v486 = vsel %vm442, %v397, 0
      %v489 = vsel %vm442, %v398, 0
      %v492 = vsel %vm442, %v399, 0
      %v495 = vsel %vm442, %v400, 0
      %v498 = vsel %vm442, %v401, 0
      %v501 = vsel %vm442, %v402, 0
      %v504 = vsel %vm442, %v403, 0
      %v507 = vsel %vm442, %v404, 0
      %v510 = vsel %vm442, %v405, 0
      %v513 = vsel %vm442, %v406, 0
      %v516 = vsel %vm442, %v407, 0
      %v519 = vsel %vm442, %v408, 0
      %v522 = vsel %vm442, %v409, 0
      %v525 = vsel %vm442, %v410, 0
      %v528 = vsel %vm442, %v411, 0
      %v531 = vsel %vm442, %v412, 0
      %v534 = vsel %vm442, %v413, 0
      %v537 = vsel %vm442, %v414, 0
      %vm539 = vcmask 1043456
      %v541 = vsel %vm539, %v437, 0
      %543 = vmatprep.subr.bf16.mxu0 0
      %544 = vmatpush1.bf16.msra.mxu0 %v433
      %545 = vmatprep.subr.bf16.mxu0 0
      %546 = vmatpush1.bf16.msra.mxu0 %v434
      %547 = vmatprep.subr.bf16.mxu0 0
      %548 = vmatpush1.bf16.msra.mxu0 %v435
      %549 = vmatprep.subr.bf16.mxu0 0
      %550 = vmatpush1.bf16.msra.mxu0 %v436
      %551 = vmatprep.subr.bf16.mxu0 0
      %552 = vmatpush1.bf16.msra.mxu0 %v541
      %553 = vmatprep.subr.bf16.mxu0 0
      %554 = vmatpush1.bf16.msra.mxu0 0
      %555 = vmatprep.subr.bf16.mxu0 0
      %556 = vmatpush1.bf16.msra.mxu0 0
      %557 = vmatprep.subr.bf16.mxu0 0
      %558 = vmatpush1.bf16.msra.mxu0 0
      %559 = vmatprep.subr.bf16.mxu0 0
      %560 = vmatpush1.bf16.msra.mxu0 0
      %561 = vmatprep.subr.bf16.mxu0 0
      %562 = vmatpush1.bf16.msra.mxu0 0
      %563 = vmatprep.subr.bf16.mxu0 0
      %564 = vmatpush1.bf16.msra.mxu0 0
      %565 = vmatprep.subr.bf16.mxu0 0
      %566 = vmatpush1.bf16.msra.mxu0 0
      %567 = vmatprep.subr.bf16.mxu0 0
      %568 = vmatpush1.bf16.msra.mxu0 0
      %569 = vmatprep.subr.bf16.mxu0 0
      %570 = vmatpush1.bf16.msra.mxu0 0
      %571 = vmatprep.subr.bf16.mxu0 0
      %572 = vmatpush1.bf16.msra.mxu0 0
      %573 = vmatprep.subr.bf16.mxu0 0
      %574 = vmatpush1.bf16.msra.mxu0 0
      %575 = vmatprep.mubr.bf16.mxu0 0
      %576 = vmatmul.mubr.bf16.gmra.mrb[0].mxu0 %v444
      %v577 = vpop.f32.mrb[0].mxu0
      %v578 = vadd.f32 %v253, %v577
      %v579 = vpop.f32.mrb[0].mxu0
      %v580 = vpop.f32.mrb[0].mxu0
      %v581 = vadd.f32 %v253, %v580
      %v582 = vpop.f32.mrb[0].mxu0
      %583 = vmatprep.mubr.bf16.mxu0 0
      %584 = vmatmul.mubr.bf16.gmra.mrb[0].mxu0 %v447
      %v585 = vpop.f32.mrb[0].mxu0
      %v586 = vadd.f32 %v253, %v585
      %v587 = vpop.f32.mrb[0].mxu0
      %v588 = vpop.f32.mrb[0].mxu0
      %v589 = vadd.f32 %v253, %v588
      %v590 = vpop.f32.mrb[0].mxu0
      %591 = vmatprep.mubr.bf16.mxu0 0
      %592 = vmatmul.mubr.bf16.gmra.mrb[0].mxu0 %v450
      %v593 = vpop.f32.mrb[0].mxu0
      %v594 = vadd.f32 %v253, %v593
      %v595 = vpop.f32.mrb[0].mxu0
      %v596 = vpop.f32.mrb[0].mxu0
      %v597 = vadd.f32 %v253, %v596
      %v598 = vpop.f32.mrb[0].mxu0
      %599 = vmatprep.mubr.bf16.mxu0 0
      %600 = vmatmul.mubr.bf16.gmra.mrb[0].mxu0 %v453
      %v601 = vpop.f32.mrb[0].mxu0
      %v602 = vadd.f32 %v253, %v601
      %v603 = vpop.f32.mrb[0].mxu0
      %v604 = vpop.f32.mrb[0].mxu0
      %v605 = vadd.f32 %v253, %v604
      %v606 = vpop.f32.mrb[0].mxu0
      %607 = vmatprep.mubr.bf16.mxu0 0
      %608 = vmatmul.mubr.bf16.gmra.mrb[0].mxu0 %v456
      %v609 = vpop.f32.mrb[0].mxu0
      %v610 = vadd.f32 %v253, %v609
      %v611 = vpop.f32.mrb[0].mxu0
      %v612 = vpop.f32.mrb[0].mxu0
      %v613 = vadd.f32 %v253, %v612
      %v614 = vpop.f32.mrb[0].mxu0
      %615 = vmatprep.mubr.bf16.mxu0 0
      %616 = vmatmul.mubr.bf16.gmra.mrb[0].mxu0 %v459
      %v617 = vpop.f32.mrb[0].mxu0
      %v618 = vadd.f32 %v253, %v617
      %v619 = vpop.f32.mrb[0].mxu0
      %v620 = vpop.f32.mrb[0].mxu0
      %v621 = vadd.f32 %v253, %v620
      %v622 = vpop.f32.mrb[0].mxu0
      %623 = vmatprep.mubr.bf16.mxu0 0
      %624 = vmatmul.mubr.bf16.gmra.mrb[0].mxu0 %v462
      %v625 = vpop.f32.mrb[0].mxu0
      %v626 = vadd.f32 %v253, %v625
      %v627 = vpop.f32.mrb[0].mxu0
      %v628 = vpop.f32.mrb[0].mxu0
      %v629 = vadd.f32 %v253, %v628
      %v630 = vpop.f32.mrb[0].mxu0
      %631 = vmatprep.mubr.bf16.mxu0 0
      %632 = vmatmul.mubr.bf16.gmra.mrb[0].mxu0 %v465
      %v633 = vpop.f32.mrb[0].mxu0
      %v634 = vadd.f32 %v253, %v633
      %v635 = vpop.f32.mrb[0].mxu0
      %v636 = vpop.f32.mrb[0].mxu0
      %v637 = vadd.f32 %v253, %v636
      %v638 = vpop.f32.mrb[0].mxu0
      %639 = vmatprep.mubr.bf16.mxu0 0
      %640 = vmatmul.mubr.bf16.gmra.mrb[0].mxu0 %v468
      %v641 = vpop.f32.mrb[0].mxu0
      %v642 = vadd.f32 %v253, %v641
      %v643 = vpop.f32.mrb[0].mxu0
      %v644 = vpop.f32.mrb[0].mxu0
      %v645 = vadd.f32 %v253, %v644
      %v646 = vpop.f32.mrb[0].mxu0
      %647 = vmatprep.mubr.bf16.mxu0 0
      %648 = vmatmul.mubr.bf16.gmra.mrb[0].mxu0 %v471
      %v649 = vpop.f32.mrb[0].mxu0
      %v650 = vadd.f32 %v253, %v649
      %v651 = vpop.f32.mrb[0].mxu0
      %v652 = vpop.f32.mrb[0].mxu0
      %v653 = vadd.f32 %v253, %v652
      %v654 = vpop.f32.mrb[0].mxu0
      %655 = vmatprep.mubr.bf16.mxu0 0
      %656 = vmatmul.mubr.bf16.gmra.mrb[0].mxu0 %v474
      %v657 = vpop.f32.mrb[0].mxu0
      %v658 = vadd.f32 %v253, %v657
      %v659 = vpop.f32.mrb[0].mxu0
      %v660 = vpop.f32.mrb[0].mxu0
      %v661 = vadd.f32 %v253, %v660
      %v662 = vpop.f32.mrb[0].mxu0
      %663 = vmatprep.mubr.bf16.mxu0 0
      %664 = vmatmul.mubr.bf16.gmra.mrb[0].mxu0 %v477
      %v665 = vpop.f32.mrb[0].mxu0
      %v666 = vadd.f32 %v253, %v665
      %v667 = vpop.f32.mrb[0].mxu0
      %v668 = vpop.f32.mrb[0].mxu0
      %v669 = vadd.f32 %v253, %v668
      %v670 = vpop.f32.mrb[0].mxu0
      %671 = vmatprep.mubr.bf16.mxu0 0
      %672 = vmatmul.mubr.bf16.gmra.mrb[0].mxu0 %v480
      %v673 = vpop.f32.mrb[0].mxu0
      %v674 = vadd.f32 %v253, %v673
      %v675 = vpop.f32.mrb[0].mxu0
      %v676 = vpop.f32.mrb[0].mxu0
      %v677 = vadd.f32 %v253, %v676
      %v678 = vpop.f32.mrb[0].mxu0
      %679 = vmatprep.mubr.bf16.mxu0 0
      %680 = vmatmul.mubr.bf16.gmra.mrb[0].mxu0 %v483
      %v681 = vpop.f32.mrb[0].mxu0
      %v682 = vadd.f32 %v253, %v681
      %v683 = vpop.f32.mrb[0].mxu0
      %v684 = vpop.f32.mrb[0].mxu0
      %v685 = vadd.f32 %v253, %v684
      %v686 = vpop.f32.mrb[0].mxu0
      %687 = vmatprep.mubr.bf16.mxu0 0
      %688 = vmatmul.mubr.bf16.gmra.mrb[0].mxu0 %v486
      %v689 = vpop.f32.mrb[0].mxu0
      %v690 = vadd.f32 %v253, %v689
      %v691 = vpop.f32.mrb[0].mxu0
      %v692 = vpop.f32.mrb[0].mxu0
      %v693 = vadd.f32 %v253, %v692
      %v694 = vpop.f32.mrb[0].mxu0
      %695 = vmatprep.mubr.bf16.mxu0 0
      %696 = vmatmul.mubr.bf16.gmra.mrb[0].mxu0 %v489
      %v697 = vpop.f32.mrb[0].mxu0
      %v698 = vadd.f32 %v253, %v697
      %v699 = vpop.f32.mrb[0].mxu0
      %v700 = vpop.f32.mrb[0].mxu0
      %v701 = vadd.f32 %v253, %v700
      %v702 = vpop.f32.mrb[0].mxu0
      %703 = vmatprep.mubr.bf16.mxu0 0
      %704 = vmatmul.mubr.bf16.gmra.mrb[0].mxu0 %v492
      %v705 = vpop.f32.mrb[0].mxu0
      %v706 = vadd.f32 %v253, %v705
      %v707 = vpop.f32.mrb[0].mxu0
      %v708 = vpop.f32.mrb[0].mxu0
      %v709 = vadd.f32 %v253, %v708
      %v710 = vpop.f32.mrb[0].mxu0
      %711 = vmatprep.mubr.bf16.mxu0 0
      %712 = vmatmul.mubr.bf16.gmra.mrb[0].mxu0 %v495
      %v713 = vpop.f32.mrb[0].mxu0
      %v714 = vadd.f32 %v253, %v713
      %v715 = vpop.f32.mrb[0].mxu0
      %v716 = vpop.f32.mrb[0].mxu0
      %v717 = vadd.f32 %v253, %v716
      %v718 = vpop.f32.mrb[0].mxu0
      %719 = vmatprep.mubr.bf16.mxu0 0
      %720 = vmatmul.mubr.bf16.gmra.mrb[0].mxu0 %v498
      %v721 = vpop.f32.mrb[0].mxu0
      %v722 = vadd.f32 %v253, %v721
      %v723 = vpop.f32.mrb[0].mxu0
      %v724 = vpop.f32.mrb[0].mxu0
      %v725 = vadd.f32 %v253, %v724
      %v726 = vpop.f32.mrb[0].mxu0
      %727 = vmatprep.mubr.bf16.mxu0 0
      %728 = vmatmul.mubr.bf16.gmra.mrb[0].mxu0 %v501
      %v729 = vpop.f32.mrb[0].mxu0
      %v730 = vadd.f32 %v253, %v729
      %v731 = vpop.f32.mrb[0].mxu0
      %v732 = vpop.f32.mrb[0].mxu0
      %v733 = vadd.f32 %v253, %v732
      %v734 = vpop.f32.mrb[0].mxu0
      %735 = vmatprep.mubr.bf16.mxu0 0
      %736 = vmatmul.mubr.bf16.gmra.mrb[0].mxu0 %v504
      %v737 = vpop.f32.mrb[0].mxu0
      %v738 = vadd.f32 %v253, %v737
      %v739 = vpop.f32.mrb[0].mxu0
      %v740 = vpop.f32.mrb[0].mxu0
      %v741 = vadd.f32 %v253, %v740
      %v742 = vpop.f32.mrb[0].mxu0
      %743 = vmatprep.mubr.bf16.mxu0 0
      %744 = vmatmul.mubr.bf16.gmra.mrb[0].mxu0 %v507
      %v745 = vpop.f32.mrb[0].mxu0
      %v746 = vadd.f32 %v253, %v745
      %v747 = vpop.f32.mrb[0].mxu0
      %v748 = vpop.f32.mrb[0].mxu0
      %v749 = vadd.f32 %v253, %v748
      %v750 = vpop.f32.mrb[0].mxu0
      %751 = vmatprep.mubr.bf16.mxu0 0
      %752 = vmatmul.mubr.bf16.gmra.mrb[0].mxu0 %v510
      %v753 = vpop.f32.mrb[0].mxu0
      %v754 = vadd.f32 %v253, %v753
      %v755 = vpop.f32.mrb[0].mxu0
      %v756 = vpop.f32.mrb[0].mxu0
      %v757 = vadd.f32 %v253, %v756
      %v758 = vpop.f32.mrb[0].mxu0
      %759 = vmatprep.mubr.bf16.mxu0 0
      %760 = vmatmul.mubr.bf16.gmra.mrb[0].mxu0 %v513
      %v761 = vpop.f32.mrb[0].mxu0
      %v762 = vadd.f32 %v253, %v761
      %v763 = vpop.f32.mrb[0].mxu0
      %v764 = vpop.f32.mrb[0].mxu0
      %v765 = vadd.f32 %v253, %v764
      %v766 = vpop.f32.mrb[0].mxu0
      %767 = vmatprep.mubr.bf16.mxu0 0
      %768 = vmatmul.mubr.bf16.gmra.mrb[0].mxu0 %v516
      %v769 = vpop.f32.mrb[0].mxu0
      %v770 = vadd.f32 %v253, %v769
      %v771 = vpop.f32.mrb[0].mxu0
      %v772 = vpop.f32.mrb[0].mxu0
      %v773 = vadd.f32 %v253, %v772
      %v774 = vpop.f32.mrb[0].mxu0
      %775 = vmatprep.mubr.bf16.mxu0 0
      %776 = vmatmul.mubr.bf16.gmra.mrb[0].mxu0 %v519
      %v777 = vpop.f32.mrb[0].mxu0
      %v778 = vadd.f32 %v253, %v777
      %v779 = vpop.f32.mrb[0].mxu0
      %v780 = vpop.f32.mrb[0].mxu0
      %v781 = vadd.f32 %v253, %v780
      %v782 = vpop.f32.mrb[0].mxu0
      %783 = vmatprep.mubr.bf16.mxu0 0
      %784 = vmatmul.mubr.bf16.gmra.mrb[0].mxu0 %v522
      %v785 = vpop.f32.mrb[0].mxu0
      %v786 = vadd.f32 %v253, %v785
      %v787 = vpop.f32.mrb[0].mxu0
      %v788 = vpop.f32.mrb[0].mxu0
      %v789 = vadd.f32 %v253, %v788
      %v790 = vpop.f32.mrb[0].mxu0
      %791 = vmatprep.mubr.bf16.mxu0 0
      %792 = vmatmul.mubr.bf16.gmra.mrb[0].mxu0 %v525
      %v793 = vpop.f32.mrb[0].mxu0
      %v794 = vadd.f32 %v253, %v793
      %v795 = vpop.f32.mrb[0].mxu0
      %v796 = vpop.f32.mrb[0].mxu0
      %v797 = vadd.f32 %v253, %v796
      %v798 = vpop.f32.mrb[0].mxu0
      %799 = vmatprep.mubr.bf16.mxu0 0
      %800 = vmatmul.mubr.bf16.gmra.mrb[0].mxu0 %v528
      %v801 = vpop.f32.mrb[0].mxu0
      %v802 = vadd.f32 %v253, %v801
      %v803 = vpop.f32.mrb[0].mxu0
      %v804 = vpop.f32.mrb[0].mxu0
      %v805 = vadd.f32 %v253, %v804
      %v806 = vpop.f32.mrb[0].mxu0
      %807 = vmatprep.mubr.bf16.mxu0 0
      %808 = vmatmul.mubr.bf16.gmra.mrb[0].mxu0 %v531
      %v809 = vpop.f32.mrb[0].mxu0
      %v810 = vadd.f32 %v253, %v809
      %v811 = vpop.f32.mrb[0].mxu0
      %v812 = vpop.f32.mrb[0].mxu0
      %v813 = vadd.f32 %v253, %v812
      %v814 = vpop.f32.mrb[0].mxu0
      %815 = vmatprep.mubr.bf16.mxu0 0
      %816 = vmatmul.mubr.bf16.gmra.mrb[0].mxu0 %v534
      %v817 = vpop.f32.mrb[0].mxu0
      %v818 = vadd.f32 %v253, %v817
      %v819 = vpop.f32.mrb[0].mxu0
      %v820 = vpop.f32.mrb[0].mxu0
      %v821 = vadd.f32 %v253, %v820
      %v822 = vpop.f32.mrb[0].mxu0
      %823 = vmatprep.mubr.bf16.mxu0 0
      %824 = vmatmul.mubr.bf16.gmra.mrb[0].mxu0 %v537
      %v825 = vpop.f32.mrb[0].mxu0
      %v826 = vadd.f32 %v253, %v825
      %v827 = vpop.f32.mrb[0].mxu0
      %v828 = vpop.f32.mrb[0].mxu0
      %v829 = vadd.f32 %v253, %v828
      %v830 = vpop.f32.mrb[0].mxu0
      %831 = vdwg.mxu0
      %v832 = vtanh.pop %v578
      %v833 = vtanh.pop %v581
      %v834 = vtanh.pop %v586
      %v835 = vtanh.pop %v589
      %v836 = vtanh.pop %v594
      %v837 = vtanh.pop %v597
      %v838 = vtanh.pop %v602
      %v839 = vtanh.pop %v605
      %v840 = vtanh.pop %v610
      %v841 = vtanh.pop %v613
      %v842 = vtanh.pop %v618
      %v843 = vtanh.pop %v621
      %v844 = vtanh.pop %v626
      %v845 = vtanh.pop %v629
      %v846 = vtanh.pop %v634
      %v847 = vtanh.pop %v637
      %v848 = vtanh.pop %v642
      %v849 = vtanh.pop %v645
      %v850 = vtanh.pop %v650
      %v851 = vtanh.pop %v653
      %v852 = vtanh.pop %v658
      %v853 = vtanh.pop %v661
      %v854 = vtanh.pop %v666
      %v855 = vtanh.pop %v669
      %v856 = vtanh.pop %v674
      %v857 = vtanh.pop %v677
      %v858 = vtanh.pop %v682
      %v859 = vtanh.pop %v685
      %v860 = vtanh.pop %v690
      %v861 = vtanh.pop %v693
      %v862 = vtanh.pop %v698
      %v863 = vtanh.pop %v701
      %v864 = vtanh.pop %v706
      %v865 = vtanh.pop %v709
      %v866 = vtanh.pop %v714
      %v867 = vtanh.pop %v717
      %v868 = vtanh.pop %v722
      %v869 = vtanh.pop %v725
      %v870 = vtanh.pop %v730
      %v871 = vtanh.pop %v733
      %v872 = vtanh.pop %v738
      %v873 = vtanh.pop %v741
      %v874 = vtanh.pop %v746
      %v875 = vtanh.pop %v749
      %v876 = vtanh.pop %v754
      %v877 = vtanh.pop %v757
      %v878 = vtanh.pop %v762
      %v879 = vtanh.pop %v765
      %v880 = vtanh.pop %v770
      %v881 = vtanh.pop %v773
      %v882 = vtanh.pop %v778
      %v883 = vtanh.pop %v781
      %v884 = vtanh.pop %v786
      %v885 = vtanh.pop %v789
      %v886 = vtanh.pop %v794
      %v887 = vtanh.pop %v797
      %v888 = vtanh.pop %v802
      %v889 = vtanh.pop %v805
      %v890 = vtanh.pop %v810
      %v891 = vtanh.pop %v813
      %v892 = vtanh.pop %v818
      %v893 = vtanh.pop %v821
      %v894 = vtanh.pop %v826
      %v895 = vtanh.pop %v829
      %896 = vst [vmem:[%s172] sm:$0xff] %v832
      %897 = vst [vmem:[%s172 + $0x8] sm:$0xff] %v833
      %898 = vst [vmem:[%s172 + $0x10] sm:$0xff] %v834
      %899 = vst [vmem:[%s172 + $0x18] sm:$0xff] %v835
      %900 = vst [vmem:[%s172 + $0x20] sm:$0xff] %v836
      %901 = vst [vmem:[%s172 + $0x28] sm:$0xff] %v837
      %902 = vst [vmem:[%s172 + $0x30] sm:$0xff] %v838
      %903 = vst [vmem:[%s172 + $0x38] sm:$0xff] %v839
      %904 = vst [vmem:[%s172 + $0x40] sm:$0xff] %v840
      %905 = vst [vmem:[%s172 + $0x48] sm:$0xff] %v841
      %906 = vst [vmem:[%s172 + $0x50] sm:$0xff] %v842
      %907 = vst [vmem:[%s172 + $0x58] sm:$0xff] %v843
      %908 = vst [vmem:[%s172 + $0x60] sm:$0xff] %v844
      %909 = vst [vmem:[%s172 + $0x68] sm:$0xff] %v845
      %910 = vst [vmem:[%s172 + $0x70] sm:$0xff] %v846
      %911 = vst [vmem:[%s172 + $0x78] sm:$0xff] %v847
      %912 = vst [vmem:[%s172 + $0x80] sm:$0xff] %v848
      %913 = vst [vmem:[%s172 + $0x88] sm:$0xff] %v849
      %914 = vst [vmem:[%s172 + $0x90] sm:$0xff] %v850
      %915 = vst [vmem:[%s172 + $0x98] sm:$0xff] %v851
      %916 = vst [vmem:[%s172 + $0xa0] sm:$0xff] %v852
      %917 = vst [vmem:[%s172 + $0xa8] sm:$0xff] %v853
      %918 = vst [vmem:[%s172 + $0xb0] sm:$0xff] %v854
      %919 = vst [vmem:[%s172 + $0xb8] sm:$0xff] %v855
      %920 = vst [vmem:[%s172 + $0xc0] sm:$0xff] %v856
      %921 = vst [vmem:[%s172 + $0xc8] sm:$0xff] %v857
      %922 = vst [vmem:[%s172 + $0xd0] sm:$0xff] %v858
      %923 = vst [vmem:[%s172 + $0xd8] sm:$0xff] %v859
      %924 = vst [vmem:[%s172 + $0xe0] sm:$0xff] %v860
      %925 = vst [vmem:[%s172 + $0xe8] sm:$0xff] %v861
      %926 = vst [vmem:[%s172 + $0xf0] sm:$0xff] %v862
      %927 = vst [vmem:[%s172 + $0xf8] sm:$0xff] %v863
      %928 = vst [vmem:[%s172 + $0x100] sm:$0xff] %v864
      %929 = vst [vmem:[%s172 + $0x108] sm:$0xff] %v865
      %930 = vst [vmem:[%s172 + $0x110] sm:$0xff] %v866
      %931 = vst [vmem:[%s172 + $0x118] sm:$0xff] %v867
      %932 = vst [vmem:[%s172 + $0x120] sm:$0xff] %v868
      %933 = vst [vmem:[%s172 + $0x128] sm:$0xff] %v869
      %934 = vst [vmem:[%s172 + $0x130] sm:$0xff] %v870
      %935 = vst [vmem:[%s172 + $0x138] sm:$0xff] %v871
      %936 = vst [vmem:[%s172 + $0x140] sm:$0xff] %v872
      %937 = vst [vmem:[%s172 + $0x148] sm:$0xff] %v873
      %938 = vst [vmem:[%s172 + $0x150] sm:$0xff] %v874
      %939 = vst [vmem:[%s172 + $0x158] sm:$0xff] %v875
      %940 = vst [vmem:[%s172 + $0x160] sm:$0xff] %v876
      %941 = vst [vmem:[%s172 + $0x168] sm:$0xff] %v877
      %942 = vst [vmem:[%s172 + $0x170] sm:$0xff] %v878
      %943 = vst [vmem:[%s172 + $0x178] sm:$0xff] %v879
      %944 = vst [vmem:[%s172 + $0x180] sm:$0xff] %v880
      %945 = vst [vmem:[%s172 + $0x188] sm:$0xff] %v881
      %946 = vst [vmem:[%s172 + $0x190] sm:$0xff] %v882
      %947 = vst [vmem:[%s172 + $0x198] sm:$0xff] %v883
      %948 = vst [vmem:[%s172 + $0x1a0] sm:$0xff] %v884
      %949 = vst [vmem:[%s172 + $0x1a8] sm:$0xff] %v885
      %950 = vst [vmem:[%s172 + $0x1b0] sm:$0xff] %v886
      %951 = vst [vmem:[%s172 + $0x1b8] sm:$0xff] %v887
      %952 = vst [vmem:[%s172 + $0x1c0] sm:$0xff] %v888
      %953 = vst [vmem:[%s172 + $0x1c8] sm:$0xff] %v889
      %954 = vst [vmem:[%s172 + $0x1d0] sm:$0xff] %v890
      %955 = vst [vmem:[%s172 + $0x1d8] sm:$0xff] %v891
      %956 = vst [vmem:[%s172 + $0x1e0] sm:$0xff] %v892
      %957 = vst [vmem:[%s172 + $0x1e8] sm:$0xff] %v893
      %958 = vst [vmem:[%s172 + $0x1f0] sm:$0xff] %v894
      %959 = vst [vmem:[%s172 + $0x1f8] sm:$0xff] %v895
      %s960 = smul.u32 64, %s14
      %p961 = scmp.lt.s32.totalorder %s960, 255
      %s962 = scalar_select %p961, %s960, 255
      %s963 = smul.addr %s962, 8
      %s964 = scalar_lea.vmem %s3, %s963
      // Predicated region
      $region33: #{generator_forward.17} parent=31 // pred_check
        %p965 = pneg %p100
      $region34: #{generator_forward.17} parent=31 // pred_check_branch
        %967 = sbr.rel (%p965) target = $region36
      $region35: #{generator_forward.17} parent=31 // pred_region
        %s968 = smul.u32 64, %s14
      $region36: #{generator_forward.17} parent=31 // pred_fallthru
        _
    $region32: #{generator_forward.17} parent=5 // pred_fallthru
      _
    %p969 = scmp.le.s32.totalorder 2, %s9
    // Predicated region
    $region37: #{generator_forward.17} parent=5 // pred_check
      %p970 = pneg %p969
    $region38: #{generator_forward.17} parent=5 // pred_check_branch
      %972 = sbr.rel (%p970) target = $region40
    $region39: #{generator_forward.17} parent=5 // pred_region
      %s973 = ssub.s32 %s9, 2
      // Predicated region
      $region41: #{generator_forward.17} parent=39 // pred_check
        %p974 = pneg %p106
      $region42: #{generator_forward.17} parent=39 // pred_check_branch
        %976 = sbr.rel (%p974) target = $region44
      $region43: #{generator_forward.17} parent=39 // pred_region
        %s977 = smul.u32 64, %s15
        %p978 = scmp.lt.s32.totalorder %s977, 255
        %s979 = scalar_select %p978, %s977, 255
        %s980 = smul.addr %s979, 8
        %s981 = scalar_lea.vmem %s3, %s980
      $region44: #{generator_forward.17} parent=39 // pred_fallthru
        _
    $region40: #{generator_forward.17} parent=5 // pred_fallthru
      _
  $region6: #{generator_forward.17} parent=0 // loop_footer
    %s13 = sadd.s32 1, %s9
  $region7: #{generator_forward.17} parent=0 // loop_footer_branch
    %8 = sbr.rel target = $region3
  $region8: #{generator_forward.17} parent=0 // loop_exit
    _

</llo_original>
